<compile_context>
chip_gen: v7x
topology: tpu7x:2x2x1
jax: 0.10.0
libtpu: 0.0.40
codegen_flags: <defaults>
</compile_context>

<pallas_src>
import functools
import math

import jax
import jax.numpy as jnp
from jax import lax
from jax.experimental import pallas as pl
from jax.experimental.pallas import tpu as pltpu


# ----------------------------- kernels ------------------------------------ #

def _layernorm(x, w, b, eps=1e-5):
    mean = jnp.mean(x, axis=-1, keepdims=True)
    xc = x - mean
    var = jnp.mean(xc * xc, axis=-1, keepdims=True)
    return xc * lax.rsqrt(var + eps) * w + b


def fused_encoder_kernel(x_ref,
                         wqkv_ref, bqkv_ref, wo_ref, bo_ref,
                         w1_ref, b1_ref, w2_ref, b2_ref,
                         g1_ref, be1_ref, g2_ref, be2_ref,
                         o_ref, *, nhead, batch, seq):
    """grid = (batch_tiles, layers).  o_ref (resident) carries the activation.

    x_ref / o_ref are (N, D) with N = batch*seq rows of this batch tile.
    Weights (bf16, pre-transposed) are the current layer's parameters.
    Post-norm encoder layer, ReLU FFN, eval-mode dropout (identity).
    """
    layer = pl.program_id(1)
    n_layers = pl.num_programs(1)
    del n_layers  # final state is simply the last write to the resident block

    # Seed the resident output block with the input activation once per tile.
    @pl.when(layer == 0)
    def _():
        o_ref[...] = x_ref[...]

    x = o_ref[...].astype(jnp.float32)                # (N, D) f32 carry
    N, D = x.shape
    hd = D // nhead

    xb = x.astype(jnp.bfloat16)

    # --- multi-head self-attention -------------------------------------- #
    # One QKV projection over the whole (N, D) slab; bf16 operands, f32 acc.
    # The 1/sqrt(hd) scale is already folded into the Q columns host-side.
    qkv = jnp.dot(xb, wqkv_ref[...],
                  preferred_element_type=jnp.float32) + bqkv_ref[...]   # (N, 3D) f32
    q = qkv[:, :D]
    k = qkv[:, D:2 * D]
    v = qkv[:, 2 * D:]

    def to_heads(t):
        # (N, D) -> (nhead*batch, seq, hd): head-major leading batch axis.
        return jnp.concatenate(
            [t[:, h * hd:(h + 1) * hd].reshape(batch, seq, hd)
             for h in range(nhead)],
            axis=0).astype(jnp.bfloat16)

    qh, kh, vh = to_heads(q), to_heads(k), to_heads(v)        # (H*B, S, hd)

    # Single batched QK^T / softmax / PV over all heads & batch elements.
    s = jnp.einsum('bqd,bkd->bqk', qh, kh,
                   preferred_element_type=jnp.float32)        # (H*B, S, S) f32
    s = s - jnp.max(s, axis=-1, keepdims=True)
    p = jnp.exp(s)
    p = p * pl.reciprocal(jnp.sum(p, axis=-1, keepdims=True), approx=True)
    oh = jnp.einsum('bqk,bkd->bqd', p.astype(jnp.bfloat16), vh,
                    preferred_element_type=jnp.float32)       # (H*B, S, hd) f32

    # Merge heads back to (N, D) columns, then a single output projection.
    attn = jnp.concatenate(
        [oh[h * batch:(h + 1) * batch].reshape(N, hd) for h in range(nhead)],
        axis=-1)                                              # (N, D) f32
    attn = jnp.dot(attn.astype(jnp.bfloat16), wo_ref[...],
                   preferred_element_type=jnp.float32) + bo_ref[...]

    # residual + LayerNorm1 (dropout == identity, eval mode), all f32.
    x = _layernorm(x + attn, g1_ref[...], be1_ref[...])

    # --- feed-forward: Linear -> ReLU -> Linear -------------------------- #
    h1 = jnp.maximum(
        jnp.dot(x.astype(jnp.bfloat16), w1_ref[...],
                preferred_element_type=jnp.float32) + b1_ref[...],
        0.0)
    h2 = jnp.dot(h1.astype(jnp.bfloat16), w2_ref[...],
                 preferred_element_type=jnp.float32) + b2_ref[...]

    # residual + LayerNorm2
    x = _layernorm(x + h2, g2_ref[...], be2_ref[...])

    o_ref[...] = x.astype(o_ref.dtype)                # carry to next layer


def linear_kernel(x_ref, w_ref, b_ref, o_ref):
    """Final vocab projection tile: (N, D) @ (D, tv) + b, bf16 MXU, f32 acc."""
    o_ref[...] = (jnp.dot(x_ref[...].astype(jnp.bfloat16), w_ref[...],
                          preferred_element_type=jnp.float32)
                  + b_ref[...]).astype(o_ref.dtype)


# ----------------------------- wrappers ------------------------------------ #

_ORDER = ("wqkv_t", "bqkv", "wo_t", "bo", "w1_t", "b1", "w2_t", "b2",
          "g1", "be1", "g2", "be2")

_VMEM_LIMIT = 64 * 1024 * 1024   # explicit budget (v7x physical VMEM = 64 MiB)


def run_encoder_stack(x2d, stacked, nhead, batch, seq, batch_tile=None):
    """x2d: (B*S, D).  stacked[k]: (num_layers, ...) pre-transposed params."""
    num_layers = stacked["wqkv_t"].shape[0]
    N, D = x2d.shape
    if batch_tile is None:
        batch_tile = batch                      # toy shapes: one tile
    assert batch % batch_tile == 0
    n_tiles = batch // batch_tile
    nt_rows = batch_tile * seq                  # rows per batch tile

    def layer_spec(p):
        # (L, r, c): squeeze the layer axis, full (r, c) block per layer.
        return pl.BlockSpec((None,) + p.shape[1:], lambda b, l: (l, 0, 0))

    flat = [stacked[k] for k in _ORDER]
    kernel = functools.partial(fused_encoder_kernel,
                               nhead=nhead, batch=batch_tile, seq=seq)
    return pl.pallas_call(
        kernel,
        out_shape=jax.ShapeDtypeStruct((N, D), x2d.dtype),
        grid_spec=pltpu.PrefetchScalarGridSpec(
            num_scalar_prefetch=0,
            grid=(n_tiles, num_layers),          # batch tiles outer, layers inner
            in_specs=[pl.BlockSpec((nt_rows, D), lambda b, l: (b, 0))]
                     + [layer_spec(p) for p in flat],
            # o_ref block index is constant over the layer axis -> resident
            # activation carry; written back to HBM once per batch tile.
            out_specs=pl.BlockSpec((nt_rows, D), lambda b, l: (b, 0))),
        compiler_params=pltpu.CompilerParams(
            dimension_semantics=("parallel", "arbitrary"),
            vmem_limit_bytes=_VMEM_LIMIT),
    )(x2d, *flat)


def run_final_linear(x2d, w_t, b, tile_v=128):
    """x2d: (N, D) f32, w_t: (D, V) bf16 pre-transposed, b: (1, V) f32."""
    N, D = x2d.shape
    V = w_t.shape[1]
    assert V % tile_v == 0
    return pl.pallas_call(
        linear_kernel,
        out_shape=jax.ShapeDtypeStruct((N, V), jnp.float32),
        grid_spec=pltpu.PrefetchScalarGridSpec(
            num_scalar_prefetch=0,
            grid=(V // tile_v,),                 # lane-dense 128-wide vocab tiles
            in_specs=[pl.BlockSpec((N, D), lambda j: (0, 0)),
                      pl.BlockSpec((D, tile_v), lambda j: (0, j)),
                      pl.BlockSpec((1, tile_v), lambda j: (0, j))],
            out_specs=pl.BlockSpec((N, tile_v), lambda j: (0, j))),
        compiler_params=pltpu.CompilerParams(
            dimension_semantics=("parallel",),
            vmem_limit_bytes=_VMEM_LIMIT),
    )(x2d, w_t, b)


# ----------------------------- model --------------------------------------- #

def init_params(key, vocab_size, d_model, num_layers, dim_feedforward, nhead):
    keys = jax.random.split(key, 2 + num_layers)

    def u(k, shape, lim):
        return jax.random.uniform(k, shape, jnp.float32, -lim, lim)

    emb = u(keys[0], (vocab_size, d_model), 0.1)          # emb.weight.uniform_(-0.1,0.1)
    lin_w_t = u(keys[1], (d_model, vocab_size), 0.1).astype(jnp.bfloat16)  # (D, V)
    lin_b = jnp.zeros((1, vocab_size), jnp.float32)       # linear.bias.zero_()

    hd = d_model // nhead
    scale = 1.0 / math.sqrt(hd)
    lim_d = 1.0 / math.sqrt(d_model)
    lim_f = 1.0 / math.sqrt(dim_feedforward)
    # TODO(synk): PyTorch uses xavier_uniform_ for in_proj_weight; init-level
    # parity is not required for the kernel and is left as simple uniform.
    per = {k: [] for k in _ORDER}
    for l in range(num_layers):
        ks = jax.random.split(keys[2 + l], 4)
        wqkv = u(ks[0], (d_model, 3 * d_model), lim_d)
        wqkv = wqkv.at[:, :d_model].multiply(scale)       # fold 1/sqrt(hd) into Q
        bqkv = jnp.zeros((3 * d_model,), jnp.float32)
        bqkv = bqkv.at[:d_model].multiply(scale)
        per["wqkv_t"].append(wqkv.astype(jnp.bfloat16))   # (D, 3D) bf16
        per["bqkv"].append(bqkv.reshape(1, -1))
        per["wo_t"].append(u(ks[1], (d_model, d_model), lim_d).astype(jnp.bfloat16))
        per["bo"].append(jnp.zeros((1, d_model), jnp.float32))
        per["w1_t"].append(u(ks[2], (d_model, dim_feedforward), lim_d).astype(jnp.bfloat16))
        per["b1"].append(jnp.zeros((1, dim_feedforward), jnp.float32))
        per["w2_t"].append(u(ks[3], (dim_feedforward, d_model), lim_f).astype(jnp.bfloat16))
        per["b2"].append(jnp.zeros((1, d_model), jnp.float32))
        per["g1"].append(jnp.ones((1, d_model), jnp.float32))
        per["be1"].append(jnp.zeros((1, d_model), jnp.float32))
        per["g2"].append(jnp.ones((1, d_model), jnp.float32))
        per["be2"].append(jnp.zeros((1, d_model), jnp.float32))
    stacked = {k: jnp.stack(v) for k, v in per.items()}   # (L, ...) per param
    return emb, stacked, lin_w_t, lin_b


def transformer_forward(inputs, emb, stacked, lin_w_t, lin_b, nhead):
    B, T = inputs.shape
    # Embedding lookup (glue, gather).  PyTorch's (S,B,D) permute is a pure
    # layout shuffle; attention only mixes over S within a batch element, so
    # folding (B, T, D) -> (B*T, D) row-major preserves semantics and the
    # final output row order.  No positional encoding / mask in the reference.
    X = jnp.take(emb, inputs, axis=0)                 # (B, T, D) f32
    X2 = X.reshape(B * T, -1)                         # (B*T, D)
    X2 = run_encoder_stack(X2, stacked, nhead, B, T)  # one Pallas call, all layers
    out = run_final_linear(X2, lin_w_t, lin_b)        # (B*T, vocab) f32
    return out, None                                  # matches (output, None)


# ----------------------------- main ----------------------------------------- #

if __name__ == "__main__":
    # Small shapes consistent with the module's forward.
    vocab_size = 256
    d_model = 128
    n_head = 4
    num_layers = 2
    dim_feedforward = 256
    batch, seq = 2, 8

    key = jax.random.PRNGKey(0)
    pkey, ikey = jax.random.split(key)
    emb, stacked, lin_w_t, lin_b = init_params(pkey, vocab_size, d_model,
                                               num_layers, dim_feedforward,
                                               n_head)
    inputs = jax.random.randint(ikey, (batch, seq), 0, vocab_size, jnp.int32)

    fwd = jax.jit(functools.partial(transformer_forward, nhead=n_head))
    out, state = fwd(inputs, emb, stacked, lin_w_t, lin_b)
    out = jax.block_until_ready(out)
    assert out.shape == (batch * seq, vocab_size)
    assert out.dtype == jnp.float32
    assert bool(jnp.all(jnp.isfinite(out)))
    assert state is None
    print("KERNEL_OK")
</pallas_src>

<mosaic_0001>
module attributes {stable_mosaic.version = 11 : i64} {
  func.func @linear_kernel(%arg0: i32, %arg1: memref<16x128xf32, #tpu.memory_space<vmem>>, %arg2: memref<128x128xbf16, #tpu.memory_space<vmem>>, %arg3: memref<1x128xf32, #tpu.memory_space<vmem>>, %arg4: memref<16x128xf32, #tpu.memory_space<vmem>>) attributes {dimension_semantics = [#tpu.dimension_semantics<parallel>], iteration_bounds = array<i64: 2>, scalar_prefetch = 0 : i64, scratch_operands = 0 : i64, tpu.core_type = #tpu.core_type<tc>, window_params = [{pipeline_mode = #tpu.pipeline_mode<synchronous>, transform_indices = @transform_0, window_bounds = array<i64: 16, 128>}, {transform_indices = @transform_1, window_bounds = array<i64: 128, 128>}, {transform_indices = @transform_2, window_bounds = array<i64: 1, 128>}, {transform_indices = @transform_3, window_bounds = array<i64: 16, 128>}]} {
    %c0 = arith.constant 0 : index
    %c0_0 = arith.constant 0 : index
    %0 = vector.load %arg1[%c0, %c0_0] : memref<16x128xf32, #tpu.memory_space<vmem>>, vector<16x128xf32>
    %1 = arith.truncf %0 : vector<16x128xf32> to vector<16x128xbf16>
    %c0_1 = arith.constant 0 : index
    %c0_2 = arith.constant 0 : index
    %2 = vector.load %arg2[%c0_1, %c0_2] : memref<128x128xbf16, #tpu.memory_space<vmem>>, vector<128x128xbf16>
    %cst = arith.constant dense<0.000000e+00> : vector<16x128xf32>
    %3 = tpu.matmul %1, %2, %cst {dimension_numbers = #tpu.dot_dimension_numbers<[1], [0], [0], [1], [0, 0, 1, 1], [], []>} : vector<16x128xbf16>, vector<128x128xbf16>, vector<16x128xf32> -> vector<16x128xf32>
    %c0_3 = arith.constant 0 : index
    %c0_4 = arith.constant 0 : index
    %4 = vector.load %arg3[%c0_3, %c0_4] : memref<1x128xf32, #tpu.memory_space<vmem>>, vector<1x128xf32>
    %5 = vector.broadcast %4 : vector<1x128xf32> to vector<16x128xf32>
    %6 = arith.addf %3, %5 : vector<16x128xf32>
    %c0_5 = arith.constant 0 : index
    %c0_6 = arith.constant 0 : index
    %7 = vector.load %arg4[%c0_5, %c0_6] : memref<16x128xf32, #tpu.memory_space<vmem>>, vector<16x128xf32>
    tpu.vector_store %arg4[%c0_5, %c0_6], %6 {strides = array<i32>} : memref<16x128xf32, #tpu.memory_space<vmem>>, vector<16x128xf32>,
    return
  }
  func.func @transform_0(%arg0: i32) -> (i32, i32) {
    %c0_i32 = arith.constant 0 : i32
    %c0_i32_0 = arith.constant 0 : i32
    %c0_i32_1 = arith.constant 0 : i32
    return %c0_i32, %c0_i32_0 : i32, i32
  }
  func.func @transform_1(%arg0: i32) -> (i32, i32) {
    %c0_i32 = arith.constant 0 : i32
    %c0_i32_0 = arith.constant 0 : i32
    return %c0_i32, %arg0 : i32, i32
  }
  func.func @transform_2(%arg0: i32) -> (i32, i32) {
    %c0_i32 = arith.constant 0 : i32
    %c0_i32_0 = arith.constant 0 : i32
    return %c0_i32, %arg0 : i32, i32
  }
  func.func @transform_3(%arg0: i32) -> (i32, i32) {
    %c0_i32 = arith.constant 0 : i32
    %c0_i32_0 = arith.constant 0 : i32
    return %c0_i32, %arg0 : i32, i32
  }
}

module attributes {stable_mosaic.version = 11 : i64} {
  func.func @fused_encoder_kernel(%arg0: i32, %arg1: i32, %arg2: memref<16x128xf32, #tpu.memory_space<vmem>>, %arg3: memref<1x128x384xbf16, #tpu.memory_space<vmem>>, %arg4: memref<1x1x384xf32, #tpu.memory_space<vmem>>, %arg5: memref<1x128x128xbf16, #tpu.memory_space<vmem>>, %arg6: memref<1x1x128xf32, #tpu.memory_space<vmem>>, %arg7: memref<1x128x256xbf16, #tpu.memory_space<vmem>>, %arg8: memref<1x1x256xf32, #tpu.memory_space<vmem>>, %arg9: memref<1x256x128xbf16, #tpu.memory_space<vmem>>, %arg10: memref<1x1x128xf32, #tpu.memory_space<vmem>>, %arg11: memref<1x1x128xf32, #tpu.memory_space<vmem>>, %arg12: memref<1x1x128xf32, #tpu.memory_space<vmem>>, %arg13: memref<1x1x128xf32, #tpu.memory_space<vmem>>, %arg14: memref<1x1x128xf32, #tpu.memory_space<vmem>>, %arg15: memref<16x128xf32, #tpu.memory_space<vmem>>) attributes {dimension_semantics = [#tpu.dimension_semantics<parallel>, #tpu.dimension_semantics<arbitrary>], iteration_bounds = array<i64: 1, 2>, scalar_prefetch = 0 : i64, scratch_operands = 0 : i64, tpu.core_type = #tpu.core_type<tc>, window_params = [{transform_indices = @transform_0, window_bounds = array<i64: 16, 128>}, {transform_indices = @transform_1, window_bounds = array<i64: 1, 128, 384>}, {transform_indices = @transform_2, window_bounds = array<i64: 1, 1, 384>}, {transform_indices = @transform_3, window_bounds = array<i64: 1, 128, 128>}, {transform_indices = @transform_4, window_bounds = array<i64: 1, 1, 128>}, {transform_indices = @transform_5, window_bounds = array<i64: 1, 128, 256>}, {transform_indices = @transform_6, window_bounds = array<i64: 1, 1, 256>}, {transform_indices = @transform_7, window_bounds = array<i64: 1, 256, 128>}, {transform_indices = @transform_8, window_bounds = array<i64: 1, 1, 128>}, {transform_indices = @transform_9, window_bounds = array<i64: 1, 1, 128>}, {transform_indices = @transform_10, window_bounds = array<i64: 1, 1, 128>}, {transform_indices = @transform_11, window_bounds = array<i64: 1, 1, 128>}, {transform_indices = @transform_12, window_bounds = array<i64: 1, 1, 128>}, {transform_indices = @transform_13, window_bounds = array<i64: 16, 128>}]} {
    %c0_i32 = arith.constant 0 : i32
    %0 = arith.cmpi eq, %arg1, %c0_i32 : i32
    %1 = arith.extui %0 : i1 to i32
    %c0_i32_0 = arith.constant 0 : i32
    %2 = arith.cmpi ne, %1, %c0_i32_0 : i32
    scf.if %2 {
      %c0_58 = arith.constant 0 : index
      %c0_59 = arith.constant 0 : index
      %144 = vector.load %arg2[%c0_58, %c0_59] : memref<16x128xf32, #tpu.memory_space<vmem>>, vector<16x128xf32>
      %c0_60 = arith.constant 0 : index
      %c0_61 = arith.constant 0 : index
      %145 = vector.load %arg15[%c0_60, %c0_61] : memref<16x128xf32, #tpu.memory_space<vmem>>, vector<16x128xf32>
      tpu.vector_store %arg15[%c0_60, %c0_61], %144 {strides = array<i32>} : memref<16x128xf32, #tpu.memory_space<vmem>>, vector<16x128xf32>,
    } else {
    }
    %c0 = arith.constant 0 : index
    %c0_1 = arith.constant 0 : index
    %3 = vector.load %arg15[%c0, %c0_1] : memref<16x128xf32, #tpu.memory_space<vmem>>, vector<16x128xf32>
    %4 = arith.truncf %3 : vector<16x128xf32> to vector<16x128xbf16>
    %c0_2 = arith.constant 0 : index
    %c0_3 = arith.constant 0 : index
    %c0_4 = arith.constant 0 : index
    %5 = vector.load %arg3[%c0_2, %c0_3, %c0_4] : memref<1x128x384xbf16, #tpu.memory_space<vmem>>, vector<1x128x384xbf16>
    %6 = vector.shape_cast %5 : vector<1x128x384xbf16> to vector<128x384xbf16>
    %cst = arith.constant dense<0.000000e+00> : vector<16x384xf32>
    %7 = tpu.matmul %4, %6, %cst {dimension_numbers = #tpu.dot_dimension_numbers<[1], [0], [0], [1], [0, 0, 1, 1], [], []>} : vector<16x128xbf16>, vector<128x384xbf16>, vector<16x384xf32> -> vector<16x384xf32>
    %c0_5 = arith.constant 0 : index
    %c0_6 = arith.constant 0 : index
    %c0_7 = arith.constant 0 : index
    %8 = vector.load %arg4[%c0_5, %c0_6, %c0_7] : memref<1x1x384xf32, #tpu.memory_space<vmem>>, vector<1x1x384xf32>
    %9 = vector.shape_cast %8 : vector<1x1x384xf32> to vector<1x384xf32>
    %10 = vector.broadcast %9 : vector<1x384xf32> to vector<16x384xf32>
    %11 = arith.addf %7, %10 : vector<16x384xf32>
    %12 = vector.extract_strided_slice %11 {offsets = [0, 0], sizes = [16, 128], strides = [1, 1]} : vector<16x384xf32> to vector<16x128xf32>
    %13 = vector.extract_strided_slice %11 {offsets = [0, 128], sizes = [16, 128], strides = [1, 1]} : vector<16x384xf32> to vector<16x128xf32>
    %14 = vector.extract_strided_slice %11 {offsets = [0, 256], sizes = [16, 128], strides = [1, 1]} : vector<16x384xf32> to vector<16x128xf32>
    %15 = vector.extract_strided_slice %12 {offsets = [0, 0], sizes = [16, 32], strides = [1, 1]} : vector<16x128xf32> to vector<16x32xf32>
    %16 = vector.shape_cast %15 : vector<16x32xf32> to vector<2x8x32xf32>
    %17 = vector.extract_strided_slice %12 {offsets = [0, 32], sizes = [16, 32], strides = [1, 1]} : vector<16x128xf32> to vector<16x32xf32>
    %18 = vector.shape_cast %17 : vector<16x32xf32> to vector<2x8x32xf32>
    %19 = vector.extract_strided_slice %12 {offsets = [0, 64], sizes = [16, 32], strides = [1, 1]} : vector<16x128xf32> to vector<16x32xf32>
    %20 = vector.shape_cast %19 : vector<16x32xf32> to vector<2x8x32xf32>
    %21 = vector.extract_strided_slice %12 {offsets = [0, 96], sizes = [16, 32], strides = [1, 1]} : vector<16x128xf32> to vector<16x32xf32>
    %22 = vector.shape_cast %21 : vector<16x32xf32> to vector<2x8x32xf32>
    %23 = tpu.concatenate %16, %18, %20, %22 in 0 : vector<2x8x32xf32>, vector<2x8x32xf32>, vector<2x8x32xf32>, vector<2x8x32xf32> -> vector<8x8x32xf32>
    %24 = arith.truncf %23 : vector<8x8x32xf32> to vector<8x8x32xbf16>
    %25 = vector.extract_strided_slice %13 {offsets = [0, 0], sizes = [16, 32], strides = [1, 1]} : vector<16x128xf32> to vector<16x32xf32>
    %26 = vector.shape_cast %25 : vector<16x32xf32> to vector<2x8x32xf32>
    %27 = vector.extract_strided_slice %13 {offsets = [0, 32], sizes = [16, 32], strides = [1, 1]} : vector<16x128xf32> to vector<16x32xf32>
    %28 = vector.shape_cast %27 : vector<16x32xf32> to vector<2x8x32xf32>
    %29 = vector.extract_strided_slice %13 {offsets = [0, 64], sizes = [16, 32], strides = [1, 1]} : vector<16x128xf32> to vector<16x32xf32>
    %30 = vector.shape_cast %29 : vector<16x32xf32> to vector<2x8x32xf32>
    %31 = vector.extract_strided_slice %13 {offsets = [0, 96], sizes = [16, 32], strides = [1, 1]} : vector<16x128xf32> to vector<16x32xf32>
    %32 = vector.shape_cast %31 : vector<16x32xf32> to vector<2x8x32xf32>
    %33 = tpu.concatenate %26, %28, %30, %32 in 0 : vector<2x8x32xf32>, vector<2x8x32xf32>, vector<2x8x32xf32>, vector<2x8x32xf32> -> vector<8x8x32xf32>
    %34 = arith.truncf %33 : vector<8x8x32xf32> to vector<8x8x32xbf16>
    %35 = vector.extract_strided_slice %14 {offsets = [0, 0], sizes = [16, 32], strides = [1, 1]} : vector<16x128xf32> to vector<16x32xf32>
    %36 = vector.shape_cast %35 : vector<16x32xf32> to vector<2x8x32xf32>
    %37 = vector.extract_strided_slice %14 {offsets = [0, 32], sizes = [16, 32], strides = [1, 1]} : vector<16x128xf32> to vector<16x32xf32>
    %38 = vector.shape_cast %37 : vector<16x32xf32> to vector<2x8x32xf32>
    %39 = vector.extract_strided_slice %14 {offsets = [0, 64], sizes = [16, 32], strides = [1, 1]} : vector<16x128xf32> to vector<16x32xf32>
    %40 = vector.shape_cast %39 : vector<16x32xf32> to vector<2x8x32xf32>
    %41 = vector.extract_strided_slice %14 {offsets = [0, 96], sizes = [16, 32], strides = [1, 1]} : vector<16x128xf32> to vector<16x32xf32>
    %42 = vector.shape_cast %41 : vector<16x32xf32> to vector<2x8x32xf32>
    %43 = tpu.concatenate %36, %38, %40, %42 in 0 : vector<2x8x32xf32>, vector<2x8x32xf32>, vector<2x8x32xf32>, vector<2x8x32xf32> -> vector<8x8x32xf32>
    %44 = arith.truncf %43 : vector<8x8x32xf32> to vector<8x8x32xbf16>
    "tpu.trace_start"() <{level = 10 : i32, message = "bqd,bkd->bqk"}> : () -> ()
    %cst_8 = arith.constant dense<0.000000e+00> : vector<8x8x8xf32>
    %45 = tpu.matmul %24, %34, %cst_8 {dimension_numbers = #tpu.dot_dimension_numbers<[2], [2], [1], [1], [0, 0, 0, 1, 1, 1], [0], [0]>} : vector<8x8x32xbf16>, vector<8x8x32xbf16>, vector<8x8x8xf32> -> vector<8x8x8xf32>
    "tpu.trace_stop"() : () -> ()
    %cst_9 = arith.constant dense<0xFF800000> : vector<8x8xf32>
    %46 = vector.multi_reduction <maximumf>, %45, %cst_9 [2] : vector<8x8x8xf32> to vector<8x8xf32>
    %47 = vector.shape_cast %46 : vector<8x8xf32> to vector<8x8x1xf32>
    %48 = vector.broadcast %47 : vector<8x8x1xf32> to vector<8x8x8xf32>
    %49 = arith.subf %45, %48 : vector<8x8x8xf32>
    %50 = math.exp %49 : vector<8x8x8xf32>
    %cst_10 = arith.constant dense<0.000000e+00> : vector<8x8xf32>
    %51 = vector.multi_reduction <add>, %50, %cst_10 [2] : vector<8x8x8xf32> to vector<8x8xf32>
    %52 = vector.shape_cast %51 : vector<8x8xf32> to vector<8x8x1xf32>
    %53 = tpu.reciprocal %52 {approx = true} : vector<8x8x1xf32> -> vector<8x8x1xf32>
    %54 = vector.broadcast %53 : vector<8x8x1xf32> to vector<8x8x8xf32>
    %55 = arith.mulf %50, %54 : vector<8x8x8xf32>
    %56 = arith.truncf %55 : vector<8x8x8xf32> to vector<8x8x8xbf16>
    "tpu.trace_start"() <{level = 10 : i32, message = "bqk,bkd->bqd"}> : () -> ()
    %cst_11 = arith.constant dense<0.000000e+00> : vector<8x8x32xf32>
    %57 = tpu.matmul %56, %44, %cst_11 {dimension_numbers = #tpu.dot_dimension_numbers<[2], [1], [1], [2], [0, 0, 0, 1, 1, 2], [0], [0]>} : vector<8x8x8xbf16>, vector<8x8x32xbf16>, vector<8x8x32xf32> -> vector<8x8x32xf32>
    "tpu.trace_stop"() : () -> ()
    %58 = vector.extract_strided_slice %57 {offsets = [0, 0, 0], sizes = [2, 8, 32], strides = [1, 1, 1]} : vector<8x8x32xf32> to vector<2x8x32xf32>
    %59 = vector.shape_cast %58 : vector<2x8x32xf32> to vector<16x32xf32>
    %60 = vector.extract_strided_slice %57 {offsets = [2, 0, 0], sizes = [2, 8, 32], strides = [1, 1, 1]} : vector<8x8x32xf32> to vector<2x8x32xf32>
    %61 = vector.shape_cast %60 : vector<2x8x32xf32> to vector<16x32xf32>
    %62 = vector.extract_strided_slice %57 {offsets = [4, 0, 0], sizes = [2, 8, 32], strides = [1, 1, 1]} : vector<8x8x32xf32> to vector<2x8x32xf32>
    %63 = vector.shape_cast %62 : vector<2x8x32xf32> to vector<16x32xf32>
    %64 = vector.extract_strided_slice %57 {offsets = [6, 0, 0], sizes = [2, 8, 32], strides = [1, 1, 1]} : vector<8x8x32xf32> to vector<2x8x32xf32>
    %65 = vector.shape_cast %64 : vector<2x8x32xf32> to vector<16x32xf32>
    %66 = tpu.concatenate %59, %61, %63, %65 in 1 : vector<16x32xf32>, vector<16x32xf32>, vector<16x32xf32>, vector<16x32xf32> -> vector<16x128xf32>
    %67 = arith.truncf %66 : vector<16x128xf32> to vector<16x128xbf16>
    %c0_12 = arith.constant 0 : index
    %c0_13 = arith.constant 0 : index
    %c0_14 = arith.constant 0 : index
    %68 = vector.load %arg5[%c0_12, %c0_13, %c0_14] : memref<1x128x128xbf16, #tpu.memory_space<vmem>>, vector<1x128x128xbf16>
    %69 = vector.shape_cast %68 : vector<1x128x128xbf16> to vector<128x128xbf16>
    %cst_15 = arith.constant dense<0.000000e+00> : vector<16x128xf32>
    %70 = tpu.matmul %67, %69, %cst_15 {dimension_numbers = #tpu.dot_dimension_numbers<[1], [0], [0], [1], [0, 0, 1, 1], [], []>} : vector<16x128xbf16>, vector<128x128xbf16>, vector<16x128xf32> -> vector<16x128xf32>
    %c0_16 = arith.constant 0 : index
    %c0_17 = arith.constant 0 : index
    %c0_18 = arith.constant 0 : index
    %71 = vector.load %arg6[%c0_16, %c0_17, %c0_18] : memref<1x1x128xf32, #tpu.memory_space<vmem>>, vector<1x1x128xf32>
    %72 = vector.shape_cast %71 : vector<1x1x128xf32> to vector<1x128xf32>
    %73 = vector.broadcast %72 : vector<1x128xf32> to vector<16x128xf32>
    %74 = arith.addf %70, %73 : vector<16x128xf32>
    %75 = arith.addf %3, %74 : vector<16x128xf32>
    %c0_19 = arith.constant 0 : index
    %c0_20 = arith.constant 0 : index
    %c0_21 = arith.constant 0 : index
    %76 = vector.load %arg11[%c0_19, %c0_20, %c0_21] : memref<1x1x128xf32, #tpu.memory_space<vmem>>, vector<1x1x128xf32>
    %77 = vector.shape_cast %76 : vector<1x1x128xf32> to vector<1x128xf32>
    %c0_22 = arith.constant 0 : index
    %c0_23 = arith.constant 0 : index
    %c0_24 = arith.constant 0 : index
    %78 = vector.load %arg12[%c0_22, %c0_23, %c0_24] : memref<1x1x128xf32, #tpu.memory_space<vmem>>, vector<1x1x128xf32>
    %79 = vector.shape_cast %78 : vector<1x1x128xf32> to vector<1x128xf32>
    %cst_25 = arith.constant dense<0.000000e+00> : vector<16xf32>
    %80 = vector.multi_reduction <add>, %75, %cst_25 [1] : vector<16x128xf32> to vector<16xf32>
    %81 = vector.shape_cast %80 : vector<16xf32> to vector<16x1xf32>
    %cst_26 = arith.constant 1.280000e+02 : f32
    %82 = vector.broadcast %cst_26 : f32 to vector<16x1xf32>
    %83 = arith.divf %81, %82 : vector<16x1xf32>
    %84 = vector.broadcast %83 : vector<16x1xf32> to vector<16x128xf32>
    %85 = arith.subf %75, %84 : vector<16x128xf32>
    %86 = arith.mulf %85, %85 : vector<16x128xf32>
    %cst_27 = arith.constant dense<0.000000e+00> : vector<16xf32>
    %87 = vector.multi_reduction <add>, %86, %cst_27 [1] : vector<16x128xf32> to vector<16xf32>
    %88 = vector.shape_cast %87 : vector<16xf32> to vector<16x1xf32>
    %cst_28 = arith.constant 1.280000e+02 : f32
    %89 = vector.broadcast %cst_28 : f32 to vector<16x1xf32>
    %90 = arith.divf %88, %89 : vector<16x1xf32>
    %cst_29 = arith.constant 9.99999974E-6 : f32
    %91 = vector.broadcast %cst_29 : f32 to vector<16x1xf32>
    %92 = arith.addf %90, %91 : vector<16x1xf32>
    %93 = math.rsqrt %92 : vector<16x1xf32>
    %94 = vector.broadcast %93 : vector<16x1xf32> to vector<16x128xf32>
    %95 = arith.mulf %85, %94 : vector<16x128xf32>
    %96 = vector.broadcast %77 : vector<1x128xf32> to vector<16x128xf32>
    %97 = arith.mulf %95, %96 : vector<16x128xf32>
    %98 = vector.broadcast %79 : vector<1x128xf32> to vector<16x128xf32>
    %99 = arith.addf %97, %98 : vector<16x128xf32>
    %100 = arith.truncf %99 : vector<16x128xf32> to vector<16x128xbf16>
    %c0_30 = arith.constant 0 : index
    %c0_31 = arith.constant 0 : index
    %c0_32 = arith.constant 0 : index
    %101 = vector.load %arg7[%c0_30, %c0_31, %c0_32] : memref<1x128x256xbf16, #tpu.memory_space<vmem>>, vector<1x128x256xbf16>
    %102 = vector.shape_cast %101 : vector<1x128x256xbf16> to vector<128x256xbf16>
    %cst_33 = arith.constant dense<0.000000e+00> : vector<16x256xf32>
    %103 = tpu.matmul %100, %102, %cst_33 {dimension_numbers = #tpu.dot_dimension_numbers<[1], [0], [0], [1], [0, 0, 1, 1], [], []>} : vector<16x128xbf16>, vector<128x256xbf16>, vector<16x256xf32> -> vector<16x256xf32>
    %c0_34 = arith.constant 0 : index
    %c0_35 = arith.constant 0 : index
    %c0_36 = arith.constant 0 : index
    %104 = vector.load %arg8[%c0_34, %c0_35, %c0_36] : memref<1x1x256xf32, #tpu.memory_space<vmem>>, vector<1x1x256xf32>
    %105 = vector.shape_cast %104 : vector<1x1x256xf32> to vector<1x256xf32>
    %106 = vector.broadcast %105 : vector<1x256xf32> to vector<16x256xf32>
    %107 = arith.addf %103, %106 : vector<16x256xf32>
    %cst_37 = arith.constant 0.000000e+00 : f32
    %108 = vector.broadcast %cst_37 : f32 to vector<16x256xf32>
    %109 = arith.maximumf %107, %108 : vector<16x256xf32>
    %110 = arith.truncf %109 : vector<16x256xf32> to vector<16x256xbf16>
    %c0_38 = arith.constant 0 : index
    %c0_39 = arith.constant 0 : index
    %c0_40 = arith.constant 0 : index
    %111 = vector.load %arg9[%c0_38, %c0_39, %c0_40] : memref<1x256x128xbf16, #tpu.memory_space<vmem>>, vector<1x256x128xbf16>
    %112 = vector.shape_cast %111 : vector<1x256x128xbf16> to vector<256x128xbf16>
    %cst_41 = arith.constant dense<0.000000e+00> : vector<16x128xf32>
    %113 = tpu.matmul %110, %112, %cst_41 {dimension_numbers = #tpu.dot_dimension_numbers<[1], [0], [0], [1], [0, 0, 1, 1], [], []>} : vector<16x256xbf16>, vector<256x128xbf16>, vector<16x128xf32> -> vector<16x128xf32>
    %c0_42 = arith.constant 0 : index
    %c0_43 = arith.constant 0 : index
    %c0_44 = arith.constant 0 : index
    %114 = vector.load %arg10[%c0_42, %c0_43, %c0_44] : memref<1x1x128xf32, #tpu.memory_space<vmem>>, vector<1x1x128xf32>
    %115 = vector.shape_cast %114 : vector<1x1x128xf32> to vector<1x128xf32>
    %116 = vector.broadcast %115 : vector<1x128xf32> to vector<16x128xf32>
    %117 = arith.addf %113, %116 : vector<16x128xf32>
    %118 = arith.addf %99, %117 : vector<16x128xf32>
    %c0_45 = arith.constant 0 : index
    %c0_46 = arith.constant 0 : index
    %c0_47 = arith.constant 0 : index
    %119 = vector.load %arg13[%c0_45, %c0_46, %c0_47] : memref<1x1x128xf32, #tpu.memory_space<vmem>>, vector<1x1x128xf32>
    %120 = vector.shape_cast %119 : vector<1x1x128xf32> to vector<1x128xf32>
    %c0_48 = arith.constant 0 : index
    %c0_49 = arith.constant 0 : index
    %c0_50 = arith.constant 0 : index
    %121 = vector.load %arg14[%c0_48, %c0_49, %c0_50] : memref<1x1x128xf32, #tpu.memory_space<vmem>>, vector<1x1x128xf32>
    %122 = vector.shape_cast %121 : vector<1x1x128xf32> to vector<1x128xf32>
    %cst_51 = arith.constant dense<0.000000e+00> : vector<16xf32>
    %123 = vector.multi_reduction <add>, %118, %cst_51 [1] : vector<16x128xf32> to vector<16xf32>
    %124 = vector.shape_cast %123 : vector<16xf32> to vector<16x1xf32>
    %cst_52 = arith.constant 1.280000e+02 : f32
    %125 = vector.broadcast %cst_52 : f32 to vector<16x1xf32>
    %126 = arith.divf %124, %125 : vector<16x1xf32>
    %127 = vector.broadcast %126 : vector<16x1xf32> to vector<16x128xf32>
    %128 = arith.subf %118, %127 : vector<16x128xf32>
    %129 = arith.mulf %128, %128 : vector<16x128xf32>
    %cst_53 = arith.constant dense<0.000000e+00> : vector<16xf32>
    %130 = vector.multi_reduction <add>, %129, %cst_53 [1] : vector<16x128xf32> to vector<16xf32>
    %131 = vector.shape_cast %130 : vector<16xf32> to vector<16x1xf32>
    %cst_54 = arith.constant 1.280000e+02 : f32
    %132 = vector.broadcast %cst_54 : f32 to vector<16x1xf32>
    %133 = arith.divf %131, %132 : vector<16x1xf32>
    %cst_55 = arith.constant 9.99999974E-6 : f32
    %134 = vector.broadcast %cst_55 : f32 to vector<16x1xf32>
    %135 = arith.addf %133, %134 : vector<16x1xf32>
    %136 = math.rsqrt %135 : vector<16x1xf32>
    %137 = vector.broadcast %136 : vector<16x1xf32> to vector<16x128xf32>
    %138 = arith.mulf %128, %137 : vector<16x128xf32>
    %139 = vector.broadcast %120 : vector<1x128xf32> to vector<16x128xf32>
    %140 = arith.mulf %138, %139 : vector<16x128xf32>
    %141 = vector.broadcast %122 : vector<1x128xf32> to vector<16x128xf32>
    %142 = arith.addf %140, %141 : vector<16x128xf32>
    %c0_56 = arith.constant 0 : index
    %c0_57 = arith.constant 0 : index
    %143 = vector.load %arg15[%c0_56, %c0_57] : memref<16x128xf32, #tpu.memory_space<vmem>>, vector<16x128xf32>
    tpu.vector_store %arg15[%c0_56, %c0_57], %142 {strides = array<i32>} : memref<16x128xf32, #tpu.memory_space<vmem>>, vector<16x128xf32>,
    return
  }
  func.func @transform_0(%arg0: i32, %arg1: i32) -> (i32, i32) {
    %c0_i32 = arith.constant 0 : i32
    %c0_i32_0 = arith.constant 0 : i32
    return %arg0, %c0_i32 : i32, i32
  }
  func.func @transform_1(%arg0: i32, %arg1: i32) -> (i32, i32, i32) {
    %c0_i32 = arith.constant 0 : i32
    %c0_i32_0 = arith.constant 0 : i32
    %c0_i32_1 = arith.constant 0 : i32
    return %arg1, %c0_i32, %c0_i32_0 : i32, i32, i32
  }
  func.func @transform_2(%arg0: i32, %arg1: i32) -> (i32, i32, i32) {
    %c0_i32 = arith.constant 0 : i32
    %c0_i32_0 = arith.constant 0 : i32
    %c0_i32_1 = arith.constant 0 : i32
    return %arg1, %c0_i32, %c0_i32_0 : i32, i32, i32
  }
  func.func @transform_3(%arg0: i32, %arg1: i32) -> (i32, i32, i32) {
    %c0_i32 = arith.constant 0 : i32
    %c0_i32_0 = arith.constant 0 : i32
    %c0_i32_1 = arith.constant 0 : i32
    return %arg1, %c0_i32, %c0_i32_0 : i32, i32, i32
  }
  func.func @transform_4(%arg0: i32, %arg1: i32) -> (i32, i32, i32) {
    %c0_i32 = arith.constant 0 : i32
    %c0_i32_0 = arith.constant 0 : i32
    %c0_i32_1 = arith.constant 0 : i32
    return %arg1, %c0_i32, %c0_i32_0 : i32, i32, i32
  }
  func.func @transform_5(%arg0: i32, %arg1: i32) -> (i32, i32, i32) {
    %c0_i32 = arith.constant 0 : i32
    %c0_i32_0 = arith.constant 0 : i32
    %c0_i32_1 = arith.constant 0 : i32
    return %arg1, %c0_i32, %c0_i32_0 : i32, i32, i32
  }
  func.func @transform_6(%arg0: i32, %arg1: i32) -> (i32, i32, i32) {
    %c0_i32 = arith.constant 0 : i32
    %c0_i32_0 = arith.constant 0 : i32
    %c0_i32_1 = arith.constant 0 : i32
    return %arg1, %c0_i32, %c0_i32_0 : i32, i32, i32
  }
  func.func @transform_7(%arg0: i32, %arg1: i32) -> (i32, i32, i32) {
    %c0_i32 = arith.constant 0 : i32
    %c0_i32_0 = arith.constant 0 : i32
    %c0_i32_1 = arith.constant 0 : i32
    return %arg1, %c0_i32, %c0_i32_0 : i32, i32, i32
  }
  func.func @transform_8(%arg0: i32, %arg1: i32) -> (i32, i32, i32) {
    %c0_i32 = arith.constant 0 : i32
    %c0_i32_0 = arith.constant 0 : i32
    %c0_i32_1 = arith.constant 0 : i32
    return %arg1, %c0_i32, %c0_i32_0 : i32, i32, i32
  }
  func.func @transform_9(%arg0: i32, %arg1: i32) -> (i32, i32, i32) {
    %c0_i32 = arith.constant 0 : i32
    %c0_i32_0 = arith.constant 0 : i32
    %c0_i32_1 = arith.constant 0 : i32
    return %arg1, %c0_i32, %c0_i32_0 : i32, i32, i32
  }
  func.func @transform_10(%arg0: i32, %arg1: i32) -> (i32, i32, i32) {
    %c0_i32 = arith.constant 0 : i32
    %c0_i32_0 = arith.constant 0 : i32
    %c0_i32_1 = arith.constant 0 : i32
    return %arg1, %c0_i32, %c0_i32_0 : i32, i32, i32
  }
  func.func @transform_11(%arg0: i32, %arg1: i32) -> (i32, i32, i32) {
    %c0_i32 = arith.constant 0 : i32
    %c0_i32_0 = arith.constant 0 : i32
    %c0_i32_1 = arith.constant 0 : i32
    return %arg1, %c0_i32, %c0_i32_0 : i32, i32, i32
  }
  func.func @transform_12(%arg0: i32, %arg1: i32) -> (i32, i32, i32) {
    %c0_i32 = arith.constant 0 : i32
    %c0_i32_0 = arith.constant 0 : i32
    %c0_i32_1 = arith.constant 0 : i32
    return %arg1, %c0_i32, %c0_i32_0 : i32, i32, i32
  }
  func.func @transform_13(%arg0: i32, %arg1: i32) -> (i32, i32) {
    %c0_i32 = arith.constant 0 : i32
    %c0_i32_0 = arith.constant 0 : i32
    return %arg0, %c0_i32 : i32, i32
  }
}

</mosaic_0001>

<llo_original>
// kernel: transformer_forward.3
$region0: #{transformer_forward.3}
  #allocation0 [shape = 'u32[]', space=smem, size = 0x4, offset = 0x4, fixed_abs, tag = 'smem constant byte address 0x4 - core index']
  #allocation1 [shape = 'u32[144,128]{1,0:T(1,128)}', space=vmem, size = 0x12000, scoped, tag = 'internal scratch']
  %s0 = inlined_call_operand.hbm [shape: f32[16,128], index: 0, kind: input, shape index: {}]
  %s1 = inlined_call_operand.hbm [shape: bf16[128,256], index: 1, kind: input, shape index: {}]
  %s2 = inlined_call_operand.hbm [shape: f32[1,256], index: 2, kind: input, shape index: {}]
  %s3 = inlined_call_operand.hbm [shape: f32[16,256], index: 3, kind: output, shape index: {}]
  %s4 = sld [smem:[#allocation0]]
  $region57: #{transformer_forward.3} parent=0
    _
  %s6 = ssub.s32 1, %s4
  %s7 = scalar_select 0, %s6, %s4
  $region1: #{transformer_forward.3} parent=0
    #allocation2 [shape = 'u8[8192]{0}', space=vmem, size = 0x2000, scoped, tag = 'input window, operand 0, single buffered']
    #allocation3 [shape = 's32[2]{0}', space=sflag, size = 0x8, scoped, tag = 'scoped memory for transformer_forward.3']
    #allocation4 [shape = 's32[2]{0}', space=sflag, size = 0x8, scoped, tag = 'scoped memory for transformer_forward.3']
    #allocation5 [shape = 'u8[65536]{0}', space=vmem, size = 0x10000, scoped, tag = 'input window, operand 1']
    #allocation6 [shape = 's32[2]{0}', space=sflag, size = 0x8, scoped, tag = 'scoped memory for transformer_forward.3']
    #allocation7 [shape = 'u8[1024]{0}', space=vmem, size = 0x400, scoped, tag = 'input window, operand 2']
    #allocation8 [shape = 'u8[16384]{0}', space=vmem, size = 0x4000, scoped, tag = 'output window, operand 0']
    %8 = vsyncpa [#allocation3], 0
    %9 = vsyncpa [#allocation6], 0
    %s10 = scalar_lea.sflag [#allocation6], 1
    %11 = vsyncpa %s10, 0
    %12 = vsyncpa [#allocation4], 0
    %s13 = scalar_lea.sflag [#allocation4], 1
    %14 = vsyncpa %s13, 0
    loop: start=0, step=1, limit=4
    $region2: #{transformer_forward.3} parent=1 // loop_pre_header
      _
    $region3: #{transformer_forward.3} parent=1 // loop_header
      %s16 = sphi 0, %s20
      %p17 = scmp.ge.s32.totalorder %s16, 4
      %s24 = sphi 0, %s24
      %s26 = sphi 0, %s24
      %s27 = sphi 0, %s26
      %s41 = sphi 0, %s27
      %s47 = sphi 0, %s49
      %s50 = sphi 0, %s47
      %s51 = sphi 0, %s50
      %s67 = sphi 0, %s51
      %s73 = sphi 0, %s75
      %s76 = sphi 0, %s73
      %s77 = sphi 0, %s76
      %s93 = sphi 0, %s77
      %s99 = sphi 0, %s101
      %s102 = sphi 0, %s99
      %s103 = sphi 0, %s102
      %s119 = sphi 0, %s103
    $region4: #{transformer_forward.3} parent=1 // loop_header_branch
      %19 = sbr.rel (%p17) target = $region8
    $region5: #{transformer_forward.3} parent=1 // loop_body
      %s21 = ssub.s32 %s16, 1
      %s22 = ssub.s32 %s16, 2
      %s23 = sadd.s32 %s16, 1
      %s25 = sadd.s32 %s24, 1
      %p28 = scmp.eq.s32.totalorder %s16, 1
      %p29 = scmp.ne.s32.totalorder %s24, %s26
      %p30 = scmp.eq.s32.totalorder %s16, 0
      %p31 = por %p29, %p30
      %p32 = scmp.ne.s32.totalorder %s24, %s26
      %p33 = scmp.eq.s32.totalorder %s21, 1
      %p34 = por %p32, %p33
      %p35 = scmp.ne.s32.totalorder %s26, %s27
      %p36 = scmp.eq.s32.totalorder %s21, 0
      %p37 = por %p35, %p36
      %p38 = scmp.ne.s32.totalorder %s26, %s27
      %p39 = scmp.eq.s32.totalorder %s22, 1
      %p40 = por %p38, %p39
      %p42 = scmp.ne.s32.totalorder %s27, %s41
      %p43 = scmp.eq.s32.totalorder %s22, 0
      %p44 = por %p42, %p43
      %s45 = ssub.s32 %s16, %s23
      %p46 = scmp.eq.s32.totalorder %s45, 0
      %s48 = sadd.s32 %s47, 1
      %s49 = scalar_select %p46, %s47, %s48
      %p52 = pneg %p46
      %p53 = scmp.eq.s32.totalorder %s16, 1
      %p54 = por %p52, %p53
      %p55 = scmp.ne.s32.totalorder %s47, %s50
      %p56 = scmp.eq.s32.totalorder %s16, 0
      %p57 = por %p55, %p56
      %p58 = scmp.ne.s32.totalorder %s47, %s50
      %p59 = scmp.eq.s32.totalorder %s21, 1
      %p60 = por %p58, %p59
      %p61 = scmp.ne.s32.totalorder %s50, %s51
      %p62 = scmp.eq.s32.totalorder %s21, 0
      %p63 = por %p61, %p62
      %p64 = scmp.ne.s32.totalorder %s50, %s51
      %p65 = scmp.eq.s32.totalorder %s22, 1
      %p66 = por %p64, %p65
      %p68 = scmp.ne.s32.totalorder %s51, %s67
      %p69 = scmp.eq.s32.totalorder %s22, 0
      %p70 = por %p68, %p69
      %s71 = ssub.s32 %s16, %s23
      %p72 = scmp.eq.s32.totalorder %s71, 0
      %s74 = sadd.s32 %s73, 1
      %s75 = scalar_select %p72, %s73, %s74
      %p78 = pneg %p72
      %p79 = scmp.eq.s32.totalorder %s16, 1
      %p80 = por %p78, %p79
      %p81 = scmp.ne.s32.totalorder %s73, %s76
      %p82 = scmp.eq.s32.totalorder %s16, 0
      %p83 = por %p81, %p82
      %p84 = scmp.ne.s32.totalorder %s73, %s76
      %p85 = scmp.eq.s32.totalorder %s21, 1
      %p86 = por %p84, %p85
      %p87 = scmp.ne.s32.totalorder %s76, %s77
      %p88 = scmp.eq.s32.totalorder %s21, 0
      %p89 = por %p87, %p88
      %p90 = scmp.ne.s32.totalorder %s76, %s77
      %p91 = scmp.eq.s32.totalorder %s22, 1
      %p92 = por %p90, %p91
      %p94 = scmp.ne.s32.totalorder %s77, %s93
      %p95 = scmp.eq.s32.totalorder %s22, 0
      %p96 = por %p94, %p95
      %s97 = ssub.s32 %s16, %s23
      %p98 = scmp.eq.s32.totalorder %s97, 0
      %s100 = sadd.s32 %s99, 1
      %s101 = scalar_select %p98, %s99, %s100
      %p104 = pneg %p98
      %p105 = scmp.eq.s32.totalorder %s16, 1
      %p106 = por %p104, %p105
      %p107 = scmp.ne.s32.totalorder %s99, %s102
      %p108 = scmp.eq.s32.totalorder %s16, 0
      %p109 = por %p107, %p108
      %p110 = scmp.ne.s32.totalorder %s99, %s102
      %p111 = scmp.eq.s32.totalorder %s21, 1
      %p112 = por %p110, %p111
      %p113 = scmp.ne.s32.totalorder %s102, %s103
      %p114 = scmp.eq.s32.totalorder %s21, 0
      %p115 = por %p113, %p114
      %p116 = scmp.ne.s32.totalorder %s102, %s103
      %p117 = scmp.eq.s32.totalorder %s22, 1
      %p118 = por %p116, %p117
      %p120 = scmp.ne.s32.totalorder %s103, %s119
      %p121 = scmp.eq.s32.totalorder %s22, 0
      %p122 = por %p120, %p121
      %p123 = scmp.le.s32.totalorder 1, %s16
      %p124 = scmp.lt.s32.totalorder %s16, 3
      %p125 = pnand %p123, %p124
      %p126 = pneg %p125
      // Predicated region
      $region9: #{transformer_forward.3} parent=5 // pred_check
        _
      $region10: #{transformer_forward.3} parent=5 // pred_check_branch
        %128 = sbr.rel (%p125) target = $region12
      $region11: #{transformer_forward.3} parent=5 // pred_region
        %s129 = ssub.s32 %s16, 1
        // Predicated region
        $region13: #{transformer_forward.3} parent=11 // pred_check
          %p130 = pneg %p37
        $region14: #{transformer_forward.3} parent=11 // pred_check_branch
          %132 = sbr.rel (%p130) target = $region16
        $region15: #{transformer_forward.3} parent=11 // pred_region
          %s134 = ssub.s32 256, 256
          %135 = vsyncadd [#allocation3], %s134
          %s136 = sshll.u32 [#allocation2], 4
          %s137 = int_to_ptr.vmem [resolvable:$true] %s136
          %142 = dma.hbm_to_vmem [thread:$0]  %s0, 256, %s137, [#allocation3], 128, 128, 8
        $region16: #{transformer_forward.3} parent=11 // pred_fallthru
          _
      $region12: #{transformer_forward.3} parent=5 // pred_fallthru
        _
      %p143 = scmp.lt.s32.totalorder %s16, 2
      // Predicated region
      $region17: #{transformer_forward.3} parent=5 // pred_check
        %p144 = pneg %p143
      $region18: #{transformer_forward.3} parent=5 // pred_check_branch
        %146 = sbr.rel (%p144) target = $region20
      $region19: #{transformer_forward.3} parent=5 // pred_region
        // Predicated region
        $region21: #{transformer_forward.3} parent=19 // pred_check
          %p147 = pneg %p57
        $region22: #{transformer_forward.3} parent=19 // pred_check_branch
          %149 = sbr.rel (%p147) target = $region24
        $region23: #{transformer_forward.3} parent=19 // pred_region
          %s150 = sand.u32 %s16, 1
          %s151 = scalar_lea.sflag [#allocation6], %s150
          %s152 = sand.u32 %s47, 1
          %s153 = smul.addr %s152, 64
          %s154 = scalar_lea.vmem [#allocation5], %s153
          %s156 = ssub.s32 1024, 1024
          %157 = vsyncadd %s151, %s156
          %s158 = smul.addr %s16, 64
          %s159 = scalar_lea.hbm %s1, %s158
          %s160 = sshll.u32 %s154, 4
          %s161 = int_to_ptr.vmem [resolvable:$true] %s160
          %166 = dma.hbm_to_vmem [thread:$0]  %s159, 1024, %s161, %s151, 128, 64, 4
        $region24: #{transformer_forward.3} parent=19 // pred_fallthru
          _
        // Predicated region
        $region25: #{transformer_forward.3} parent=19 // pred_check
          %p167 = pneg %p83
        $region26: #{transformer_forward.3} parent=19 // pred_check_branch
          %169 = sbr.rel (%p167) target = $region28
        $region27: #{transformer_forward.3} parent=19 // pred_region
          %s170 = sand.u32 %s16, 1
          %s171 = scalar_lea.sflag [#allocation6], %s170
          %s172 = sand.u32 %s73, 1
          %s173 = scalar_lea.vmem [#allocation7], %s172
          %s175 = ssub.s32 16, 16
          %176 = vsyncadd %s171, %s175
          %s177 = smul.addr %s16, 16
          %s178 = scalar_lea.hbm %s2, %s177
          %s180 = sshll.u32 %s173, 4
          %s181 = int_to_ptr.vmem [resolvable:$true] %s180
          %183 = dma.hbm_to_vmem [thread:$0]  %s178, 16, %s181, %s171
        $region28: #{transformer_forward.3} parent=19 // pred_fallthru
          _
      $region20: #{transformer_forward.3} parent=5 // pred_fallthru
        _
      %p184 = scmp.le.s32.totalorder 1, %s16
      %p185 = scmp.lt.s32.totalorder %s16, 3
      %p186 = pnand %p184, %p185
      %p187 = pneg %p186
      // Predicated region
      $region29: #{transformer_forward.3} parent=5 // pred_check
        _
      $region30: #{transformer_forward.3} parent=5 // pred_check_branch
        %189 = sbr.rel (%p186) target = $region32
      $region31: #{transformer_forward.3} parent=5 // pred_region
        %s190 = ssub.s32 %s16, 1
        // Predicated region
        $region33: #{transformer_forward.3} parent=31 // pred_check
          %p191 = pneg %p37
        $region34: #{transformer_forward.3} parent=31 // pred_check_branch
          %193 = sbr.rel (%p191) target = $region36
        $region35: #{transformer_forward.3} parent=31 // pred_region
          %194 = dma.done [#allocation3], 256
        $region36: #{transformer_forward.3} parent=31 // pred_fallthru
          _
        %s195 = sand.u32 %s21, 1
        %s196 = scalar_lea.sflag [#allocation6], %s195
        %s197 = sand.u32 %s50, 1
        %s198 = smul.addr %s197, 64
        %s199 = scalar_lea.vmem [#allocation5], %s198
        // Predicated region
        $region37: #{transformer_forward.3} parent=31 // pred_check
          %p200 = pneg %p63
        $region38: #{transformer_forward.3} parent=31 // pred_check_branch
          %202 = sbr.rel (%p200) target = $region40
        $region39: #{transformer_forward.3} parent=31 // pred_region
          %203 = dma.done %s196, 1024
        $region40: #{transformer_forward.3} parent=31 // pred_fallthru
          _
        %s204 = sand.u32 %s21, 1
        %s205 = scalar_lea.sflag [#allocation6], %s204
        %s206 = sand.u32 %s76, 1
        %s207 = scalar_lea.vmem [#allocation7], %s206
        // Predicated region
        $region41: #{transformer_forward.3} parent=31 // pred_check
          %p208 = pneg %p89
        $region42: #{transformer_forward.3} parent=31 // pred_check_branch
          %210 = sbr.rel (%p208) target = $region44
        $region43: #{transformer_forward.3} parent=31 // pred_region
          %211 = dma.done %s205, 16
        $region44: #{transformer_forward.3} parent=31 // pred_fallthru
          _
        %p212 = pneg %p37
        %p213 = pneg %p34
        %s214 = sand.u32 %s21, 1
        %s215 = scalar_lea.sflag [#allocation6], %s214
        %s216 = sand.u32 %s50, 1
        %s217 = smul.addr %s216, 64
        %s218 = scalar_lea.vmem [#allocation5], %s217
        %p219 = pneg %p63
        %p220 = pneg %p60
        %s221 = sand.u32 %s21, 1
        %s222 = scalar_lea.sflag [#allocation6], %s221
        %s223 = sand.u32 %s76, 1
        %s224 = scalar_lea.vmem [#allocation7], %s223
        %p225 = pneg %p89
        %p226 = pneg %p86
        %p227 = pneg %p115
        %p228 = pneg %p112
        %s229 = sand.u32 %s102, 1
        %s230 = scalar_lea.sflag [#allocation4], %s229
        %s231 = sand.u32 %s102, 1
        %s232 = smul.addr %s231, 16
        %s233 = scalar_lea.vmem [#allocation8], %s232
        %v235 = vld [vmem:[#allocation2] sm:$0xff]
        %v236 = vld [vmem:[#allocation2 + $0x8] sm:$0xff]
        %v237 = vpack.c.bf16 %v236, %v235
        %v238 = vld [vmem:[%s199] sm:$0xf]
        %v239 = vld [vmem:[%s199 + $0x4] sm:$0xf]
        %v240 = vld [vmem:[%s199 + $0x8] sm:$0xf]
        %v241 = vld [vmem:[%s199 + $0xc] sm:$0xf]
        %v242 = vld [vmem:[%s199 + $0x10] sm:$0xf]
        %v243 = vld [vmem:[%s199 + $0x14] sm:$0xf]
        %v244 = vld [vmem:[%s199 + $0x18] sm:$0xf]
        %v245 = vld [vmem:[%s199 + $0x1c] sm:$0xf]
        %v246 = vld [vmem:[%s199 + $0x20] sm:$0xf]
        %v247 = vld [vmem:[%s199 + $0x24] sm:$0xf]
        %v248 = vld [vmem:[%s199 + $0x28] sm:$0xf]
        %v249 = vld [vmem:[%s199 + $0x2c] sm:$0xf]
        %v250 = vld [vmem:[%s199 + $0x30] sm:$0xf]
        %v251 = vld [vmem:[%s199 + $0x34] sm:$0xf]
        %v252 = vld [vmem:[%s199 + $0x38] sm:$0xf]
        %v253 = vld [vmem:[%s199 + $0x3c] sm:$0xf]
        %v254 = vld [vmem:[%s207] sm:$0x1]
        %v256 = vlaneseq
        %v257 = vshrl.u32 %v256, 7
        %v258 = vsub.s32 0, %v257
        %v259 = vrot.slane %v254, %v258
        %v277 = vunpack.c.l.b16 %v238
        %v278 = vunpack.c.l.b16 %v239
        %v279 = vunpack.c.l.b16 %v240
        %v280 = vunpack.c.l.b16 %v241
        %v281 = vunpack.c.l.b16 %v242
        %v282 = vunpack.c.l.b16 %v243
        %v283 = vunpack.c.l.b16 %v244
        %v284 = vunpack.c.l.b16 %v245
        %v285 = vunpack.c.l.b16 %v246
        %v286 = vunpack.c.l.b16 %v247
        %v287 = vunpack.c.l.b16 %v248
        %v288 = vunpack.c.l.b16 %v249
        %v289 = vunpack.c.l.b16 %v250
        %v290 = vunpack.c.l.b16 %v251
        %v291 = vunpack.c.l.b16 %v252
        %v292 = vunpack.c.l.b16 %v253
        %v293 = vpack.c.b16 %v278, %v277
        %v294 = vpack.c.b16 %v280, %v279
        %v295 = vpack.c.b16 %v282, %v281
        %v296 = vpack.c.b16 %v284, %v283
        %v297 = vpack.c.b16 %v286, %v285
        %v298 = vpack.c.b16 %v288, %v287
        %v299 = vpack.c.b16 %v290, %v289
        %v300 = vpack.c.b16 %v292, %v291
        %309 = vmatprep.subr.bf16.mxu0 0
        %310 = vmatpush1.bf16.msra.mxu0 %v293
        %311 = vmatprep.subr.bf16.mxu0 0
        %312 = vmatpush1.bf16.msra.mxu0 %v294
        %313 = vmatprep.subr.bf16.mxu0 0
        %314 = vmatpush1.bf16.msra.mxu0 %v295
        %315 = vmatprep.subr.bf16.mxu0 0
        %316 = vmatpush1.bf16.msra.mxu0 %v296
        %317 = vmatprep.subr.bf16.mxu0 0
        %318 = vmatpush1.bf16.msra.mxu0 %v297
        %319 = vmatprep.subr.bf16.mxu0 0
        %320 = vmatpush1.bf16.msra.mxu0 %v298
        %321 = vmatprep.subr.bf16.mxu0 0
        %322 = vmatpush1.bf16.msra.mxu0 %v299
        %323 = vmatprep.subr.bf16.mxu0 0
        %324 = vmatpush1.bf16.msra.mxu0 %v300
        %325 = vmatprep.subr.bf16.mxu0 0
        %326 = vmatpush1.bf16.msra.mxu0 0
        %327 = vmatprep.subr.bf16.mxu0 0
        %328 = vmatpush1.bf16.msra.mxu0 0
        %329 = vmatprep.subr.bf16.mxu0 0
        %330 = vmatpush1.bf16.msra.mxu0 0
        %331 = vmatprep.subr.bf16.mxu0 0
        %332 = vmatpush1.bf16.msra.mxu0 0
        %333 = vmatprep.subr.bf16.mxu0 0
        %334 = vmatpush1.bf16.msra.mxu0 0
        %335 = vmatprep.subr.bf16.mxu0 0
        %336 = vmatpush1.bf16.msra.mxu0 0
        %337 = vmatprep.subr.bf16.mxu0 0
        %338 = vmatpush1.bf16.msra.mxu0 0
        %339 = vmatprep.subr.bf16.mxu0 0
        %340 = vmatpush1.bf16.msra.mxu0 0
        %341 = vmatprep.mubr.bf16.mxu0 0
        %342 = vmatmul.mubr.bf16.gmra.mrb[0].mxu0 %v237
        %v343 = vpop.f32.mrb[0].mxu0
        %v344 = vadd.f32 %v259, %v343
        %v345 = vpop.f32.mrb[0].mxu0
        %v346 = vpop.f32.mrb[0].mxu0
        %v347 = vadd.f32 %v259, %v346
        %v348 = vpop.f32.mrb[0].mxu0
        %349 = vdwg.mxu0
        %350 = vst [vmem:[%s233] sm:$0xff] %v344
        %351 = vst [vmem:[%s233 + $0x8] sm:$0xff] %v347
        %s352 = sand.u32 %s102, 1
        %s353 = scalar_lea.sflag [#allocation4], %s352
        %s354 = sand.u32 %s102, 1
        %s355 = smul.addr %s354, 16
        %s356 = scalar_lea.vmem [#allocation8], %s355
        // Predicated region
        $region45: #{transformer_forward.3} parent=31 // pred_check
          %p357 = pneg %p112
        $region46: #{transformer_forward.3} parent=31 // pred_check_branch
          %359 = sbr.rel (%p357) target = $region48
        $region47: #{transformer_forward.3} parent=31 // pred_region
          %s361 = ssub.s32 256, 256
          %362 = vsyncadd %s353, %s361
          %s363 = smul.addr %s21, 128
          %s364 = scalar_lea.hbm %s3, %s363
          %s365 = sshll.u32 %s356, 4
          %s366 = int_to_ptr.vmem [resolvable:$true] %s365
          %371 = dma.vmem_to_hbm [thread:$0]  %s366, 256, %s364, %s353, 128, 256, 8
        $region48: #{transformer_forward.3} parent=31 // pred_fallthru
          _
      $region32: #{transformer_forward.3} parent=5 // pred_fallthru
        _
      %p372 = scmp.le.s32.totalorder 2, %s16
      // Predicated region
      $region49: #{transformer_forward.3} parent=5 // pred_check
        %p373 = pneg %p372
      $region50: #{transformer_forward.3} parent=5 // pred_check_branch
        %375 = sbr.rel (%p373) target = $region52
      $region51: #{transformer_forward.3} parent=5 // pred_region
        %s376 = ssub.s32 %s16, 2
        // Predicated region
        $region53: #{transformer_forward.3} parent=51 // pred_check
          %p377 = pneg %p118
        $region54: #{transformer_forward.3} parent=51 // pred_check_branch
          %379 = sbr.rel (%p377) target = $region56
        $region55: #{transformer_forward.3} parent=51 // pred_region
          %s380 = sand.u32 %s103, 1
          %s381 = scalar_lea.sflag [#allocation4], %s380
          %s382 = sand.u32 %s103, 1
          %s383 = smul.addr %s382, 16
          %s384 = scalar_lea.vmem [#allocation8], %s383
          %385 = dma.done %s381, 256
        $region56: #{transformer_forward.3} parent=51 // pred_fallthru
          _
      $region52: #{transformer_forward.3} parent=5 // pred_fallthru
        _
    $region6: #{transformer_forward.3} parent=1 // loop_footer
      %s20 = sadd.s32 1, %s16
    $region7: #{transformer_forward.3} parent=1 // loop_footer_branch
      %15 = sbr.rel target = $region3
    $region8: #{transformer_forward.3} parent=1 // loop_exit
      _
    %386 = vsyncpa [#allocation3], 1
    %s387 = scalar_lea.sflag [#allocation3], 1
    %388 = vsyncpa %s387, 1
    %389 = vsyncpa [#allocation6], 1
    %s390 = scalar_lea.sflag [#allocation6], 1
    %391 = vsyncpa %s390, 1
    %392 = vsyncpa [#allocation4], 1
    %s393 = scalar_lea.sflag [#allocation4], 1
    %394 = vsyncpa %s393, 1

// kernel: transformer_forward.2
$region0: #{transformer_forward.2}
  #allocation0 [shape = 'u32[]', space=smem, size = 0x4, offset = 0x4, fixed_abs, tag = 'smem constant byte address 0x4 - core index']
  #allocation1 [shape = 'u32[144,128]{1,0:T(1,128)}', space=vmem, size = 0x12000, scoped, tag = 'internal scratch']
  %s0 = inlined_call_operand.hbm [shape: f32[16,128], index: 0, kind: input, shape index: {}]
  %s1 = inlined_call_operand.hbm [shape: bf16[2,128,384], index: 1, kind: input, shape index: {}]
  %s2 = inlined_call_operand.hbm [shape: f32[2,1,384], index: 2, kind: input, shape index: {}]
  %s3 = inlined_call_operand.hbm [shape: bf16[2,128,128], index: 3, kind: input, shape index: {}]
  %s4 = inlined_call_operand.hbm [shape: f32[2,1,128], index: 4, kind: input, shape index: {}]
  %s5 = inlined_call_operand.hbm [shape: bf16[2,128,256], index: 5, kind: input, shape index: {}]
  %s6 = inlined_call_operand.hbm [shape: f32[2,1,256], index: 6, kind: input, shape index: {}]
  %s7 = inlined_call_operand.hbm [shape: bf16[2,256,128], index: 7, kind: input, shape index: {}]
  %s8 = inlined_call_operand.hbm [shape: f32[2,1,128], index: 8, kind: input, shape index: {}]
  %s9 = inlined_call_operand.hbm [shape: f32[2,1,128], index: 9, kind: input, shape index: {}]
  %s10 = inlined_call_operand.hbm [shape: f32[2,1,128], index: 10, kind: input, shape index: {}]
  %s11 = inlined_call_operand.hbm [shape: f32[2,1,128], index: 11, kind: input, shape index: {}]
  %s12 = inlined_call_operand.hbm [shape: f32[2,1,128], index: 12, kind: input, shape index: {}]
  %s13 = inlined_call_operand.hbm [shape: f32[16,128], index: 13, kind: output, shape index: {}]
  %s14 = sld [smem:[#allocation0]]
  $region141: #{transformer_forward.2} parent=0
    _
  %s16 = ssub.s32 1, %s14
  %s17 = scalar_select 0, %s16, %s14
  $region1: #{transformer_forward.2} parent=0
    #allocation2 [shape = 'u8[8192]{0}', space=vmem, size = 0x2000, scoped, tag = 'input window, operand 0, single buffered']
    #allocation3 [shape = 's32[2]{0}', space=sflag, size = 0x8, scoped, tag = 'scoped memory for transformer_forward.2']
    #allocation4 [shape = 's32[2]{0}', space=sflag, size = 0x8, scoped, tag = 'scoped memory for transformer_forward.2']
    #allocation5 [shape = 'u8[196608]{0}', space=vmem, size = 0x30000, scoped, tag = 'input window, operand 1']
    #allocation6 [shape = 's32[2]{0}', space=sflag, size = 0x8, scoped, tag = 'scoped memory for transformer_forward.2']
    #allocation7 [shape = 'u8[3072]{0}', space=vmem, size = 0xc00, scoped, tag = 'input window, operand 2']
    #allocation8 [shape = 'u8[65536]{0}', space=vmem, size = 0x10000, scoped, tag = 'input window, operand 3']
    #allocation9 [shape = 's32[2]{0}', space=sflag, size = 0x8, scoped, tag = 'scoped memory for transformer_forward.2']
    #allocation10 [shape = 'u8[1024]{0}', space=vmem, size = 0x400, scoped, tag = 'input window, operand 4']
    #allocation11 [shape = 'u8[131072]{0}', space=vmem, size = 0x20000, scoped, tag = 'input window, operand 5']
    #allocation12 [shape = 's32[2]{0}', space=sflag, size = 0x8, scoped, tag = 'scoped memory for transformer_forward.2']
    #allocation13 [shape = 'u8[2048]{0}', space=vmem, size = 0x800, scoped, tag = 'input window, operand 6']
    #allocation14 [shape = 'u8[131072]{0}', space=vmem, size = 0x20000, scoped, tag = 'input window, operand 7']
    #allocation15 [shape = 's32[2]{0}', space=sflag, size = 0x8, scoped, tag = 'scoped memory for transformer_forward.2']
    #allocation16 [shape = 'u8[1024]{0}', space=vmem, size = 0x400, scoped, tag = 'input window, operand 8']
    #allocation17 [shape = 'u8[1024]{0}', space=vmem, size = 0x400, scoped, tag = 'input window, operand 9']
    #allocation18 [shape = 's32[2]{0}', space=sflag, size = 0x8, scoped, tag = 'scoped memory for transformer_forward.2']
    #allocation19 [shape = 'u8[1024]{0}', space=vmem, size = 0x400, scoped, tag = 'input window, operand 10']
    #allocation20 [shape = 'u8[1024]{0}', space=vmem, size = 0x400, scoped, tag = 'input window, operand 11']
    #allocation21 [shape = 's32[2]{0}', space=sflag, size = 0x8, scoped, tag = 'scoped memory for transformer_forward.2']
    #allocation22 [shape = 'u8[1024]{0}', space=vmem, size = 0x400, scoped, tag = 'input window, operand 12']
    #allocation23 [shape = 'u8[8192]{0}', space=vmem, size = 0x2000, scoped, tag = 'output window, operand 0, single buffered']
    %18 = vsyncpa [#allocation3], 0
    %19 = vsyncpa [#allocation6], 0
    %s20 = scalar_lea.sflag [#allocation6], 1
    %21 = vsyncpa %s20, 0
    %22 = vsyncpa [#allocation9], 0
    %s23 = scalar_lea.sflag [#allocation9], 1
    %24 = vsyncpa %s23, 0
    %25 = vsyncpa [#allocation12], 0
    %s26 = scalar_lea.sflag [#allocation12], 1
    %27 = vsyncpa %s26, 0
    %28 = vsyncpa [#allocation15], 0
    %s29 = scalar_lea.sflag [#allocation15], 1
    %30 = vsyncpa %s29, 0
    %31 = vsyncpa [#allocation18], 0
    %s32 = scalar_lea.sflag [#allocation18], 1
    %33 = vsyncpa %s32, 0
    %34 = vsyncpa [#allocation21], 0
    %s35 = scalar_lea.sflag [#allocation21], 1
    %36 = vsyncpa %s35, 0
    %37 = vsyncpa [#allocation4], 0
    loop: start=0, step=1, limit=4
    $region2: #{transformer_forward.2} parent=1 // loop_pre_header
      _
    $region3: #{transformer_forward.2} parent=1 // loop_header
      %s39 = sphi 0, %s43
      %p40 = scmp.ge.s32.totalorder %s39, 4
      %s46 = sphi 0, %s58
      %s47 = sphi 0, %s54
      %s48 = sphi 0, %s46
      %s49 = sphi 0, %s47
      %s50 = sphi 0, %s48
      %s51 = sphi 0, %s49
      %s61 = sphi 0, %s63
      %s64 = sphi 0, %s61
      %s65 = sphi 0, %s64
      %s81 = sphi 0, %s65
      %s87 = sphi 0, %s89
      %s90 = sphi 0, %s87
      %s91 = sphi 0, %s90
      %s107 = sphi 0, %s91
      %s113 = sphi 0, %s115
      %s116 = sphi 0, %s113
      %s117 = sphi 0, %s116
      %s133 = sphi 0, %s117
      %s139 = sphi 0, %s141
      %s142 = sphi 0, %s139
      %s143 = sphi 0, %s142
      %s159 = sphi 0, %s143
      %s165 = sphi 0, %s167
      %s168 = sphi 0, %s165
      %s169 = sphi 0, %s168
      %s185 = sphi 0, %s169
      %s191 = sphi 0, %s193
      %s194 = sphi 0, %s191
      %s195 = sphi 0, %s194
      %s211 = sphi 0, %s195
      %s217 = sphi 0, %s219
      %s220 = sphi 0, %s217
      %s221 = sphi 0, %s220
      %s237 = sphi 0, %s221
      %s243 = sphi 0, %s245
      %s246 = sphi 0, %s243
      %s247 = sphi 0, %s246
      %s263 = sphi 0, %s247
      %s269 = sphi 0, %s271
      %s272 = sphi 0, %s269
      %s273 = sphi 0, %s272
      %s289 = sphi 0, %s273
      %s295 = sphi 0, %s297
      %s298 = sphi 0, %s295
      %s299 = sphi 0, %s298
      %s315 = sphi 0, %s299
      %s321 = sphi 0, %s323
      %s324 = sphi 0, %s321
      %s325 = sphi 0, %s324
      %s341 = sphi 0, %s325
      %s347 = sphi 0, %s349
      %s350 = sphi 0, %s347
      %s351 = sphi 0, %s350
      %s367 = sphi 0, %s351
      %s373 = sphi 0, %s375
      %s376 = sphi 0, %s373
      %s377 = sphi 0, %s376
      %s393 = sphi 0, %s377
      %s399 = sphi 0, %s401
      %s402 = sphi 0, %s399
      %s403 = sphi 0, %s402
      %s419 = sphi 0, %s403
    $region4: #{transformer_forward.2} parent=1 // loop_header_branch
      %42 = sbr.rel (%p40) target = $region8
    $region5: #{transformer_forward.2} parent=1 // loop_body
      %s44 = ssub.s32 %s39, 1
      %s45 = ssub.s32 %s39, 2
      %s52 = sadd.s32 1, %s47
      %p53 = scmp.ge.s32.totalorder %s52, 2
      %s54 = scalar_select %p53, 0, %s52
      %s55 = sadd.s32 1, %s46
      %s56 = scalar_select %p53, %s55, %s46
      %p57 = scmp.ge.s32.totalorder %s56, 1
      %s58 = scalar_select %p57, 0, %s56
      %s59 = ssub.s32 %s46, %s58
      %p60 = scmp.eq.s32.totalorder %s59, 0
      %s62 = sadd.s32 %s61, 1
      %s63 = scalar_select %p60, %s61, %s62
      %p66 = pneg %p60
      %p67 = scmp.eq.s32.totalorder %s39, 1
      %p68 = por %p66, %p67
      %p69 = scmp.ne.s32.totalorder %s61, %s64
      %p70 = scmp.eq.s32.totalorder %s39, 0
      %p71 = por %p69, %p70
      %p72 = scmp.ne.s32.totalorder %s61, %s64
      %p73 = scmp.eq.s32.totalorder %s44, 1
      %p74 = por %p72, %p73
      %p75 = scmp.ne.s32.totalorder %s64, %s65
      %p76 = scmp.eq.s32.totalorder %s44, 0
      %p77 = por %p75, %p76
      %p78 = scmp.ne.s32.totalorder %s64, %s65
      %p79 = scmp.eq.s32.totalorder %s45, 1
      %p80 = por %p78, %p79
      %p82 = scmp.ne.s32.totalorder %s65, %s81
      %p83 = scmp.eq.s32.totalorder %s45, 0
      %p84 = por %p82, %p83
      %s85 = ssub.s32 %s47, %s54
      %p86 = scmp.eq.s32.totalorder %s85, 0
      %s88 = sadd.s32 %s87, 1
      %s89 = scalar_select %p86, %s87, %s88
      %p92 = pneg %p86
      %p93 = scmp.eq.s32.totalorder %s39, 1
      %p94 = por %p92, %p93
      %p95 = scmp.ne.s32.totalorder %s87, %s90
      %p96 = scmp.eq.s32.totalorder %s39, 0
      %p97 = por %p95, %p96
      %p98 = scmp.ne.s32.totalorder %s87, %s90
      %p99 = scmp.eq.s32.totalorder %s44, 1
      %p100 = por %p98, %p99
      %p101 = scmp.ne.s32.totalorder %s90, %s91
      %p102 = scmp.eq.s32.totalorder %s44, 0
      %p103 = por %p101, %p102
      %p104 = scmp.ne.s32.totalorder %s90, %s91
      %p105 = scmp.eq.s32.totalorder %s45, 1
      %p106 = por %p104, %p105
      %p108 = scmp.ne.s32.totalorder %s91, %s107
      %p109 = scmp.eq.s32.totalorder %s45, 0
      %p110 = por %p108, %p109
      %s111 = ssub.s32 %s47, %s54
      %p112 = scmp.eq.s32.totalorder %s111, 0
      %s114 = sadd.s32 %s113, 1
      %s115 = scalar_select %p112, %s113, %s114
      %p118 = pneg %p112
      %p119 = scmp.eq.s32.totalorder %s39, 1
      %p120 = por %p118, %p119
      %p121 = scmp.ne.s32.totalorder %s113, %s116
      %p122 = scmp.eq.s32.totalorder %s39, 0
      %p123 = por %p121, %p122
      %p124 = scmp.ne.s32.totalorder %s113, %s116
      %p125 = scmp.eq.s32.totalorder %s44, 1
      %p126 = por %p124, %p125
      %p127 = scmp.ne.s32.totalorder %s116, %s117
      %p128 = scmp.eq.s32.totalorder %s44, 0
      %p129 = por %p127, %p128
      %p130 = scmp.ne.s32.totalorder %s116, %s117
      %p131 = scmp.eq.s32.totalorder %s45, 1
      %p132 = por %p130, %p131
      %p134 = scmp.ne.s32.totalorder %s117, %s133
      %p135 = scmp.eq.s32.totalorder %s45, 0
      %p136 = por %p134, %p135
      %s137 = ssub.s32 %s47, %s54
      %p138 = scmp.eq.s32.totalorder %s137, 0
      %s140 = sadd.s32 %s139, 1
      %s141 = scalar_select %p138, %s139, %s140
      %p144 = pneg %p138
      %p145 = scmp.eq.s32.totalorder %s39, 1
      %p146 = por %p144, %p145
      %p147 = scmp.ne.s32.totalorder %s139, %s142
      %p148 = scmp.eq.s32.totalorder %s39, 0
      %p149 = por %p147, %p148
      %p150 = scmp.ne.s32.totalorder %s139, %s142
      %p151 = scmp.eq.s32.totalorder %s44, 1
      %p152 = por %p150, %p151
      %p153 = scmp.ne.s32.totalorder %s142, %s143
      %p154 = scmp.eq.s32.totalorder %s44, 0
      %p155 = por %p153, %p154
      %p156 = scmp.ne.s32.totalorder %s142, %s143
      %p157 = scmp.eq.s32.totalorder %s45, 1
      %p158 = por %p156, %p157
      %p160 = scmp.ne.s32.totalorder %s143, %s159
      %p161 = scmp.eq.s32.totalorder %s45, 0
      %p162 = por %p160, %p161
      %s163 = ssub.s32 %s47, %s54
      %p164 = scmp.eq.s32.totalorder %s163, 0
      %s166 = sadd.s32 %s165, 1
      %s167 = scalar_select %p164, %s165, %s166
      %p170 = pneg %p164
      %p171 = scmp.eq.s32.totalorder %s39, 1
      %p172 = por %p170, %p171
      %p173 = scmp.ne.s32.totalorder %s165, %s168
      %p174 = scmp.eq.s32.totalorder %s39, 0
      %p175 = por %p173, %p174
      %p176 = scmp.ne.s32.totalorder %s165, %s168
      %p177 = scmp.eq.s32.totalorder %s44, 1
      %p178 = por %p176, %p177
      %p179 = scmp.ne.s32.totalorder %s168, %s169
      %p180 = scmp.eq.s32.totalorder %s44, 0
      %p181 = por %p179, %p180
      %p182 = scmp.ne.s32.totalorder %s168, %s169
      %p183 = scmp.eq.s32.totalorder %s45, 1
      %p184 = por %p182, %p183
      %p186 = scmp.ne.s32.totalorder %s169, %s185
      %p187 = scmp.eq.s32.totalorder %s45, 0
      %p188 = por %p186, %p187
      %s189 = ssub.s32 %s47, %s54
      %p190 = scmp.eq.s32.totalorder %s189, 0
      %s192 = sadd.s32 %s191, 1
      %s193 = scalar_select %p190, %s191, %s192
      %p196 = pneg %p190
      %p197 = scmp.eq.s32.totalorder %s39, 1
      %p198 = por %p196, %p197
      %p199 = scmp.ne.s32.totalorder %s191, %s194
      %p200 = scmp.eq.s32.totalorder %s39, 0
      %p201 = por %p199, %p200
      %p202 = scmp.ne.s32.totalorder %s191, %s194
      %p203 = scmp.eq.s32.totalorder %s44, 1
      %p204 = por %p202, %p203
      %p205 = scmp.ne.s32.totalorder %s194, %s195
      %p206 = scmp.eq.s32.totalorder %s44, 0
      %p207 = por %p205, %p206
      %p208 = scmp.ne.s32.totalorder %s194, %s195
      %p209 = scmp.eq.s32.totalorder %s45, 1
      %p210 = por %p208, %p209
      %p212 = scmp.ne.s32.totalorder %s195, %s211
      %p213 = scmp.eq.s32.totalorder %s45, 0
      %p214 = por %p212, %p213
      %s215 = ssub.s32 %s47, %s54
      %p216 = scmp.eq.s32.totalorder %s215, 0
      %s218 = sadd.s32 %s217, 1
      %s219 = scalar_select %p216, %s217, %s218
      %p222 = pneg %p216
      %p223 = scmp.eq.s32.totalorder %s39, 1
      %p224 = por %p222, %p223
      %p225 = scmp.ne.s32.totalorder %s217, %s220
      %p226 = scmp.eq.s32.totalorder %s39, 0
      %p227 = por %p225, %p226
      %p228 = scmp.ne.s32.totalorder %s217, %s220
      %p229 = scmp.eq.s32.totalorder %s44, 1
      %p230 = por %p228, %p229
      %p231 = scmp.ne.s32.totalorder %s220, %s221
      %p232 = scmp.eq.s32.totalorder %s44, 0
      %p233 = por %p231, %p232
      %p234 = scmp.ne.s32.totalorder %s220, %s221
      %p235 = scmp.eq.s32.totalorder %s45, 1
      %p236 = por %p234, %p235
      %p238 = scmp.ne.s32.totalorder %s221, %s237
      %p239 = scmp.eq.s32.totalorder %s45, 0
      %p240 = por %p238, %p239
      %s241 = ssub.s32 %s47, %s54
      %p242 = scmp.eq.s32.totalorder %s241, 0
      %s244 = sadd.s32 %s243, 1
      %s245 = scalar_select %p242, %s243, %s244
      %p248 = pneg %p242
      %p249 = scmp.eq.s32.totalorder %s39, 1
      %p250 = por %p248, %p249
      %p251 = scmp.ne.s32.totalorder %s243, %s246
      %p252 = scmp.eq.s32.totalorder %s39, 0
      %p253 = por %p251, %p252
      %p254 = scmp.ne.s32.totalorder %s243, %s246
      %p255 = scmp.eq.s32.totalorder %s44, 1
      %p256 = por %p254, %p255
      %p257 = scmp.ne.s32.totalorder %s246, %s247
      %p258 = scmp.eq.s32.totalorder %s44, 0
      %p259 = por %p257, %p258
      %p260 = scmp.ne.s32.totalorder %s246, %s247
      %p261 = scmp.eq.s32.totalorder %s45, 1
      %p262 = por %p260, %p261
      %p264 = scmp.ne.s32.totalorder %s247, %s263
      %p265 = scmp.eq.s32.totalorder %s45, 0
      %p266 = por %p264, %p265
      %s267 = ssub.s32 %s47, %s54
      %p268 = scmp.eq.s32.totalorder %s267, 0
      %s270 = sadd.s32 %s269, 1
      %s271 = scalar_select %p268, %s269, %s270
      %p274 = pneg %p268
      %p275 = scmp.eq.s32.totalorder %s39, 1
      %p276 = por %p274, %p275
      %p277 = scmp.ne.s32.totalorder %s269, %s272
      %p278 = scmp.eq.s32.totalorder %s39, 0
      %p279 = por %p277, %p278
      %p280 = scmp.ne.s32.totalorder %s269, %s272
      %p281 = scmp.eq.s32.totalorder %s44, 1
      %p282 = por %p280, %p281
      %p283 = scmp.ne.s32.totalorder %s272, %s273
      %p284 = scmp.eq.s32.totalorder %s44, 0
      %p285 = por %p283, %p284
      %p286 = scmp.ne.s32.totalorder %s272, %s273
      %p287 = scmp.eq.s32.totalorder %s45, 1
      %p288 = por %p286, %p287
      %p290 = scmp.ne.s32.totalorder %s273, %s289
      %p291 = scmp.eq.s32.totalorder %s45, 0
      %p292 = por %p290, %p291
      %s293 = ssub.s32 %s47, %s54
      %p294 = scmp.eq.s32.totalorder %s293, 0
      %s296 = sadd.s32 %s295, 1
      %s297 = scalar_select %p294, %s295, %s296
      %p300 = pneg %p294
      %p301 = scmp.eq.s32.totalorder %s39, 1
      %p302 = por %p300, %p301
      %p303 = scmp.ne.s32.totalorder %s295, %s298
      %p304 = scmp.eq.s32.totalorder %s39, 0
      %p305 = por %p303, %p304
      %p306 = scmp.ne.s32.totalorder %s295, %s298
      %p307 = scmp.eq.s32.totalorder %s44, 1
      %p308 = por %p306, %p307
      %p309 = scmp.ne.s32.totalorder %s298, %s299
      %p310 = scmp.eq.s32.totalorder %s44, 0
      %p311 = por %p309, %p310
      %p312 = scmp.ne.s32.totalorder %s298, %s299
      %p313 = scmp.eq.s32.totalorder %s45, 1
      %p314 = por %p312, %p313
      %p316 = scmp.ne.s32.totalorder %s299, %s315
      %p317 = scmp.eq.s32.totalorder %s45, 0
      %p318 = por %p316, %p317
      %s319 = ssub.s32 %s47, %s54
      %p320 = scmp.eq.s32.totalorder %s319, 0
      %s322 = sadd.s32 %s321, 1
      %s323 = scalar_select %p320, %s321, %s322
      %p326 = pneg %p320
      %p327 = scmp.eq.s32.totalorder %s39, 1
      %p328 = por %p326, %p327
      %p329 = scmp.ne.s32.totalorder %s321, %s324
      %p330 = scmp.eq.s32.totalorder %s39, 0
      %p331 = por %p329, %p330
      %p332 = scmp.ne.s32.totalorder %s321, %s324
      %p333 = scmp.eq.s32.totalorder %s44, 1
      %p334 = por %p332, %p333
      %p335 = scmp.ne.s32.totalorder %s324, %s325
      %p336 = scmp.eq.s32.totalorder %s44, 0
      %p337 = por %p335, %p336
      %p338 = scmp.ne.s32.totalorder %s324, %s325
      %p339 = scmp.eq.s32.totalorder %s45, 1
      %p340 = por %p338, %p339
      %p342 = scmp.ne.s32.totalorder %s325, %s341
      %p343 = scmp.eq.s32.totalorder %s45, 0
      %p344 = por %p342, %p343
      %s345 = ssub.s32 %s47, %s54
      %p346 = scmp.eq.s32.totalorder %s345, 0
      %s348 = sadd.s32 %s347, 1
      %s349 = scalar_select %p346, %s347, %s348
      %p352 = pneg %p346
      %p353 = scmp.eq.s32.totalorder %s39, 1
      %p354 = por %p352, %p353
      %p355 = scmp.ne.s32.totalorder %s347, %s350
      %p356 = scmp.eq.s32.totalorder %s39, 0
      %p357 = por %p355, %p356
      %p358 = scmp.ne.s32.totalorder %s347, %s350
      %p359 = scmp.eq.s32.totalorder %s44, 1
      %p360 = por %p358, %p359
      %p361 = scmp.ne.s32.totalorder %s350, %s351
      %p362 = scmp.eq.s32.totalorder %s44, 0
      %p363 = por %p361, %p362
      %p364 = scmp.ne.s32.totalorder %s350, %s351
      %p365 = scmp.eq.s32.totalorder %s45, 1
      %p366 = por %p364, %p365
      %p368 = scmp.ne.s32.totalorder %s351, %s367
      %p369 = scmp.eq.s32.totalorder %s45, 0
      %p370 = por %p368, %p369
      %s371 = ssub.s32 %s47, %s54
      %p372 = scmp.eq.s32.totalorder %s371, 0
      %s374 = sadd.s32 %s373, 1
      %s375 = scalar_select %p372, %s373, %s374
      %p378 = pneg %p372
      %p379 = scmp.eq.s32.totalorder %s39, 1
      %p380 = por %p378, %p379
      %p381 = scmp.ne.s32.totalorder %s373, %s376
      %p382 = scmp.eq.s32.totalorder %s39, 0
      %p383 = por %p381, %p382
      %p384 = scmp.ne.s32.totalorder %s373, %s376
      %p385 = scmp.eq.s32.totalorder %s44, 1
      %p386 = por %p384, %p385
      %p387 = scmp.ne.s32.totalorder %s376, %s377
      %p388 = scmp.eq.s32.totalorder %s44, 0
      %p389 = por %p387, %p388
      %p390 = scmp.ne.s32.totalorder %s376, %s377
      %p391 = scmp.eq.s32.totalorder %s45, 1
      %p392 = por %p390, %p391
      %p394 = scmp.ne.s32.totalorder %s377, %s393
      %p395 = scmp.eq.s32.totalorder %s45, 0
      %p396 = por %p394, %p395
      %s397 = ssub.s32 %s46, %s58
      %p398 = scmp.eq.s32.totalorder %s397, 0
      %s400 = sadd.s32 %s399, 1
      %s401 = scalar_select %p398, %s399, %s400
      %p404 = pneg %p398
      %p405 = scmp.eq.s32.totalorder %s39, 1
      %p406 = por %p404, %p405
      %p407 = scmp.ne.s32.totalorder %s399, %s402
      %p408 = scmp.eq.s32.totalorder %s39, 0
      %p409 = por %p407, %p408
      %p410 = scmp.ne.s32.totalorder %s399, %s402
      %p411 = scmp.eq.s32.totalorder %s44, 1
      %p412 = por %p410, %p411
      %p413 = scmp.ne.s32.totalorder %s402, %s403
      %p414 = scmp.eq.s32.totalorder %s44, 0
      %p415 = por %p413, %p414
      %p416 = scmp.ne.s32.totalorder %s402, %s403
      %p417 = scmp.eq.s32.totalorder %s45, 1
      %p418 = por %p416, %p417
      %p420 = scmp.ne.s32.totalorder %s403, %s419
      %p421 = scmp.eq.s32.totalorder %s45, 0
      %p422 = por %p420, %p421
      %p423 = scmp.le.s32.totalorder 1, %s39
      %p424 = scmp.lt.s32.totalorder %s39, 3
      %p425 = pnand %p423, %p424
      %p426 = pneg %p425
      // Predicated region
      $region9: #{transformer_forward.2} parent=5 // pred_check
        _
      $region10: #{transformer_forward.2} parent=5 // pred_check_branch
        %428 = sbr.rel (%p425) target = $region12
      $region11: #{transformer_forward.2} parent=5 // pred_region
        %s429 = ssub.s32 %s39, 1
        // Predicated region
        $region13: #{transformer_forward.2} parent=11 // pred_check
          %p430 = pneg %p77
        $region14: #{transformer_forward.2} parent=11 // pred_check_branch
          %432 = sbr.rel (%p430) target = $region16
        $region15: #{transformer_forward.2} parent=11 // pred_region
          %s433 = smul.u32 2, %s48
          %s435 = ssub.s32 256, 256
          %436 = vsyncadd [#allocation3], %s435
          %s437 = smul.addr %s433, 128
          %s438 = scalar_lea.hbm %s0, %s437
          %s439 = sshll.u32 [#allocation2], 4
          %s440 = int_to_ptr.vmem [resolvable:$true] %s439
          %445 = dma.hbm_to_vmem [thread:$0]  %s438, 256, %s440, [#allocation3], 128, 128, 8
        $region16: #{transformer_forward.2} parent=11 // pred_fallthru
          _
      $region12: #{transformer_forward.2} parent=5 // pred_fallthru
        _
      %p446 = scmp.lt.s32.totalorder %s39, 2
      // Predicated region
      $region17: #{transformer_forward.2} parent=5 // pred_check
        %p447 = pneg %p446
      $region18: #{transformer_forward.2} parent=5 // pred_check_branch
        %449 = sbr.rel (%p447) target = $region20
      $region19: #{transformer_forward.2} parent=5 // pred_region
        // Predicated region
        $region21: #{transformer_forward.2} parent=19 // pred_check
          %p450 = pneg %p97
        $region22: #{transformer_forward.2} parent=19 // pred_check_branch
          %452 = sbr.rel (%p450) target = $region24
        $region23: #{transformer_forward.2} parent=19 // pred_region
          %s453 = sand.u32 %s39, 1
          %s454 = scalar_lea.sflag [#allocation6], %s453
          %s455 = sand.u32 %s87, 1
          %s456 = smul.addr %s455, 192
          %s457 = scalar_lea.vmem [#allocation5], %s456
          %s459 = ssub.s32 3072, 3072
          %460 = vsyncadd %s454, %s459
          %s461 = smul.addr %s47, 48
          %s462 = smul.addr %s461, 64
          %s463 = scalar_lea.hbm %s1, %s462
          %s464 = sshll.u32 %s457, 4
          %s465 = int_to_ptr.vmem [resolvable:$true] %s464
          %470 = dma.hbm_to_vmem [thread:$0]  %s463, 3072, %s465, %s454, 192, 192, 12
        $region24: #{transformer_forward.2} parent=19 // pred_fallthru
          _
        // Predicated region
        $region25: #{transformer_forward.2} parent=19 // pred_check
          %p471 = pneg %p123
        $region26: #{transformer_forward.2} parent=19 // pred_check_branch
          %473 = sbr.rel (%p471) target = $region28
        $region27: #{transformer_forward.2} parent=19 // pred_region
          %s474 = sand.u32 %s39, 1
          %s475 = scalar_lea.sflag [#allocation6], %s474
          %s476 = sand.u32 %s113, 1
          %s477 = smul.addr %s476, 3
          %s478 = scalar_lea.vmem [#allocation7], %s477
          %s480 = ssub.s32 48, 48
          %481 = vsyncadd %s475, %s480
          %s482 = smul.addr %s47, 3
          %s483 = smul.addr %s482, 16
          %s484 = scalar_lea.hbm %s2, %s483
          %s486 = sshll.u32 %s478, 4
          %s487 = int_to_ptr.vmem [resolvable:$true] %s486
          %489 = dma.hbm_to_vmem [thread:$0]  %s484, 48, %s487, %s475
        $region28: #{transformer_forward.2} parent=19 // pred_fallthru
          _
        // Predicated region
        $region29: #{transformer_forward.2} parent=19 // pred_check
          %p490 = pneg %p149
        $region30: #{transformer_forward.2} parent=19 // pred_check_branch
          %492 = sbr.rel (%p490) target = $region32
        $region31: #{transformer_forward.2} parent=19 // pred_region
          %s493 = sand.u32 %s39, 1
          %s494 = scalar_lea.sflag [#allocation9], %s493
          %s495 = sand.u32 %s139, 1
          %s496 = smul.addr %s495, 64
          %s497 = scalar_lea.vmem [#allocation8], %s496
          %s499 = ssub.s32 1024, 1024
          %500 = vsyncadd %s494, %s499
          %s501 = smul.addr %s47, 16
          %s502 = smul.addr %s501, 64
          %s503 = scalar_lea.hbm %s3, %s502
          %s504 = sshll.u32 %s497, 4
          %s505 = int_to_ptr.vmem [resolvable:$true] %s504
          %510 = dma.hbm_to_vmem [thread:$0]  %s503, 1024, %s505, %s494, 64, 64, 4
        $region32: #{transformer_forward.2} parent=19 // pred_fallthru
          _
        // Predicated region
        $region33: #{transformer_forward.2} parent=19 // pred_check
          %p511 = pneg %p175
        $region34: #{transformer_forward.2} parent=19 // pred_check_branch
          %513 = sbr.rel (%p511) target = $region36
        $region35: #{transformer_forward.2} parent=19 // pred_region
          %s514 = sand.u32 %s39, 1
          %s515 = scalar_lea.sflag [#allocation9], %s514
          %s516 = sand.u32 %s165, 1
          %s517 = scalar_lea.vmem [#allocation10], %s516
          %s519 = ssub.s32 16, 16
          %520 = vsyncadd %s515, %s519
          %s521 = smul.addr %s47, 16
          %s522 = scalar_lea.hbm %s4, %s521
          %s524 = sshll.u32 %s517, 4
          %s525 = int_to_ptr.vmem [resolvable:$true] %s524
          %527 = dma.hbm_to_vmem [thread:$0]  %s522, 16, %s525, %s515
        $region36: #{transformer_forward.2} parent=19 // pred_fallthru
          _
        // Predicated region
        $region37: #{transformer_forward.2} parent=19 // pred_check
          %p528 = pneg %p201
        $region38: #{transformer_forward.2} parent=19 // pred_check_branch
          %530 = sbr.rel (%p528) target = $region40
        $region39: #{transformer_forward.2} parent=19 // pred_region
          %s531 = sand.u32 %s39, 1
          %s532 = scalar_lea.sflag [#allocation12], %s531
          %s533 = sand.u32 %s191, 1
          %s534 = smul.addr %s533, 128
          %s535 = scalar_lea.vmem [#allocation11], %s534
          %s537 = ssub.s32 2048, 2048
          %538 = vsyncadd %s532, %s537
          %s539 = smul.addr %s47, 32
          %s540 = smul.addr %s539, 64
          %s541 = scalar_lea.hbm %s5, %s540
          %s542 = sshll.u32 %s535, 4
          %s543 = int_to_ptr.vmem [resolvable:$true] %s542
          %548 = dma.hbm_to_vmem [thread:$0]  %s541, 2048, %s543, %s532, 128, 128, 8
        $region40: #{transformer_forward.2} parent=19 // pred_fallthru
          _
        // Predicated region
        $region41: #{transformer_forward.2} parent=19 // pred_check
          %p549 = pneg %p227
        $region42: #{transformer_forward.2} parent=19 // pred_check_branch
          %551 = sbr.rel (%p549) target = $region44
        $region43: #{transformer_forward.2} parent=19 // pred_region
          %s552 = sand.u32 %s39, 1
          %s553 = scalar_lea.sflag [#allocation12], %s552
          %s554 = sand.u32 %s217, 1
          %s555 = smul.addr %s554, 2
          %s556 = scalar_lea.vmem [#allocation13], %s555
          %s558 = ssub.s32 32, 32
          %559 = vsyncadd %s553, %s558
          %s560 = smul.addr %s47, 2
          %s561 = smul.addr %s560, 16
          %s562 = scalar_lea.hbm %s6, %s561
          %s564 = sshll.u32 %s556, 4
          %s565 = int_to_ptr.vmem [resolvable:$true] %s564
          %567 = dma.hbm_to_vmem [thread:$0]  %s562, 32, %s565, %s553
        $region44: #{transformer_forward.2} parent=19 // pred_fallthru
          _
        // Predicated region
        $region45: #{transformer_forward.2} parent=19 // pred_check
          %p568 = pneg %p253
        $region46: #{transformer_forward.2} parent=19 // pred_check_branch
          %570 = sbr.rel (%p568) target = $region48
        $region47: #{transformer_forward.2} parent=19 // pred_region
          %s571 = sand.u32 %s39, 1
          %s572 = scalar_lea.sflag [#allocation15], %s571
          %s573 = sand.u32 %s243, 1
          %s574 = smul.addr %s573, 128
          %s575 = scalar_lea.vmem [#allocation14], %s574
          %s577 = ssub.s32 2048, 2048
          %578 = vsyncadd %s572, %s577
          %s579 = smul.addr %s47, 32
          %s580 = smul.addr %s579, 64
          %s581 = scalar_lea.hbm %s7, %s580
          %s582 = sshll.u32 %s575, 4
          %s583 = int_to_ptr.vmem [resolvable:$true] %s582
          %588 = dma.hbm_to_vmem [thread:$0]  %s581, 2048, %s583, %s572, 64, 64, 4
        $region48: #{transformer_forward.2} parent=19 // pred_fallthru
          _
        // Predicated region
        $region49: #{transformer_forward.2} parent=19 // pred_check
          %p589 = pneg %p279
        $region50: #{transformer_forward.2} parent=19 // pred_check_branch
          %591 = sbr.rel (%p589) target = $region52
        $region51: #{transformer_forward.2} parent=19 // pred_region
          %s592 = sand.u32 %s39, 1
          %s593 = scalar_lea.sflag [#allocation15], %s592
          %s594 = sand.u32 %s269, 1
          %s595 = scalar_lea.vmem [#allocation16], %s594
          %s597 = ssub.s32 16, 16
          %598 = vsyncadd %s593, %s597
          %s599 = smul.addr %s47, 16
          %s600 = scalar_lea.hbm %s8, %s599
          %s602 = sshll.u32 %s595, 4
          %s603 = int_to_ptr.vmem [resolvable:$true] %s602
          %605 = dma.hbm_to_vmem [thread:$0]  %s600, 16, %s603, %s593
        $region52: #{transformer_forward.2} parent=19 // pred_fallthru
          _
        // Predicated region
        $region53: #{transformer_forward.2} parent=19 // pred_check
          %p606 = pneg %p305
        $region54: #{transformer_forward.2} parent=19 // pred_check_branch
          %608 = sbr.rel (%p606) target = $region56
        $region55: #{transformer_forward.2} parent=19 // pred_region
          %s609 = sand.u32 %s39, 1
          %s610 = scalar_lea.sflag [#allocation18], %s609
          %s611 = sand.u32 %s295, 1
          %s612 = scalar_lea.vmem [#allocation17], %s611
          %s614 = ssub.s32 16, 16
          %615 = vsyncadd %s610, %s614
          %s616 = smul.addr %s47, 16
          %s617 = scalar_lea.hbm %s9, %s616
          %s619 = sshll.u32 %s612, 4
          %s620 = int_to_ptr.vmem [resolvable:$true] %s619
          %622 = dma.hbm_to_vmem [thread:$0]  %s617, 16, %s620, %s610
        $region56: #{transformer_forward.2} parent=19 // pred_fallthru
          _
        // Predicated region
        $region57: #{transformer_forward.2} parent=19 // pred_check
          %p623 = pneg %p331
        $region58: #{transformer_forward.2} parent=19 // pred_check_branch
          %625 = sbr.rel (%p623) target = $region60
        $region59: #{transformer_forward.2} parent=19 // pred_region
          %s626 = sand.u32 %s39, 1
          %s627 = scalar_lea.sflag [#allocation18], %s626
          %s628 = sand.u32 %s321, 1
          %s629 = scalar_lea.vmem [#allocation19], %s628
          %s631 = ssub.s32 16, 16
          %632 = vsyncadd %s627, %s631
          %s633 = smul.addr %s47, 16
          %s634 = scalar_lea.hbm %s10, %s633
          %s636 = sshll.u32 %s629, 4
          %s637 = int_to_ptr.vmem [resolvable:$true] %s636
          %639 = dma.hbm_to_vmem [thread:$0]  %s634, 16, %s637, %s627
        $region60: #{transformer_forward.2} parent=19 // pred_fallthru
          _
        // Predicated region
        $region61: #{transformer_forward.2} parent=19 // pred_check
          %p640 = pneg %p357
        $region62: #{transformer_forward.2} parent=19 // pred_check_branch
          %642 = sbr.rel (%p640) target = $region64
        $region63: #{transformer_forward.2} parent=19 // pred_region
          %s643 = sand.u32 %s39, 1
          %s644 = scalar_lea.sflag [#allocation21], %s643
          %s645 = sand.u32 %s347, 1
          %s646 = scalar_lea.vmem [#allocation20], %s645
          %s648 = ssub.s32 16, 16
          %649 = vsyncadd %s644, %s648
          %s650 = smul.addr %s47, 16
          %s651 = scalar_lea.hbm %s11, %s650
          %s653 = sshll.u32 %s646, 4
          %s654 = int_to_ptr.vmem [resolvable:$true] %s653
          %656 = dma.hbm_to_vmem [thread:$0]  %s651, 16, %s654, %s644
        $region64: #{transformer_forward.2} parent=19 // pred_fallthru
          _
        // Predicated region
        $region65: #{transformer_forward.2} parent=19 // pred_check
          %p657 = pneg %p383
        $region66: #{transformer_forward.2} parent=19 // pred_check_branch
          %659 = sbr.rel (%p657) target = $region68
        $region67: #{transformer_forward.2} parent=19 // pred_region
          %s660 = sand.u32 %s39, 1
          %s661 = scalar_lea.sflag [#allocation21], %s660
          %s662 = sand.u32 %s373, 1
          %s663 = scalar_lea.vmem [#allocation22], %s662
          %s665 = ssub.s32 16, 16
          %666 = vsyncadd %s661, %s665
          %s667 = smul.addr %s47, 16
          %s668 = scalar_lea.hbm %s12, %s667
          %s670 = sshll.u32 %s663, 4
          %s671 = int_to_ptr.vmem [resolvable:$true] %s670
          %673 = dma.hbm_to_vmem [thread:$0]  %s668, 16, %s671, %s661
        $region68: #{transformer_forward.2} parent=19 // pred_fallthru
          _
      $region20: #{transformer_forward.2} parent=5 // pred_fallthru
        _
      %p674 = scmp.le.s32.totalorder 1, %s39
      %p675 = scmp.lt.s32.totalorder %s39, 3
      %p676 = pnand %p674, %p675
      %p677 = pneg %p676
      // Predicated region
      $region69: #{transformer_forward.2} parent=5 // pred_check
        _
      $region70: #{transformer_forward.2} parent=5 // pred_check_branch
        %679 = sbr.rel (%p676) target = $region72
      $region71: #{transformer_forward.2} parent=5 // pred_region
        %s680 = ssub.s32 %s39, 1
        // Predicated region
        $region73: #{transformer_forward.2} parent=71 // pred_check
          %p681 = pneg %p77
        $region74: #{transformer_forward.2} parent=71 // pred_check_branch
          %683 = sbr.rel (%p681) target = $region76
        $region75: #{transformer_forward.2} parent=71 // pred_region
          %684 = dma.done [#allocation3], 256
        $region76: #{transformer_forward.2} parent=71 // pred_fallthru
          _
        %s685 = sand.u32 %s44, 1
        %s686 = scalar_lea.sflag [#allocation6], %s685
        %s687 = sand.u32 %s90, 1
        %s688 = smul.addr %s687, 192
        %s689 = scalar_lea.vmem [#allocation5], %s688
        // Predicated region
        $region77: #{transformer_forward.2} parent=71 // pred_check
          %p690 = pneg %p103
        $region78: #{transformer_forward.2} parent=71 // pred_check_branch
          %692 = sbr.rel (%p690) target = $region80
        $region79: #{transformer_forward.2} parent=71 // pred_region
          %693 = dma.done %s686, 3072
        $region80: #{transformer_forward.2} parent=71 // pred_fallthru
          _
        %s694 = sand.u32 %s44, 1
        %s695 = scalar_lea.sflag [#allocation6], %s694
        %s696 = sand.u32 %s116, 1
        %s697 = smul.addr %s696, 3
        %s698 = scalar_lea.vmem [#allocation7], %s697
        // Predicated region
        $region81: #{transformer_forward.2} parent=71 // pred_check
          %p699 = pneg %p129
        $region82: #{transformer_forward.2} parent=71 // pred_check_branch
          %701 = sbr.rel (%p699) target = $region84
        $region83: #{transformer_forward.2} parent=71 // pred_region
          %702 = dma.done %s695, 48
        $region84: #{transformer_forward.2} parent=71 // pred_fallthru
          _
        %s703 = sand.u32 %s44, 1
        %s704 = scalar_lea.sflag [#allocation9], %s703
        %s705 = sand.u32 %s142, 1
        %s706 = smul.addr %s705, 64
        %s707 = scalar_lea.vmem [#allocation8], %s706
        // Predicated region
        $region85: #{transformer_forward.2} parent=71 // pred_check
          %p708 = pneg %p155
        $region86: #{transformer_forward.2} parent=71 // pred_check_branch
          %710 = sbr.rel (%p708) target = $region88
        $region87: #{transformer_forward.2} parent=71 // pred_region
          %711 = dma.done %s704, 1024
        $region88: #{transformer_forward.2} parent=71 // pred_fallthru
          _
        %s712 = sand.u32 %s44, 1
        %s713 = scalar_lea.sflag [#allocation9], %s712
        %s714 = sand.u32 %s168, 1
        %s715 = scalar_lea.vmem [#allocation10], %s714
        // Predicated region
        $region89: #{transformer_forward.2} parent=71 // pred_check
          %p716 = pneg %p181
        $region90: #{transformer_forward.2} parent=71 // pred_check_branch
          %718 = sbr.rel (%p716) target = $region92
        $region91: #{transformer_forward.2} parent=71 // pred_region
          %719 = dma.done %s713, 16
        $region92: #{transformer_forward.2} parent=71 // pred_fallthru
          _
        %s720 = sand.u32 %s44, 1
        %s721 = scalar_lea.sflag [#allocation12], %s720
        %s722 = sand.u32 %s194, 1
        %s723 = smul.addr %s722, 128
        %s724 = scalar_lea.vmem [#allocation11], %s723
        // Predicated region
        $region93: #{transformer_forward.2} parent=71 // pred_check
          %p725 = pneg %p207
        $region94: #{transformer_forward.2} parent=71 // pred_check_branch
          %727 = sbr.rel (%p725) target = $region96
        $region95: #{transformer_forward.2} parent=71 // pred_region
          %728 = dma.done %s721, 2048
        $region96: #{transformer_forward.2} parent=71 // pred_fallthru
          _
        %s729 = sand.u32 %s44, 1
        %s730 = scalar_lea.sflag [#allocation12], %s729
        %s731 = sand.u32 %s220, 1
        %s732 = smul.addr %s731, 2
        %s733 = scalar_lea.vmem [#allocation13], %s732
        // Predicated region
        $region97: #{transformer_forward.2} parent=71 // pred_check
          %p734 = pneg %p233
        $region98: #{transformer_forward.2} parent=71 // pred_check_branch
          %736 = sbr.rel (%p734) target = $region100
        $region99: #{transformer_forward.2} parent=71 // pred_region
          %737 = dma.done %s730, 32
        $region100: #{transformer_forward.2} parent=71 // pred_fallthru
          _
        %s738 = sand.u32 %s44, 1
        %s739 = scalar_lea.sflag [#allocation15], %s738
        %s740 = sand.u32 %s246, 1
        %s741 = smul.addr %s740, 128
        %s742 = scalar_lea.vmem [#allocation14], %s741
        // Predicated region
        $region101: #{transformer_forward.2} parent=71 // pred_check
          %p743 = pneg %p259
        $region102: #{transformer_forward.2} parent=71 // pred_check_branch
          %745 = sbr.rel (%p743) target = $region104
        $region103: #{transformer_forward.2} parent=71 // pred_region
          %746 = dma.done %s739, 2048
        $region104: #{transformer_forward.2} parent=71 // pred_fallthru
          _
        %s747 = sand.u32 %s44, 1
        %s748 = scalar_lea.sflag [#allocation15], %s747
        %s749 = sand.u32 %s272, 1
        %s750 = scalar_lea.vmem [#allocation16], %s749
        // Predicated region
        $region105: #{transformer_forward.2} parent=71 // pred_check
          %p751 = pneg %p285
        $region106: #{transformer_forward.2} parent=71 // pred_check_branch
          %753 = sbr.rel (%p751) target = $region108
        $region107: #{transformer_forward.2} parent=71 // pred_region
          %754 = dma.done %s748, 16
        $region108: #{transformer_forward.2} parent=71 // pred_fallthru
          _
        %s755 = sand.u32 %s44, 1
        %s756 = scalar_lea.sflag [#allocation18], %s755
        %s757 = sand.u32 %s298, 1
        %s758 = scalar_lea.vmem [#allocation17], %s757
        // Predicated region
        $region109: #{transformer_forward.2} parent=71 // pred_check
          %p759 = pneg %p311
        $region110: #{transformer_forward.2} parent=71 // pred_check_branch
          %761 = sbr.rel (%p759) target = $region112
        $region111: #{transformer_forward.2} parent=71 // pred_region
          %762 = dma.done %s756, 16
        $region112: #{transformer_forward.2} parent=71 // pred_fallthru
          _
        %s763 = sand.u32 %s44, 1
        %s764 = scalar_lea.sflag [#allocation18], %s763
        %s765 = sand.u32 %s324, 1
        %s766 = scalar_lea.vmem [#allocation19], %s765
        // Predicated region
        $region113: #{transformer_forward.2} parent=71 // pred_check
          %p767 = pneg %p337
        $region114: #{transformer_forward.2} parent=71 // pred_check_branch
          %769 = sbr.rel (%p767) target = $region116
        $region115: #{transformer_forward.2} parent=71 // pred_region
          %770 = dma.done %s764, 16
        $region116: #{transformer_forward.2} parent=71 // pred_fallthru
          _
        %s771 = sand.u32 %s44, 1
        %s772 = scalar_lea.sflag [#allocation21], %s771
        %s773 = sand.u32 %s350, 1
        %s774 = scalar_lea.vmem [#allocation20], %s773
        // Predicated region
        $region117: #{transformer_forward.2} parent=71 // pred_check
          %p775 = pneg %p363
        $region118: #{transformer_forward.2} parent=71 // pred_check_branch
          %777 = sbr.rel (%p775) target = $region120
        $region119: #{transformer_forward.2} parent=71 // pred_region
          %778 = dma.done %s772, 16
        $region120: #{transformer_forward.2} parent=71 // pred_fallthru
          _
        %s779 = sand.u32 %s44, 1
        %s780 = scalar_lea.sflag [#allocation21], %s779
        %s781 = sand.u32 %s376, 1
        %s782 = scalar_lea.vmem [#allocation22], %s781
        // Predicated region
        $region121: #{transformer_forward.2} parent=71 // pred_check
          %p783 = pneg %p389
        $region122: #{transformer_forward.2} parent=71 // pred_check_branch
          %785 = sbr.rel (%p783) target = $region124
        $region123: #{transformer_forward.2} parent=71 // pred_region
          %786 = dma.done %s780, 16
        $region124: #{transformer_forward.2} parent=71 // pred_fallthru
          _
        %p787 = pneg %p77
        %p788 = pneg %p74
        %s789 = sand.u32 %s44, 1
        %s790 = scalar_lea.sflag [#allocation6], %s789
        %s791 = sand.u32 %s90, 1
        %s792 = smul.addr %s791, 192
        %s793 = scalar_lea.vmem [#allocation5], %s792
        %p794 = pneg %p103
        %p795 = pneg %p100
        %s796 = sand.u32 %s44, 1
        %s797 = scalar_lea.sflag [#allocation6], %s796
        %s798 = sand.u32 %s116, 1
        %s799 = smul.addr %s798, 3
        %s800 = scalar_lea.vmem [#allocation7], %s799
        %p801 = pneg %p129
        %p802 = pneg %p126
        %s803 = sand.u32 %s44, 1
        %s804 = scalar_lea.sflag [#allocation9], %s803
        %s805 = sand.u32 %s142, 1
        %s806 = smul.addr %s805, 64
        %s807 = scalar_lea.vmem [#allocation8], %s806
        %p808 = pneg %p155
        %p809 = pneg %p152
        %s810 = sand.u32 %s44, 1
        %s811 = scalar_lea.sflag [#allocation9], %s810
        %s812 = sand.u32 %s168, 1
        %s813 = scalar_lea.vmem [#allocation10], %s812
        %p814 = pneg %p181
        %p815 = pneg %p178
        %s816 = sand.u32 %s44, 1
        %s817 = scalar_lea.sflag [#allocation12], %s816
        %s818 = sand.u32 %s194, 1
        %s819 = smul.addr %s818, 128
        %s820 = scalar_lea.vmem [#allocation11], %s819
        %p821 = pneg %p207
        %p822 = pneg %p204
        %s823 = sand.u32 %s44, 1
        %s824 = scalar_lea.sflag [#allocation12], %s823
        %s825 = sand.u32 %s220, 1
        %s826 = smul.addr %s825, 2
        %s827 = scalar_lea.vmem [#allocation13], %s826
        %p828 = pneg %p233
        %p829 = pneg %p230
        %s830 = sand.u32 %s44, 1
        %s831 = scalar_lea.sflag [#allocation15], %s830
        %s832 = sand.u32 %s246, 1
        %s833 = smul.addr %s832, 128
        %s834 = scalar_lea.vmem [#allocation14], %s833
        %p835 = pneg %p259
        %p836 = pneg %p256
        %s837 = sand.u32 %s44, 1
        %s838 = scalar_lea.sflag [#allocation15], %s837
        %s839 = sand.u32 %s272, 1
        %s840 = scalar_lea.vmem [#allocation16], %s839
        %p841 = pneg %p285
        %p842 = pneg %p282
        %s843 = sand.u32 %s44, 1
        %s844 = scalar_lea.sflag [#allocation18], %s843
        %s845 = sand.u32 %s298, 1
        %s846 = scalar_lea.vmem [#allocation17], %s845
        %p847 = pneg %p311
        %p848 = pneg %p308
        %s849 = sand.u32 %s44, 1
        %s850 = scalar_lea.sflag [#allocation18], %s849
        %s851 = sand.u32 %s324, 1
        %s852 = scalar_lea.vmem [#allocation19], %s851
        %p853 = pneg %p337
        %p854 = pneg %p334
        %s855 = sand.u32 %s44, 1
        %s856 = scalar_lea.sflag [#allocation21], %s855
        %s857 = sand.u32 %s350, 1
        %s858 = scalar_lea.vmem [#allocation20], %s857
        %p859 = pneg %p363
        %p860 = pneg %p360
        %s861 = sand.u32 %s44, 1
        %s862 = scalar_lea.sflag [#allocation21], %s861
        %s863 = sand.u32 %s376, 1
        %s864 = scalar_lea.vmem [#allocation22], %s863
        %p865 = pneg %p389
        %p866 = pneg %p386
        %p867 = pneg %p415
        %p868 = pneg %p412
        %s869 = smul.u32 2, %s48
        %s870 = smul.u32 2, %s48
        %p872 = scmp.eq.s32.totalorder %s49, 0
        // Predicated region
        $region125: #{transformer_forward.2} parent=71 // pred_check
          %p873 = pneg %p872
        $region126: #{transformer_forward.2} parent=71 // pred_check_branch
          %875 = sbr.rel (%p873) target = $region128
        $region127: #{transformer_forward.2} parent=71 // pred_region
          %v876 = vld [vmem:[#allocation2] sm:$0xff]
          %v877 = vld [vmem:[#allocation2 + $0x8] sm:$0xff]
          %878 = vst [vmem:[#allocation23] sm:$0xff] %v876
          %879 = vst [vmem:[#allocation23 + $0x8] sm:$0xff] %v877
        $region128: #{transformer_forward.2} parent=71 // pred_fallthru
          _
        %v880 = vld [vmem:[#allocation23] sm:$0xff]
        %v881 = vld [vmem:[#allocation23 + $0x8] sm:$0xff]
        %v882 = vpack.c.bf16 %v881, %v880
        %v883 = vld [vmem:[%s689] sm:$0xff]
        %v884 = vld [vmem:[%s689 + $0x8] sm:$0xf]
        %v885 = vld [vmem:[%s689 + $0xc] sm:$0xff]
        %v886 = vld [vmem:[%s689 + $0x14] sm:$0xf]
        %v887 = vld [vmem:[%s689 + $0x18] sm:$0xff]
        %v888 = vld [vmem:[%s689 + $0x20] sm:$0xf]
        %v889 = vld [vmem:[%s689 + $0x24] sm:$0xff]
        %v890 = vld [vmem:[%s689 + $0x2c] sm:$0xf]
        %v891 = vld [vmem:[%s689 + $0x30] sm:$0xff]
        %v892 = vld [vmem:[%s689 + $0x38] sm:$0xf]
        %v893 = vld [vmem:[%s689 + $0x3c] sm:$0xff]
        %v894 = vld [vmem:[%s689 + $0x44] sm:$0xf]
        %v895 = vld [vmem:[%s689 + $0x48] sm:$0xff]
        %v896 = vld [vmem:[%s689 + $0x50] sm:$0xf]
        %v897 = vld [vmem:[%s689 + $0x54] sm:$0xff]
        %v898 = vld [vmem:[%s689 + $0x5c] sm:$0xf]
        %v899 = vld [vmem:[%s689 + $0x60] sm:$0xff]
        %v900 = vld [vmem:[%s689 + $0x68] sm:$0xf]
        %v901 = vld [vmem:[%s689 + $0x6c] sm:$0xff]
        %v902 = vld [vmem:[%s689 + $0x74] sm:$0xf]
        %v903 = vld [vmem:[%s689 + $0x78] sm:$0xff]
        %v904 = vld [vmem:[%s689 + $0x80] sm:$0xf]
        %v905 = vld [vmem:[%s689 + $0x84] sm:$0xff]
        %v906 = vld [vmem:[%s689 + $0x8c] sm:$0xf]
        %v907 = vld [vmem:[%s689 + $0x90] sm:$0xff]
        %v908 = vld [vmem:[%s689 + $0x98] sm:$0xf]
        %v909 = vld [vmem:[%s689 + $0x9c] sm:$0xff]
        %v910 = vld [vmem:[%s689 + $0xa4] sm:$0xf]
        %v911 = vld [vmem:[%s689 + $0xa8] sm:$0xff]
        %v912 = vld [vmem:[%s689 + $0xb0] sm:$0xf]
        %v913 = vld [vmem:[%s689 + $0xb4] sm:$0xff]
        %v914 = vld [vmem:[%s689 + $0xbc] sm:$0xf]
        %v915 = vld [vmem:[%s698] sm:$0x7]
        %v917 = vlaneseq
        %v918 = vshrl.u32 %v917, 7
        %v919 = vsub.s32 0, %v918
        %v920 = vrot.slane %v915, %v919
        %v921 = vlaneseq
        %v922 = vshrl.u32 %v921, 7
        %v923 = vsub.s32 1, %v922
        %v924 = vrot.slane %v915, %v923
        %v925 = vlaneseq
        %v926 = vshrl.u32 %v925, 7
        %v927 = vsub.s32 2, %v926
        %v928 = vrot.slane %v915, %v927
        %v964 = vunpack.c.l.b16 %v883
        %v965 = vunpack.c.h.b16 %v883
        %v966 = vunpack.c.l.b16 %v884
        %v967 = vunpack.c.l.b16 %v885
        %v968 = vunpack.c.h.b16 %v885
        %v969 = vunpack.c.l.b16 %v886
        %v970 = vunpack.c.l.b16 %v887
        %v971 = vunpack.c.h.b16 %v887
        %v972 = vunpack.c.l.b16 %v888
        %v973 = vunpack.c.l.b16 %v889
        %v974 = vunpack.c.h.b16 %v889
        %v975 = vunpack.c.l.b16 %v890
        %v976 = vunpack.c.l.b16 %v891
        %v977 = vunpack.c.h.b16 %v891
        %v978 = vunpack.c.l.b16 %v892
        %v979 = vunpack.c.l.b16 %v893
        %v980 = vunpack.c.h.b16 %v893
        %v981 = vunpack.c.l.b16 %v894
        %v982 = vunpack.c.l.b16 %v895
        %v983 = vunpack.c.h.b16 %v895
        %v984 = vunpack.c.l.b16 %v896
        %v985 = vunpack.c.l.b16 %v897
        %v986 = vunpack.c.h.b16 %v897
        %v987 = vunpack.c.l.b16 %v898
        %v988 = vunpack.c.l.b16 %v899
        %v989 = vunpack.c.h.b16 %v899
        %v990 = vunpack.c.l.b16 %v900
        %v991 = vunpack.c.l.b16 %v901
        %v992 = vunpack.c.h.b16 %v901
        %v993 = vunpack.c.l.b16 %v902
        %v994 = vunpack.c.l.b16 %v903
        %v995 = vunpack.c.h.b16 %v903
        %v996 = vunpack.c.l.b16 %v904
        %v997 = vunpack.c.l.b16 %v905
        %v998 = vunpack.c.h.b16 %v905
        %v999 = vunpack.c.l.b16 %v906
        %v1000 = vunpack.c.l.b16 %v907
        %v1001 = vunpack.c.h.b16 %v907
        %v1002 = vunpack.c.l.b16 %v908
        %v1003 = vunpack.c.l.b16 %v909
        %v1004 = vunpack.c.h.b16 %v909
        %v1005 = vunpack.c.l.b16 %v910
        %v1006 = vunpack.c.l.b16 %v911
        %v1007 = vunpack.c.h.b16 %v911
        %v1008 = vunpack.c.l.b16 %v912
        %v1009 = vunpack.c.l.b16 %v913
        %v1010 = vunpack.c.h.b16 %v913
        %v1011 = vunpack.c.l.b16 %v914
        %v1012 = vpack.c.b16 %v967, %v964
        %v1013 = vpack.c.b16 %v968, %v965
        %v1014 = vpack.c.b16 %v969, %v966
        %v1015 = vpack.c.b16 %v973, %v970
        %v1016 = vpack.c.b16 %v974, %v971
        %v1017 = vpack.c.b16 %v975, %v972
        %v1018 = vpack.c.b16 %v979, %v976
        %v1019 = vpack.c.b16 %v980, %v977
        %v1020 = vpack.c.b16 %v981, %v978
        %v1021 = vpack.c.b16 %v985, %v982
        %v1022 = vpack.c.b16 %v986, %v983
        %v1023 = vpack.c.b16 %v987, %v984
        %v1024 = vpack.c.b16 %v991, %v988
        %v1025 = vpack.c.b16 %v992, %v989
        %v1026 = vpack.c.b16 %v993, %v990
        %v1027 = vpack.c.b16 %v997, %v994
        %v1028 = vpack.c.b16 %v998, %v995
        %v1029 = vpack.c.b16 %v999, %v996
        %v1030 = vpack.c.b16 %v1003, %v1000
        %v1031 = vpack.c.b16 %v1004, %v1001
        %v1032 = vpack.c.b16 %v1005, %v1002
        %v1033 = vpack.c.b16 %v1009, %v1006
        %v1034 = vpack.c.b16 %v1010, %v1007
        %v1035 = vpack.c.b16 %v1011, %v1008
        %1060 = vmatprep.subr.bf16.mxu0 %v1013
        %1061 = vmatpush1.bf16.msra.mxu0 %v1012
        %1062 = vmatprep.subr.bf16.mxu0 %v1016
        %1063 = vmatpush1.bf16.msra.mxu0 %v1015
        %1064 = vmatprep.subr.bf16.mxu0 %v1019
        %1065 = vmatpush1.bf16.msra.mxu0 %v1018
        %1066 = vmatprep.subr.bf16.mxu0 %v1022
        %1067 = vmatpush1.bf16.msra.mxu0 %v1021
        %1068 = vmatprep.subr.bf16.mxu0 %v1025
        %1069 = vmatpush1.bf16.msra.mxu0 %v1024
        %1070 = vmatprep.subr.bf16.mxu0 %v1028
        %1071 = vmatpush1.bf16.msra.mxu0 %v1027
        %1072 = vmatprep.subr.bf16.mxu0 %v1031
        %1073 = vmatpush1.bf16.msra.mxu0 %v1030
        %1074 = vmatprep.subr.bf16.mxu0 %v1034
        %1075 = vmatpush1.bf16.msra.mxu0 %v1033
        %1076 = vmatprep.subr.bf16.mxu0 0
        %1077 = vmatpush1.bf16.msra.mxu0 0
        %1078 = vmatprep.subr.bf16.mxu0 0
        %1079 = vmatpush1.bf16.msra.mxu0 0
        %1080 = vmatprep.subr.bf16.mxu0 0
        %1081 = vmatpush1.bf16.msra.mxu0 0
        %1082 = vmatprep.subr.bf16.mxu0 0
        %1083 = vmatpush1.bf16.msra.mxu0 0
        %1084 = vmatprep.subr.bf16.mxu0 0
        %1085 = vmatpush1.bf16.msra.mxu0 0
        %1086 = vmatprep.subr.bf16.mxu0 0
        %1087 = vmatpush1.bf16.msra.mxu0 0
        %1088 = vmatprep.subr.bf16.mxu0 0
        %1089 = vmatpush1.bf16.msra.mxu0 0
        %1090 = vmatprep.subr.bf16.mxu0 0
        %1091 = vmatpush1.bf16.msra.mxu0 0
        %1092 = vmatprep.mubr.bf16.mxu0 0
        %1093 = vmatmul.mubr.bf16.gmra.mrb[0].mxu0 %v882
        %v1094 = vpop.f32.mrb[0].mxu0
        %v1095 = vadd.f32 %v920, %v1094
        %v1096 = vpop.f32.mrb[0].mxu0
        %v1097 = vadd.f32 %v924, %v1096
        %v1098 = vpop.f32.mrb[0].mxu0
        %v1099 = vadd.f32 %v920, %v1098
        %v1100 = vpop.f32.mrb[0].mxu0
        %v1101 = vadd.f32 %v924, %v1100
        %1102 = vdwg.mxu0
        %1103 = vmatprep.subr.bf16.mxu0 0
        %1104 = vmatpush1.bf16.msra.mxu0 %v1014
        %1105 = vmatprep.subr.bf16.mxu0 0
        %1106 = vmatpush1.bf16.msra.mxu0 %v1017
        %1107 = vmatprep.subr.bf16.mxu0 0
        %1108 = vmatpush1.bf16.msra.mxu0 %v1020
        %1109 = vmatprep.subr.bf16.mxu0 0
        %1110 = vmatpush1.bf16.msra.mxu0 %v1023
        %1111 = vmatprep.subr.bf16.mxu0 0
        %1112 = vmatpush1.bf16.msra.mxu0 %v1026
        %1113 = vmatprep.subr.bf16.mxu0 0
        %1114 = vmatpush1.bf16.msra.mxu0 %v1029
        %1115 = vmatprep.subr.bf16.mxu0 0
        %1116 = vmatpush1.bf16.msra.mxu0 %v1032
        %1117 = vmatprep.subr.bf16.mxu0 0
        %1118 = vmatpush1.bf16.msra.mxu0 %v1035
        %1119 = vmatprep.subr.bf16.mxu0 0
        %1120 = vmatpush1.bf16.msra.mxu0 0
        %1121 = vmatprep.subr.bf16.mxu0 0
        %1122 = vmatpush1.bf16.msra.mxu0 0
        %1123 = vmatprep.subr.bf16.mxu0 0
        %1124 = vmatpush1.bf16.msra.mxu0 0
        %1125 = vmatprep.subr.bf16.mxu0 0
        %1126 = vmatpush1.bf16.msra.mxu0 0
        %1127 = vmatprep.subr.bf16.mxu0 0
        %1128 = vmatpush1.bf16.msra.mxu0 0
        %1129 = vmatprep.subr.bf16.mxu0 0
        %1130 = vmatpush1.bf16.msra.mxu0 0
        %1131 = vmatprep.subr.bf16.mxu0 0
        %1132 = vmatpush1.bf16.msra.mxu0 0
        %1133 = vmatprep.subr.bf16.mxu0 0
        %1134 = vmatpush1.bf16.msra.mxu0 0
        %1135 = vmatprep.mubr.bf16.mxu0 0
        %1136 = vmatmul.mubr.bf16.gmra.mrb[0].mxu0 %v882
        %v1137 = vpop.f32.mrb[0].mxu0
        %v1138 = vadd.f32 %v928, %v1137
        %v1139 = vpop.f32.mrb[0].mxu0
        %v1140 = vpop.f32.mrb[0].mxu0
        %v1141 = vadd.f32 %v928, %v1140
        %v1142 = vpop.f32.mrb[0].mxu0
        %1143 = vdwg.mxu0
        %1146 = vrot.lane.b32.xlu0 %v1095, 96
        %v1147 = vpop.permute.xlu0 %1146
        %1148 = vrot.lane.b32.xlu0 %v1099, 96
        %v1149 = vpop.permute.xlu0 %1148
        %1152 = vrot.lane.b32.xlu0 %v1095, 64
        %v1153 = vpop.permute.xlu0 %1152
        %1154 = vrot.lane.b32.xlu0 %v1099, 64
        %v1155 = vpop.permute.xlu0 %1154
        %1158 = vrot.lane.b32.xlu0 %v1095, 32
        %v1159 = vpop.permute.xlu0 %1158
        %1160 = vrot.lane.b32.xlu0 %v1099, 32
        %v1161 = vpop.permute.xlu0 %1160
        %v1164 = vpack.c.bf16 %v1095, %v1095
        %v1165 = vpack.c.bf16 %v1099, %v1099
        %v1166 = vpack.c.bf16 %v1147, %v1147
        %v1167 = vpack.c.bf16 %v1149, %v1149
        %v1168 = vpack.c.bf16 %v1153, %v1153
        %v1169 = vpack.c.bf16 %v1155, %v1155
        %v1170 = vpack.c.bf16 %v1159, %v1159
        %v1171 = vpack.c.bf16 %v1161, %v1161
        %1174 = vrot.lane.b32.xlu0 %v1097, 96
        %v1175 = vpop.permute.xlu0 %1174
        %1176 = vrot.lane.b32.xlu0 %v1101, 96
        %v1177 = vpop.permute.xlu0 %1176
        %1180 = vrot.lane.b32.xlu0 %v1097, 64
        %v1181 = vpop.permute.xlu0 %1180
        %1182 = vrot.lane.b32.xlu0 %v1101, 64
        %v1183 = vpop.permute.xlu0 %1182
        %1186 = vrot.lane.b32.xlu0 %v1097, 32
        %v1187 = vpop.permute.xlu0 %1186
        %1188 = vrot.lane.b32.xlu0 %v1101, 32
        %v1189 = vpop.permute.xlu0 %1188
        %v1192 = vpack.c.bf16 %v1097, %v1097
        %v1193 = vpack.c.bf16 %v1101, %v1101
        %v1194 = vpack.c.bf16 %v1175, %v1175
        %v1195 = vpack.c.bf16 %v1177, %v1177
        %v1196 = vpack.c.bf16 %v1181, %v1181
        %v1197 = vpack.c.bf16 %v1183, %v1183
        %v1198 = vpack.c.bf16 %v1187, %v1187
        %v1199 = vpack.c.bf16 %v1189, %v1189
        %1202 = vrot.lane.b32.xlu0 %v1138, 96
        %v1203 = vpop.permute.xlu0 %1202
        %1204 = vrot.lane.b32.xlu0 %v1141, 96
        %v1205 = vpop.permute.xlu0 %1204
        %1208 = vrot.lane.b32.xlu0 %v1138, 64
        %v1209 = vpop.permute.xlu0 %1208
        %1210 = vrot.lane.b32.xlu0 %v1141, 64
        %v1211 = vpop.permute.xlu0 %1210
        %1214 = vrot.lane.b32.xlu0 %v1138, 32
        %v1215 = vpop.permute.xlu0 %1214
        %1216 = vrot.lane.b32.xlu0 %v1141, 32
        %v1217 = vpop.permute.xlu0 %1216
        %v1220 = vpack.c.bf16 %v1138, %v1138
        %v1221 = vpack.c.bf16 %v1141, %v1141
        %v1222 = vpack.c.bf16 %v1203, %v1203
        %v1223 = vpack.c.bf16 %v1205, %v1205
        %v1224 = vpack.c.bf16 %v1209, %v1209
        %v1225 = vpack.c.bf16 %v1211, %v1211
        %v1226 = vpack.c.bf16 %v1215, %v1215
        %v1227 = vpack.c.bf16 %v1217, %v1217
        %vm1228 = vcmask 261120
        %v1230 = vsel %vm1228, %v1164, 0
        %v1233 = vsel %vm1228, %v1192, 0
        %1235 = vmatprep.subr.bf16.mxu0 0
        %1236 = vmatpush1.bf16.xpose.msra.mxu0 %v1233
        %1237 = vmatprep.subr.bf16.mxu0 0
        %1238 = vmatpush1.bf16.xpose.msra.mxu0 0
        %1239 = vmatprep.subr.bf16.mxu0 0
        %1240 = vmatpush1.bf16.xpose.msra.mxu0 0
        %1241 = vmatprep.subr.bf16.mxu0 0
        %1242 = vmatpush1.bf16.xpose.msra.mxu0 0
        %1243 = vmatprep.subr.bf16.mxu0 0
        %1244 = vmatpush1.bf16.xpose.msra.mxu0 0
        %1245 = vmatprep.subr.bf16.mxu0 0
        %1246 = vmatpush1.bf16.xpose.msra.mxu0 0
        %1247 = vmatprep.subr.bf16.mxu0 0
        %1248 = vmatpush1.bf16.xpose.msra.mxu0 0
        %1249 = vmatprep.subr.bf16.mxu0 0
        %1250 = vmatpush1.bf16.xpose.msra.mxu0 0
        %1251 = vmatprep.subr.bf16.mxu0 0
        %1252 = vmatpush1.bf16.xpose.msra.mxu0 0
        %1253 = vmatprep.subr.bf16.mxu0 0
        %1254 = vmatpush1.bf16.xpose.msra.mxu0 0
        %1255 = vmatprep.subr.bf16.mxu0 0
        %1256 = vmatpush1.bf16.xpose.msra.mxu0 0
        %1257 = vmatprep.subr.bf16.mxu0 0
        %1258 = vmatpush1.bf16.xpose.msra.mxu0 0
        %1259 = vmatprep.subr.bf16.mxu0 0
        %1260 = vmatpush1.bf16.xpose.msra.mxu0 0
        %1261 = vmatprep.subr.bf16.mxu0 0
        %1262 = vmatpush1.bf16.xpose.msra.mxu0 0
        %1263 = vmatprep.subr.bf16.mxu0 0
        %1264 = vmatpush1.bf16.xpose.msra.mxu0 0
        %1265 = vmatprep.subr.bf16.mxu0 0
        %1266 = vmatpush1.bf16.xpose.msra.mxu0 0
        %1267 = vmatprep.mubr.bf16.mxu0 0
        %1268 = vmatmul.mubr.bf16.gmra.mrb[0].mxu0 %v1230
        %v1269 = vpop.f32.mrb[0].mxu0
        %v1270 = vadd.f32 0.0, %v1269
        %v1271 = vpop.f32.mrb[0].mxu0
        %v1272 = vpop.f32.mrb[0].mxu0
        %v1273 = vpop.f32.mrb[0].mxu0
        %1274 = vdwg.mxu0
        %v1276 = vsel %vm1228, %v1165, 0
        %v1279 = vsel %vm1228, %v1193, 0
        %1281 = vmatprep.subr.bf16.mxu0 0
        %1282 = vmatpush1.bf16.xpose.msra.mxu0 %v1279
        %1283 = vmatprep.subr.bf16.mxu0 0
        %1284 = vmatpush1.bf16.xpose.msra.mxu0 0
        %1285 = vmatprep.subr.bf16.mxu0 0
        %1286 = vmatpush1.bf16.xpose.msra.mxu0 0
        %1287 = vmatprep.subr.bf16.mxu0 0
        %1288 = vmatpush1.bf16.xpose.msra.mxu0 0
        %1289 = vmatprep.subr.bf16.mxu0 0
        %1290 = vmatpush1.bf16.xpose.msra.mxu0 0
        %1291 = vmatprep.subr.bf16.mxu0 0
        %1292 = vmatpush1.bf16.xpose.msra.mxu0 0
        %1293 = vmatprep.subr.bf16.mxu0 0
        %1294 = vmatpush1.bf16.xpose.msra.mxu0 0
        %1295 = vmatprep.subr.bf16.mxu0 0
        %1296 = vmatpush1.bf16.xpose.msra.mxu0 0
        %1297 = vmatprep.subr.bf16.mxu0 0
        %1298 = vmatpush1.bf16.xpose.msra.mxu0 0
        %1299 = vmatprep.subr.bf16.mxu0 0
        %1300 = vmatpush1.bf16.xpose.msra.mxu0 0
        %1301 = vmatprep.subr.bf16.mxu0 0
        %1302 = vmatpush1.bf16.xpose.msra.mxu0 0
        %1303 = vmatprep.subr.bf16.mxu0 0
        %1304 = vmatpush1.bf16.xpose.msra.mxu0 0
        %1305 = vmatprep.subr.bf16.mxu0 0
        %1306 = vmatpush1.bf16.xpose.msra.mxu0 0
        %1307 = vmatprep.subr.bf16.mxu0 0
        %1308 = vmatpush1.bf16.xpose.msra.mxu0 0
        %1309 = vmatprep.subr.bf16.mxu0 0
        %1310 = vmatpush1.bf16.xpose.msra.mxu0 0
        %1311 = vmatprep.subr.bf16.mxu0 0
        %1312 = vmatpush1.bf16.xpose.msra.mxu0 0
        %1313 = vmatprep.mubr.bf16.mxu0 0
        %1314 = vmatmul.mubr.bf16.gmra.mrb[0].mxu0 %v1276
        %v1315 = vpop.f32.mrb[0].mxu0
        %v1316 = vadd.f32 0.0, %v1315
        %v1317 = vpop.f32.mrb[0].mxu0
        %v1318 = vpop.f32.mrb[0].mxu0
        %v1319 = vpop.f32.mrb[0].mxu0
        %1320 = vdwg.mxu0
        %v1322 = vsel %vm1228, %v1166, 0
        %v1325 = vsel %vm1228, %v1194, 0
        %1327 = vmatprep.subr.bf16.mxu0 0
        %1328 = vmatpush1.bf16.xpose.msra.mxu0 %v1325
        %1329 = vmatprep.subr.bf16.mxu0 0
        %1330 = vmatpush1.bf16.xpose.msra.mxu0 0
        %1331 = vmatprep.subr.bf16.mxu0 0
        %1332 = vmatpush1.bf16.xpose.msra.mxu0 0
        %1333 = vmatprep.subr.bf16.mxu0 0
        %1334 = vmatpush1.bf16.xpose.msra.mxu0 0
        %1335 = vmatprep.subr.bf16.mxu0 0
        %1336 = vmatpush1.bf16.xpose.msra.mxu0 0
        %1337 = vmatprep.subr.bf16.mxu0 0
        %1338 = vmatpush1.bf16.xpose.msra.mxu0 0
        %1339 = vmatprep.subr.bf16.mxu0 0
        %1340 = vmatpush1.bf16.xpose.msra.mxu0 0
        %1341 = vmatprep.subr.bf16.mxu0 0
        %1342 = vmatpush1.bf16.xpose.msra.mxu0 0
        %1343 = vmatprep.subr.bf16.mxu0 0
        %1344 = vmatpush1.bf16.xpose.msra.mxu0 0
        %1345 = vmatprep.subr.bf16.mxu0 0
        %1346 = vmatpush1.bf16.xpose.msra.mxu0 0
        %1347 = vmatprep.subr.bf16.mxu0 0
        %1348 = vmatpush1.bf16.xpose.msra.mxu0 0
        %1349 = vmatprep.subr.bf16.mxu0 0
        %1350 = vmatpush1.bf16.xpose.msra.mxu0 0
        %1351 = vmatprep.subr.bf16.mxu0 0
        %1352 = vmatpush1.bf16.xpose.msra.mxu0 0
        %1353 = vmatprep.subr.bf16.mxu0 0
        %1354 = vmatpush1.bf16.xpose.msra.mxu0 0
        %1355 = vmatprep.subr.bf16.mxu0 0
        %1356 = vmatpush1.bf16.xpose.msra.mxu0 0
        %1357 = vmatprep.subr.bf16.mxu0 0
        %1358 = vmatpush1.bf16.xpose.msra.mxu0 0
        %1359 = vmatprep.mubr.bf16.mxu0 0
        %1360 = vmatmul.mubr.bf16.gmra.mrb[0].mxu0 %v1322
        %v1361 = vpop.f32.mrb[0].mxu0
        %v1362 = vadd.f32 0.0, %v1361
        %v1363 = vpop.f32.mrb[0].mxu0
        %v1364 = vpop.f32.mrb[0].mxu0
        %v1365 = vpop.f32.mrb[0].mxu0
        %1366 = vdwg.mxu0
        %v1368 = vsel %vm1228, %v1167, 0
        %v1371 = vsel %vm1228, %v1195, 0
        %1373 = vmatprep.subr.bf16.mxu0 0
        %1374 = vmatpush1.bf16.xpose.msra.mxu0 %v1371
        %1375 = vmatprep.subr.bf16.mxu0 0
        %1376 = vmatpush1.bf16.xpose.msra.mxu0 0
        %1377 = vmatprep.subr.bf16.mxu0 0
        %1378 = vmatpush1.bf16.xpose.msra.mxu0 0
        %1379 = vmatprep.subr.bf16.mxu0 0
        %1380 = vmatpush1.bf16.xpose.msra.mxu0 0
        %1381 = vmatprep.subr.bf16.mxu0 0
        %1382 = vmatpush1.bf16.xpose.msra.mxu0 0
        %1383 = vmatprep.subr.bf16.mxu0 0
        %1384 = vmatpush1.bf16.xpose.msra.mxu0 0
        %1385 = vmatprep.subr.bf16.mxu0 0
        %1386 = vmatpush1.bf16.xpose.msra.mxu0 0
        %1387 = vmatprep.subr.bf16.mxu0 0
        %1388 = vmatpush1.bf16.xpose.msra.mxu0 0
        %1389 = vmatprep.subr.bf16.mxu0 0
        %1390 = vmatpush1.bf16.xpose.msra.mxu0 0
        %1391 = vmatprep.subr.bf16.mxu0 0
        %1392 = vmatpush1.bf16.xpose.msra.mxu0 0
        %1393 = vmatprep.subr.bf16.mxu0 0
        %1394 = vmatpush1.bf16.xpose.msra.mxu0 0
        %1395 = vmatprep.subr.bf16.mxu0 0
        %1396 = vmatpush1.bf16.xpose.msra.mxu0 0
        %1397 = vmatprep.subr.bf16.mxu0 0
        %1398 = vmatpush1.bf16.xpose.msra.mxu0 0
        %1399 = vmatprep.subr.bf16.mxu0 0
        %1400 = vmatpush1.bf16.xpose.msra.mxu0 0
        %1401 = vmatprep.subr.bf16.mxu0 0
        %1402 = vmatpush1.bf16.xpose.msra.mxu0 0
        %1403 = vmatprep.subr.bf16.mxu0 0
        %1404 = vmatpush1.bf16.xpose.msra.mxu0 0
        %1405 = vmatprep.mubr.bf16.mxu0 0
        %1406 = vmatmul.mubr.bf16.gmra.mrb[0].mxu0 %v1368
        %v1407 = vpop.f32.mrb[0].mxu0
        %v1408 = vadd.f32 0.0, %v1407
        %v1409 = vpop.f32.mrb[0].mxu0
        %v1410 = vpop.f32.mrb[0].mxu0
        %v1411 = vpop.f32.mrb[0].mxu0
        %1412 = vdwg.mxu0
        %v1414 = vsel %vm1228, %v1168, 0
        %v1417 = vsel %vm1228, %v1196, 0
        %1419 = vmatprep.subr.bf16.mxu0 0
        %1420 = vmatpush1.bf16.xpose.msra.mxu0 %v1417
        %1421 = vmatprep.subr.bf16.mxu0 0
        %1422 = vmatpush1.bf16.xpose.msra.mxu0 0
        %1423 = vmatprep.subr.bf16.mxu0 0
        %1424 = vmatpush1.bf16.xpose.msra.mxu0 0
        %1425 = vmatprep.subr.bf16.mxu0 0
        %1426 = vmatpush1.bf16.xpose.msra.mxu0 0
        %1427 = vmatprep.subr.bf16.mxu0 0
        %1428 = vmatpush1.bf16.xpose.msra.mxu0 0
        %1429 = vmatprep.subr.bf16.mxu0 0
        %1430 = vmatpush1.bf16.xpose.msra.mxu0 0
        %1431 = vmatprep.subr.bf16.mxu0 0
        %1432 = vmatpush1.bf16.xpose.msra.mxu0 0
        %1433 = vmatprep.subr.bf16.mxu0 0
        %1434 = vmatpush1.bf16.xpose.msra.mxu0 0
        %1435 = vmatprep.subr.bf16.mxu0 0
        %1436 = vmatpush1.bf16.xpose.msra.mxu0 0
        %1437 = vmatprep.subr.bf16.mxu0 0
        %1438 = vmatpush1.bf16.xpose.msra.mxu0 0
        %1439 = vmatprep.subr.bf16.mxu0 0
        %1440 = vmatpush1.bf16.xpose.msra.mxu0 0
        %1441 = vmatprep.subr.bf16.mxu0 0
        %1442 = vmatpush1.bf16.xpose.msra.mxu0 0
        %1443 = vmatprep.subr.bf16.mxu0 0
        %1444 = vmatpush1.bf16.xpose.msra.mxu0 0
        %1445 = vmatprep.subr.bf16.mxu0 0
        %1446 = vmatpush1.bf16.xpose.msra.mxu0 0
        %1447 = vmatprep.subr.bf16.mxu0 0
        %1448 = vmatpush1.bf16.xpose.msra.mxu0 0
        %1449 = vmatprep.subr.bf16.mxu0 0
        %1450 = vmatpush1.bf16.xpose.msra.mxu0 0
        %1451 = vmatprep.mubr.bf16.mxu0 0
        %1452 = vmatmul.mubr.bf16.gmra.mrb[0].mxu0 %v1414
        %v1453 = vpop.f32.mrb[0].mxu0
        %v1454 = vadd.f32 0.0, %v1453
        %v1455 = vpop.f32.mrb[0].mxu0
        %v1456 = vpop.f32.mrb[0].mxu0
        %v1457 = vpop.f32.mrb[0].mxu0
        %1458 = vdwg.mxu0
        %v1460 = vsel %vm1228, %v1169, 0
        %v1463 = vsel %vm1228, %v1197, 0
        %1465 = vmatprep.subr.bf16.mxu0 0
        %1466 = vmatpush1.bf16.xpose.msra.mxu0 %v1463
        %1467 = vmatprep.subr.bf16.mxu0 0
        %1468 = vmatpush1.bf16.xpose.msra.mxu0 0
        %1469 = vmatprep.subr.bf16.mxu0 0
        %1470 = vmatpush1.bf16.xpose.msra.mxu0 0
        %1471 = vmatprep.subr.bf16.mxu0 0
        %1472 = vmatpush1.bf16.xpose.msra.mxu0 0
        %1473 = vmatprep.subr.bf16.mxu0 0
        %1474 = vmatpush1.bf16.xpose.msra.mxu0 0
        %1475 = vmatprep.subr.bf16.mxu0 0
        %1476 = vmatpush1.bf16.xpose.msra.mxu0 0
        %1477 = vmatprep.subr.bf16.mxu0 0
        %1478 = vmatpush1.bf16.xpose.msra.mxu0 0
        %1479 = vmatprep.subr.bf16.mxu0 0
        %1480 = vmatpush1.bf16.xpose.msra.mxu0 0
        %1481 = vmatprep.subr.bf16.mxu0 0
        %1482 = vmatpush1.bf16.xpose.msra.mxu0 0
        %1483 = vmatprep.subr.bf16.mxu0 0
        %1484 = vmatpush1.bf16.xpose.msra.mxu0 0
        %1485 = vmatprep.subr.bf16.mxu0 0
        %1486 = vmatpush1.bf16.xpose.msra.mxu0 0
        %1487 = vmatprep.subr.bf16.mxu0 0
        %1488 = vmatpush1.bf16.xpose.msra.mxu0 0
        %1489 = vmatprep.subr.bf16.mxu0 0
        %1490 = vmatpush1.bf16.xpose.msra.mxu0 0
        %1491 = vmatprep.subr.bf16.mxu0 0
        %1492 = vmatpush1.bf16.xpose.msra.mxu0 0
        %1493 = vmatprep.subr.bf16.mxu0 0
        %1494 = vmatpush1.bf16.xpose.msra.mxu0 0
        %1495 = vmatprep.subr.bf16.mxu0 0
        %1496 = vmatpush1.bf16.xpose.msra.mxu0 0
        %1497 = vmatprep.mubr.bf16.mxu0 0
        %1498 = vmatmul.mubr.bf16.gmra.mrb[0].mxu0 %v1460
        %v1499 = vpop.f32.mrb[0].mxu0
        %v1500 = vadd.f32 0.0, %v1499
        %v1501 = vpop.f32.mrb[0].mxu0
        %v1502 = vpop.f32.mrb[0].mxu0
        %v1503 = vpop.f32.mrb[0].mxu0
        %1504 = vdwg.mxu0
        %v1506 = vsel %vm1228, %v1170, 0
        %v1509 = vsel %vm1228, %v1198, 0
        %1511 = vmatprep.subr.bf16.mxu0 0
        %1512 = vmatpush1.bf16.xpose.msra.mxu0 %v1509
        %1513 = vmatprep.subr.bf16.mxu0 0
        %1514 = vmatpush1.bf16.xpose.msra.mxu0 0
        %1515 = vmatprep.subr.bf16.mxu0 0
        %1516 = vmatpush1.bf16.xpose.msra.mxu0 0
        %1517 = vmatprep.subr.bf16.mxu0 0
        %1518 = vmatpush1.bf16.xpose.msra.mxu0 0
        %1519 = vmatprep.subr.bf16.mxu0 0
        %1520 = vmatpush1.bf16.xpose.msra.mxu0 0
        %1521 = vmatprep.subr.bf16.mxu0 0
        %1522 = vmatpush1.bf16.xpose.msra.mxu0 0
        %1523 = vmatprep.subr.bf16.mxu0 0
        %1524 = vmatpush1.bf16.xpose.msra.mxu0 0
        %1525 = vmatprep.subr.bf16.mxu0 0
        %1526 = vmatpush1.bf16.xpose.msra.mxu0 0
        %1527 = vmatprep.subr.bf16.mxu0 0
        %1528 = vmatpush1.bf16.xpose.msra.mxu0 0
        %1529 = vmatprep.subr.bf16.mxu0 0
        %1530 = vmatpush1.bf16.xpose.msra.mxu0 0
        %1531 = vmatprep.subr.bf16.mxu0 0
        %1532 = vmatpush1.bf16.xpose.msra.mxu0 0
        %1533 = vmatprep.subr.bf16.mxu0 0
        %1534 = vmatpush1.bf16.xpose.msra.mxu0 0
        %1535 = vmatprep.subr.bf16.mxu0 0
        %1536 = vmatpush1.bf16.xpose.msra.mxu0 0
        %1537 = vmatprep.subr.bf16.mxu0 0
        %1538 = vmatpush1.bf16.xpose.msra.mxu0 0
        %1539 = vmatprep.subr.bf16.mxu0 0
        %1540 = vmatpush1.bf16.xpose.msra.mxu0 0
        %1541 = vmatprep.subr.bf16.mxu0 0
        %1542 = vmatpush1.bf16.xpose.msra.mxu0 0
        %1543 = vmatprep.mubr.bf16.mxu0 0
        %1544 = vmatmul.mubr.bf16.gmra.mrb[0].mxu0 %v1506
        %v1545 = vpop.f32.mrb[0].mxu0
        %v1546 = vadd.f32 0.0, %v1545
        %v1547 = vpop.f32.mrb[0].mxu0
        %v1548 = vpop.f32.mrb[0].mxu0
        %v1549 = vpop.f32.mrb[0].mxu0
        %1550 = vdwg.mxu0
        %v1552 = vsel %vm1228, %v1171, 0
        %v1555 = vsel %vm1228, %v1199, 0
        %1557 = vmatprep.subr.bf16.mxu0 0
        %1558 = vmatpush1.bf16.xpose.msra.mxu0 %v1555
        %1559 = vmatprep.subr.bf16.mxu0 0
        %1560 = vmatpush1.bf16.xpose.msra.mxu0 0
        %1561 = vmatprep.subr.bf16.mxu0 0
        %1562 = vmatpush1.bf16.xpose.msra.mxu0 0
        %1563 = vmatprep.subr.bf16.mxu0 0
        %1564 = vmatpush1.bf16.xpose.msra.mxu0 0
        %1565 = vmatprep.subr.bf16.mxu0 0
        %1566 = vmatpush1.bf16.xpose.msra.mxu0 0
        %1567 = vmatprep.subr.bf16.mxu0 0
        %1568 = vmatpush1.bf16.xpose.msra.mxu0 0
        %1569 = vmatprep.subr.bf16.mxu0 0
        %1570 = vmatpush1.bf16.xpose.msra.mxu0 0
        %1571 = vmatprep.subr.bf16.mxu0 0
        %1572 = vmatpush1.bf16.xpose.msra.mxu0 0
        %1573 = vmatprep.subr.bf16.mxu0 0
        %1574 = vmatpush1.bf16.xpose.msra.mxu0 0
        %1575 = vmatprep.subr.bf16.mxu0 0
        %1576 = vmatpush1.bf16.xpose.msra.mxu0 0
        %1577 = vmatprep.subr.bf16.mxu0 0
        %1578 = vmatpush1.bf16.xpose.msra.mxu0 0
        %1579 = vmatprep.subr.bf16.mxu0 0
        %1580 = vmatpush1.bf16.xpose.msra.mxu0 0
        %1581 = vmatprep.subr.bf16.mxu0 0
        %1582 = vmatpush1.bf16.xpose.msra.mxu0 0
        %1583 = vmatprep.subr.bf16.mxu0 0
        %1584 = vmatpush1.bf16.xpose.msra.mxu0 0
        %1585 = vmatprep.subr.bf16.mxu0 0
        %1586 = vmatpush1.bf16.xpose.msra.mxu0 0
        %1587 = vmatprep.subr.bf16.mxu0 0
        %1588 = vmatpush1.bf16.xpose.msra.mxu0 0
        %1589 = vmatprep.mubr.bf16.mxu0 0
        %1590 = vmatmul.mubr.bf16.gmra.mrb[0].mxu0 %v1552
        %v1591 = vpop.f32.mrb[0].mxu0
        %v1592 = vadd.f32 0.0, %v1591
        %v1593 = vpop.f32.mrb[0].mxu0
        %v1594 = vpop.f32.mrb[0].mxu0
        %v1595 = vpop.f32.mrb[0].mxu0
        %1596 = vdwg.mxu0
        %vm1597 = vcmask 64512
        %v1598 = vsel %vm1597, %v1270, -inf
        %1599 = vmax.xlane.f32.xlu0 %v1598
        %v1600 = vpop.xlane.xlu0 %1599
        %v1601 = vsel %vm1597, %v1316, -inf
        %1602 = vmax.xlane.f32.xlu0 %v1601
        %v1603 = vpop.xlane.xlu0 %1602
        %v1604 = vsel %vm1597, %v1362, -inf
        %1605 = vmax.xlane.f32.xlu0 %v1604
        %v1606 = vpop.xlane.xlu0 %1605
        %v1607 = vsel %vm1597, %v1408, -inf
        %1608 = vmax.xlane.f32.xlu0 %v1607
        %v1609 = vpop.xlane.xlu0 %1608
        %v1610 = vsel %vm1597, %v1454, -inf
        %1611 = vmax.xlane.f32.xlu0 %v1610
        %v1612 = vpop.xlane.xlu0 %1611
        %v1613 = vsel %vm1597, %v1500, -inf
        %1614 = vmax.xlane.f32.xlu0 %v1613
        %v1615 = vpop.xlane.xlu0 %1614
        %v1616 = vsel %vm1597, %v1546, -inf
        %1617 = vmax.xlane.f32.xlu0 %v1616
        %v1618 = vpop.xlane.xlu0 %1617
        %v1619 = vsel %vm1597, %v1592, -inf
        %1620 = vmax.xlane.f32.xlu0 %v1619
        %v1621 = vpop.xlane.xlu0 %1620
        %v1622 = vsub.f32 %v1270, %v1600
        %v1623 = vsub.f32 %v1316, %v1603
        %v1624 = vsub.f32 %v1362, %v1606
        %v1625 = vsub.f32 %v1408, %v1609
        %v1626 = vsub.f32 %v1454, %v1612
        %v1627 = vsub.f32 %v1500, %v1615
        %v1628 = vsub.f32 %v1546, %v1618
        %v1629 = vsub.f32 %v1592, %v1621
        %v1630 = vmul.f32 %v1622, 1.442695
        %v1631 = vpow.pop %v1630
        %v1632 = vmul.f32 %v1623, 1.442695
        %v1633 = vpow.pop %v1632
        %v1634 = vmul.f32 %v1624, 1.442695
        %v1635 = vpow.pop %v1634
        %v1636 = vmul.f32 %v1625, 1.442695
        %v1637 = vpow.pop %v1636
        %v1638 = vmul.f32 %v1626, 1.442695
        %v1639 = vpow.pop %v1638
        %v1640 = vmul.f32 %v1627, 1.442695
        %v1641 = vpow.pop %v1640
        %v1642 = vmul.f32 %v1628, 1.442695
        %v1643 = vpow.pop %v1642
        %v1644 = vmul.f32 %v1629, 1.442695
        %v1645 = vpow.pop %v1644
        %v1646 = vsel %vm1597, %v1631, 0.0
        %1647 = vadd.xlane.f32.xlu0 %v1646
        %v1648 = vpop.xlane.xlu0 %1647
        %v1649 = vsel %vm1597, %v1633, 0.0
        %1650 = vadd.xlane.f32.xlu0 %v1649
        %v1651 = vpop.xlane.xlu0 %1650
        %v1652 = vsel %vm1597, %v1635, 0.0
        %1653 = vadd.xlane.f32.xlu0 %v1652
        %v1654 = vpop.xlane.xlu0 %1653
        %v1655 = vsel %vm1597, %v1637, 0.0
        %1656 = vadd.xlane.f32.xlu0 %v1655
        %v1657 = vpop.xlane.xlu0 %1656
        %v1658 = vsel %vm1597, %v1639, 0.0
        %1659 = vadd.xlane.f32.xlu0 %v1658
        %v1660 = vpop.xlane.xlu0 %1659
        %v1661 = vsel %vm1597, %v1641, 0.0
        %1662 = vadd.xlane.f32.xlu0 %v1661
        %v1663 = vpop.xlane.xlu0 %1662
        %v1664 = vsel %vm1597, %v1643, 0.0
        %1665 = vadd.xlane.f32.xlu0 %v1664
        %v1666 = vpop.xlane.xlu0 %1665
        %v1667 = vsel %vm1597, %v1645, 0.0
        %1668 = vadd.xlane.f32.xlu0 %v1667
        %v1669 = vpop.xlane.xlu0 %1668
        %v1670 = vrcp.pop %v1648
        %v1671 = vrcp.pop %v1651
        %v1672 = vrcp.pop %v1654
        %v1673 = vrcp.pop %v1657
        %v1674 = vrcp.pop %v1660
        %v1675 = vrcp.pop %v1663
        %v1676 = vrcp.pop %v1666
        %v1677 = vrcp.pop %v1669
        %v1678 = vmul.f32 %v1631, %v1670
        %v1679 = vmul.f32 %v1633, %v1671
        %v1680 = vmul.f32 %v1635, %v1672
        %v1681 = vmul.f32 %v1637, %v1673
        %v1682 = vmul.f32 %v1639, %v1674
        %v1683 = vmul.f32 %v1641, %v1675
        %v1684 = vmul.f32 %v1643, %v1676
        %v1685 = vmul.f32 %v1645, %v1677
        %v1686 = vpack.c.bf16 %v1678, %v1678
        %v1687 = vpack.c.bf16 %v1679, %v1679
        %v1688 = vpack.c.bf16 %v1680, %v1680
        %v1689 = vpack.c.bf16 %v1681, %v1681
        %v1690 = vpack.c.bf16 %v1682, %v1682
        %v1691 = vpack.c.bf16 %v1683, %v1683
        %v1692 = vpack.c.bf16 %v1684, %v1684
        %v1693 = vpack.c.bf16 %v1685, %v1685
        %v1695 = vsel %vm1597, %v1686, 0
        %vm1697 = vcmask 1043456
        %v1699 = vsel %vm1697, %v1220, 0
        %1701 = vmatprep.subr.bf16.mxu0 0
        %1702 = vmatpush1.bf16.msra.mxu0 %v1699
        %1703 = vmatprep.subr.bf16.mxu0 0
        %1704 = vmatpush1.bf16.msra.mxu0 0
        %1705 = vmatprep.subr.bf16.mxu0 0
        %1706 = vmatpush1.bf16.msra.mxu0 0
        %1707 = vmatprep.subr.bf16.mxu0 0
        %1708 = vmatpush1.bf16.msra.mxu0 0
        %1709 = vmatprep.subr.bf16.mxu0 0
        %1710 = vmatpush1.bf16.msra.mxu0 0
        %1711 = vmatprep.subr.bf16.mxu0 0
        %1712 = vmatpush1.bf16.msra.mxu0 0
        %1713 = vmatprep.subr.bf16.mxu0 0
        %1714 = vmatpush1.bf16.msra.mxu0 0
        %1715 = vmatprep.subr.bf16.mxu0 0
        %1716 = vmatpush1.bf16.msra.mxu0 0
        %1717 = vmatprep.subr.bf16.mxu0 0
        %1718 = vmatpush1.bf16.msra.mxu0 0
        %1719 = vmatprep.subr.bf16.mxu0 0
        %1720 = vmatpush1.bf16.msra.mxu0 0
        %1721 = vmatprep.subr.bf16.mxu0 0
        %1722 = vmatpush1.bf16.msra.mxu0 0
        %1723 = vmatprep.subr.bf16.mxu0 0
        %1724 = vmatpush1.bf16.msra.mxu0 0
        %1725 = vmatprep.subr.bf16.mxu0 0
        %1726 = vmatpush1.bf16.msra.mxu0 0
        %1727 = vmatprep.subr.bf16.mxu0 0
        %1728 = vmatpush1.bf16.msra.mxu0 0
        %1729 = vmatprep.subr.bf16.mxu0 0
        %1730 = vmatpush1.bf16.msra.mxu0 0
        %1731 = vmatprep.subr.bf16.mxu0 0
        %1732 = vmatpush1.bf16.msra.mxu0 0
        %1733 = vmatprep.mubr.bf16.mxu0 0
        %1734 = vmatmul.mubr.bf16.gmra.mrb[0].mxu0 %v1695
        %v1735 = vpop.f32.mrb[0].mxu0
        %v1736 = vadd.f32 0.0, %v1735
        %v1737 = vpop.f32.mrb[0].mxu0
        %v1738 = vpop.f32.mrb[0].mxu0
        %v1739 = vpop.f32.mrb[0].mxu0
        %1740 = vdwg.mxu0
        %v1742 = vsel %vm1597, %v1687, 0
        %v1745 = vsel %vm1697, %v1221, 0
        %1747 = vmatprep.subr.bf16.mxu0 0
        %1748 = vmatpush1.bf16.msra.mxu0 %v1745
        %1749 = vmatprep.subr.bf16.mxu0 0
        %1750 = vmatpush1.bf16.msra.mxu0 0
        %1751 = vmatprep.subr.bf16.mxu0 0
        %1752 = vmatpush1.bf16.msra.mxu0 0
        %1753 = vmatprep.subr.bf16.mxu0 0
        %1754 = vmatpush1.bf16.msra.mxu0 0
        %1755 = vmatprep.subr.bf16.mxu0 0
        %1756 = vmatpush1.bf16.msra.mxu0 0
        %1757 = vmatprep.subr.bf16.mxu0 0
        %1758 = vmatpush1.bf16.msra.mxu0 0
        %1759 = vmatprep.subr.bf16.mxu0 0
        %1760 = vmatpush1.bf16.msra.mxu0 0
        %1761 = vmatprep.subr.bf16.mxu0 0
        %1762 = vmatpush1.bf16.msra.mxu0 0
        %1763 = vmatprep.subr.bf16.mxu0 0
        %1764 = vmatpush1.bf16.msra.mxu0 0
        %1765 = vmatprep.subr.bf16.mxu0 0
        %1766 = vmatpush1.bf16.msra.mxu0 0
        %1767 = vmatprep.subr.bf16.mxu0 0
        %1768 = vmatpush1.bf16.msra.mxu0 0
        %1769 = vmatprep.subr.bf16.mxu0 0
        %1770 = vmatpush1.bf16.msra.mxu0 0
        %1771 = vmatprep.subr.bf16.mxu0 0
        %1772 = vmatpush1.bf16.msra.mxu0 0
        %1773 = vmatprep.subr.bf16.mxu0 0
        %1774 = vmatpush1.bf16.msra.mxu0 0
        %1775 = vmatprep.subr.bf16.mxu0 0
        %1776 = vmatpush1.bf16.msra.mxu0 0
        %1777 = vmatprep.subr.bf16.mxu0 0
        %1778 = vmatpush1.bf16.msra.mxu0 0
        %1779 = vmatprep.mubr.bf16.mxu0 0
        %1780 = vmatmul.mubr.bf16.gmra.mrb[0].mxu0 %v1742
        %v1781 = vpop.f32.mrb[0].mxu0
        %v1782 = vadd.f32 0.0, %v1781
        %v1783 = vpop.f32.mrb[0].mxu0
        %v1784 = vpop.f32.mrb[0].mxu0
        %v1785 = vpop.f32.mrb[0].mxu0
        %1786 = vdwg.mxu0
        %v1788 = vsel %vm1597, %v1688, 0
        %v1791 = vsel %vm1697, %v1222, 0
        %1793 = vmatprep.subr.bf16.mxu0 0
        %1794 = vmatpush1.bf16.msra.mxu0 %v1791
        %1795 = vmatprep.subr.bf16.mxu0 0
        %1796 = vmatpush1.bf16.msra.mxu0 0
        %1797 = vmatprep.subr.bf16.mxu0 0
        %1798 = vmatpush1.bf16.msra.mxu0 0
        %1799 = vmatprep.subr.bf16.mxu0 0
        %1800 = vmatpush1.bf16.msra.mxu0 0
        %1801 = vmatprep.subr.bf16.mxu0 0
        %1802 = vmatpush1.bf16.msra.mxu0 0
        %1803 = vmatprep.subr.bf16.mxu0 0
        %1804 = vmatpush1.bf16.msra.mxu0 0
        %1805 = vmatprep.subr.bf16.mxu0 0
        %1806 = vmatpush1.bf16.msra.mxu0 0
        %1807 = vmatprep.subr.bf16.mxu0 0
        %1808 = vmatpush1.bf16.msra.mxu0 0
        %1809 = vmatprep.subr.bf16.mxu0 0
        %1810 = vmatpush1.bf16.msra.mxu0 0
        %1811 = vmatprep.subr.bf16.mxu0 0
        %1812 = vmatpush1.bf16.msra.mxu0 0
        %1813 = vmatprep.subr.bf16.mxu0 0
        %1814 = vmatpush1.bf16.msra.mxu0 0
        %1815 = vmatprep.subr.bf16.mxu0 0
        %1816 = vmatpush1.bf16.msra.mxu0 0
        %1817 = vmatprep.subr.bf16.mxu0 0
        %1818 = vmatpush1.bf16.msra.mxu0 0
        %1819 = vmatprep.subr.bf16.mxu0 0
        %1820 = vmatpush1.bf16.msra.mxu0 0
        %1821 = vmatprep.subr.bf16.mxu0 0
        %1822 = vmatpush1.bf16.msra.mxu0 0
        %1823 = vmatprep.subr.bf16.mxu0 0
        %1824 = vmatpush1.bf16.msra.mxu0 0
        %1825 = vmatprep.mubr.bf16.mxu0 0
        %1826 = vmatmul.mubr.bf16.gmra.mrb[0].mxu0 %v1788
        %v1827 = vpop.f32.mrb[0].mxu0
        %v1828 = vadd.f32 0.0, %v1827
        %v1829 = vpop.f32.mrb[0].mxu0
        %v1830 = vpop.f32.mrb[0].mxu0
        %v1831 = vpop.f32.mrb[0].mxu0
        %1832 = vdwg.mxu0
        %v1834 = vsel %vm1597, %v1689, 0
        %v1837 = vsel %vm1697, %v1223, 0
        %1839 = vmatprep.subr.bf16.mxu0 0
        %1840 = vmatpush1.bf16.msra.mxu0 %v1837
        %1841 = vmatprep.subr.bf16.mxu0 0
        %1842 = vmatpush1.bf16.msra.mxu0 0
        %1843 = vmatprep.subr.bf16.mxu0 0
        %1844 = vmatpush1.bf16.msra.mxu0 0
        %1845 = vmatprep.subr.bf16.mxu0 0
        %1846 = vmatpush1.bf16.msra.mxu0 0
        %1847 = vmatprep.subr.bf16.mxu0 0
        %1848 = vmatpush1.bf16.msra.mxu0 0
        %1849 = vmatprep.subr.bf16.mxu0 0
        %1850 = vmatpush1.bf16.msra.mxu0 0
        %1851 = vmatprep.subr.bf16.mxu0 0
        %1852 = vmatpush1.bf16.msra.mxu0 0
        %1853 = vmatprep.subr.bf16.mxu0 0
        %1854 = vmatpush1.bf16.msra.mxu0 0
        %1855 = vmatprep.subr.bf16.mxu0 0
        %1856 = vmatpush1.bf16.msra.mxu0 0
        %1857 = vmatprep.subr.bf16.mxu0 0
        %1858 = vmatpush1.bf16.msra.mxu0 0
        %1859 = vmatprep.subr.bf16.mxu0 0
        %1860 = vmatpush1.bf16.msra.mxu0 0
        %1861 = vmatprep.subr.bf16.mxu0 0
        %1862 = vmatpush1.bf16.msra.mxu0 0
        %1863 = vmatprep.subr.bf16.mxu0 0
        %1864 = vmatpush1.bf16.msra.mxu0 0
        %1865 = vmatprep.subr.bf16.mxu0 0
        %1866 = vmatpush1.bf16.msra.mxu0 0
        %1867 = vmatprep.subr.bf16.mxu0 0
        %1868 = vmatpush1.bf16.msra.mxu0 0
        %1869 = vmatprep.subr.bf16.mxu0 0
        %1870 = vmatpush1.bf16.msra.mxu0 0
        %1871 = vmatprep.mubr.bf16.mxu0 0
        %1872 = vmatmul.mubr.bf16.gmra.mrb[0].mxu0 %v1834
        %v1873 = vpop.f32.mrb[0].mxu0
        %v1874 = vadd.f32 0.0, %v1873
        %v1875 = vpop.f32.mrb[0].mxu0
        %v1876 = vpop.f32.mrb[0].mxu0
        %v1877 = vpop.f32.mrb[0].mxu0
        %1878 = vdwg.mxu0
        %v1880 = vsel %vm1597, %v1690, 0
        %v1883 = vsel %vm1697, %v1224, 0
        %1885 = vmatprep.subr.bf16.mxu0 0
        %1886 = vmatpush1.bf16.msra.mxu0 %v1883
        %1887 = vmatprep.subr.bf16.mxu0 0
        %1888 = vmatpush1.bf16.msra.mxu0 0
        %1889 = vmatprep.subr.bf16.mxu0 0
        %1890 = vmatpush1.bf16.msra.mxu0 0
        %1891 = vmatprep.subr.bf16.mxu0 0
        %1892 = vmatpush1.bf16.msra.mxu0 0
        %1893 = vmatprep.subr.bf16.mxu0 0
        %1894 = vmatpush1.bf16.msra.mxu0 0
        %1895 = vmatprep.subr.bf16.mxu0 0
        %1896 = vmatpush1.bf16.msra.mxu0 0
        %1897 = vmatprep.subr.bf16.mxu0 0
        %1898 = vmatpush1.bf16.msra.mxu0 0
        %1899 = vmatprep.subr.bf16.mxu0 0
        %1900 = vmatpush1.bf16.msra.mxu0 0
        %1901 = vmatprep.subr.bf16.mxu0 0
        %1902 = vmatpush1.bf16.msra.mxu0 0
        %1903 = vmatprep.subr.bf16.mxu0 0
        %1904 = vmatpush1.bf16.msra.mxu0 0
        %1905 = vmatprep.subr.bf16.mxu0 0
        %1906 = vmatpush1.bf16.msra.mxu0 0
        %1907 = vmatprep.subr.bf16.mxu0 0
        %1908 = vmatpush1.bf16.msra.mxu0 0
        %1909 = vmatprep.subr.bf16.mxu0 0
        %1910 = vmatpush1.bf16.msra.mxu0 0
        %1911 = vmatprep.subr.bf16.mxu0 0
        %1912 = vmatpush1.bf16.msra.mxu0 0
        %1913 = vmatprep.subr.bf16.mxu0 0
        %1914 = vmatpush1.bf16.msra.mxu0 0
        %1915 = vmatprep.subr.bf16.mxu0 0
        %1916 = vmatpush1.bf16.msra.mxu0 0
        %1917 = vmatprep.mubr.bf16.mxu0 0
        %1918 = vmatmul.mubr.bf16.gmra.mrb[0].mxu0 %v1880
        %v1919 = vpop.f32.mrb[0].mxu0
        %v1920 = vadd.f32 0.0, %v1919
        %v1921 = vpop.f32.mrb[0].mxu0
        %v1922 = vpop.f32.mrb[0].mxu0
        %v1923 = vpop.f32.mrb[0].mxu0
        %1924 = vdwg.mxu0
        %v1926 = vsel %vm1597, %v1691, 0
        %v1929 = vsel %vm1697, %v1225, 0
        %1931 = vmatprep.subr.bf16.mxu0 0
        %1932 = vmatpush1.bf16.msra.mxu0 %v1929
        %1933 = vmatprep.subr.bf16.mxu0 0
        %1934 = vmatpush1.bf16.msra.mxu0 0
        %1935 = vmatprep.subr.bf16.mxu0 0
        %1936 = vmatpush1.bf16.msra.mxu0 0
        %1937 = vmatprep.subr.bf16.mxu0 0
        %1938 = vmatpush1.bf16.msra.mxu0 0
        %1939 = vmatprep.subr.bf16.mxu0 0
        %1940 = vmatpush1.bf16.msra.mxu0 0
        %1941 = vmatprep.subr.bf16.mxu0 0
        %1942 = vmatpush1.bf16.msra.mxu0 0
        %1943 = vmatprep.subr.bf16.mxu0 0
        %1944 = vmatpush1.bf16.msra.mxu0 0
        %1945 = vmatprep.subr.bf16.mxu0 0
        %1946 = vmatpush1.bf16.msra.mxu0 0
        %1947 = vmatprep.subr.bf16.mxu0 0
        %1948 = vmatpush1.bf16.msra.mxu0 0
        %1949 = vmatprep.subr.bf16.mxu0 0
        %1950 = vmatpush1.bf16.msra.mxu0 0
        %1951 = vmatprep.subr.bf16.mxu0 0
        %1952 = vmatpush1.bf16.msra.mxu0 0
        %1953 = vmatprep.subr.bf16.mxu0 0
        %1954 = vmatpush1.bf16.msra.mxu0 0
        %1955 = vmatprep.subr.bf16.mxu0 0
        %1956 = vmatpush1.bf16.msra.mxu0 0
        %1957 = vmatprep.subr.bf16.mxu0 0
        %1958 = vmatpush1.bf16.msra.mxu0 0
        %1959 = vmatprep.subr.bf16.mxu0 0
        %1960 = vmatpush1.bf16.msra.mxu0 0
        %1961 = vmatprep.subr.bf16.mxu0 0
        %1962 = vmatpush1.bf16.msra.mxu0 0
        %1963 = vmatprep.mubr.bf16.mxu0 0
        %1964 = vmatmul.mubr.bf16.gmra.mrb[0].mxu0 %v1926
        %v1965 = vpop.f32.mrb[0].mxu0
        %v1966 = vadd.f32 0.0, %v1965
        %v1967 = vpop.f32.mrb[0].mxu0
        %v1968 = vpop.f32.mrb[0].mxu0
        %v1969 = vpop.f32.mrb[0].mxu0
        %1970 = vdwg.mxu0
        %v1972 = vsel %vm1597, %v1692, 0
        %v1975 = vsel %vm1697, %v1226, 0
        %1977 = vmatprep.subr.bf16.mxu0 0
        %1978 = vmatpush1.bf16.msra.mxu0 %v1975
        %1979 = vmatprep.subr.bf16.mxu0 0
        %1980 = vmatpush1.bf16.msra.mxu0 0
        %1981 = vmatprep.subr.bf16.mxu0 0
        %1982 = vmatpush1.bf16.msra.mxu0 0
        %1983 = vmatprep.subr.bf16.mxu0 0
        %1984 = vmatpush1.bf16.msra.mxu0 0
        %1985 = vmatprep.subr.bf16.mxu0 0
        %1986 = vmatpush1.bf16.msra.mxu0 0
        %1987 = vmatprep.subr.bf16.mxu0 0
        %1988 = vmatpush1.bf16.msra.mxu0 0
        %1989 = vmatprep.subr.bf16.mxu0 0
        %1990 = vmatpush1.bf16.msra.mxu0 0
        %1991 = vmatprep.subr.bf16.mxu0 0
        %1992 = vmatpush1.bf16.msra.mxu0 0
        %1993 = vmatprep.subr.bf16.mxu0 0
        %1994 = vmatpush1.bf16.msra.mxu0 0
        %1995 = vmatprep.subr.bf16.mxu0 0
        %1996 = vmatpush1.bf16.msra.mxu0 0
        %1997 = vmatprep.subr.bf16.mxu0 0
        %1998 = vmatpush1.bf16.msra.mxu0 0
        %1999 = vmatprep.subr.bf16.mxu0 0
        %2000 = vmatpush1.bf16.msra.mxu0 0
        %2001 = vmatprep.subr.bf16.mxu0 0
        %2002 = vmatpush1.bf16.msra.mxu0 0
        %2003 = vmatprep.subr.bf16.mxu0 0
        %2004 = vmatpush1.bf16.msra.mxu0 0
        %2005 = vmatprep.subr.bf16.mxu0 0
        %2006 = vmatpush1.bf16.msra.mxu0 0
        %2007 = vmatprep.subr.bf16.mxu0 0
        %2008 = vmatpush1.bf16.msra.mxu0 0
        %2009 = vmatprep.mubr.bf16.mxu0 0
        %2010 = vmatmul.mubr.bf16.gmra.mrb[0].mxu0 %v1972
        %v2011 = vpop.f32.mrb[0].mxu0
        %v2012 = vadd.f32 0.0, %v2011
        %v2013 = vpop.f32.mrb[0].mxu0
        %v2014 = vpop.f32.mrb[0].mxu0
        %v2015 = vpop.f32.mrb[0].mxu0
        %2016 = vdwg.mxu0
        %v2018 = vsel %vm1597, %v1693, 0
        %v2021 = vsel %vm1697, %v1227, 0
        %2023 = vmatprep.subr.bf16.mxu0 0
        %2024 = vmatpush1.bf16.msra.mxu0 %v2021
        %2025 = vmatprep.subr.bf16.mxu0 0
        %2026 = vmatpush1.bf16.msra.mxu0 0
        %2027 = vmatprep.subr.bf16.mxu0 0
        %2028 = vmatpush1.bf16.msra.mxu0 0
        %2029 = vmatprep.subr.bf16.mxu0 0
        %2030 = vmatpush1.bf16.msra.mxu0 0
        %2031 = vmatprep.subr.bf16.mxu0 0
        %2032 = vmatpush1.bf16.msra.mxu0 0
        %2033 = vmatprep.subr.bf16.mxu0 0
        %2034 = vmatpush1.bf16.msra.mxu0 0
        %2035 = vmatprep.subr.bf16.mxu0 0
        %2036 = vmatpush1.bf16.msra.mxu0 0
        %2037 = vmatprep.subr.bf16.mxu0 0
        %2038 = vmatpush1.bf16.msra.mxu0 0
        %2039 = vmatprep.subr.bf16.mxu0 0
        %2040 = vmatpush1.bf16.msra.mxu0 0
        %2041 = vmatprep.subr.bf16.mxu0 0
        %2042 = vmatpush1.bf16.msra.mxu0 0
        %2043 = vmatprep.subr.bf16.mxu0 0
        %2044 = vmatpush1.bf16.msra.mxu0 0
        %2045 = vmatprep.subr.bf16.mxu0 0
        %2046 = vmatpush1.bf16.msra.mxu0 0
        %2047 = vmatprep.subr.bf16.mxu0 0
        %2048 = vmatpush1.bf16.msra.mxu0 0
        %2049 = vmatprep.subr.bf16.mxu0 0
        %2050 = vmatpush1.bf16.msra.mxu0 0
        %2051 = vmatprep.subr.bf16.mxu0 0
        %2052 = vmatpush1.bf16.msra.mxu0 0
        %2053 = vmatprep.subr.bf16.mxu0 0
        %2054 = vmatpush1.bf16.msra.mxu0 0
        %2055 = vmatprep.mubr.bf16.mxu0 0
        %2056 = vmatmul.mubr.bf16.gmra.mrb[0].mxu0 %v2018
        %v2057 = vpop.f32.mrb[0].mxu0
        %v2058 = vadd.f32 0.0, %v2057
        %v2059 = vpop.f32.mrb[0].mxu0
        %v2060 = vpop.f32.mrb[0].mxu0
        %v2061 = vpop.f32.mrb[0].mxu0
        %2062 = vdwg.mxu0
        %2065 = vrot.lane.b32.xlu0 %v1828, 32
        %v2066 = vpop.permute.xlu0 %2065
        %2067 = vrot.lane.b32.xlu0 %v1874, 32
        %v2068 = vpop.permute.xlu0 %2067
        %2073 = vrot.lane.b32.xlu0 %v1920, 64
        %v2074 = vpop.permute.xlu0 %2073
        %2075 = vrot.lane.b32.xlu0 %v1966, 64
        %v2076 = vpop.permute.xlu0 %2075
        %2081 = vrot.lane.b32.xlu0 %v2012, 96
        %v2082 = vpop.permute.xlu0 %2081
        %2083 = vrot.lane.b32.xlu0 %v2058, 96
        %v2084 = vpop.permute.xlu0 %2083
        %v2087 = vsel %vm1228, %v1736, %v2066
        %v2088 = vsel %vm1228, %v1782, %v2068
        %vm2089 = vcmask 523264
        %v2090 = vsel %vm2089, %v2087, %v2074
        %v2091 = vsel %vm2089, %v2088, %v2076
        %vm2092 = vcmask 785408
        %v2093 = vsel %vm2092, %v2090, %v2082
        %v2094 = vsel %vm2092, %v2091, %v2084
        %v2095 = vpack.c.bf16 %v2094, %v2093
        %v2096 = vld [vmem:[%s707] sm:$0xf]
        %v2097 = vld [vmem:[%s707 + $0x4] sm:$0xf]
        %v2098 = vld [vmem:[%s707 + $0x8] sm:$0xf]
        %v2099 = vld [vmem:[%s707 + $0xc] sm:$0xf]
        %v2100 = vld [vmem:[%s707 + $0x10] sm:$0xf]
        %v2101 = vld [vmem:[%s707 + $0x14] sm:$0xf]
        %v2102 = vld [vmem:[%s707 + $0x18] sm:$0xf]
        %v2103 = vld [vmem:[%s707 + $0x1c] sm:$0xf]
        %v2104 = vld [vmem:[%s707 + $0x20] sm:$0xf]
        %v2105 = vld [vmem:[%s707 + $0x24] sm:$0xf]
        %v2106 = vld [vmem:[%s707 + $0x28] sm:$0xf]
        %v2107 = vld [vmem:[%s707 + $0x2c] sm:$0xf]
        %v2108 = vld [vmem:[%s707 + $0x30] sm:$0xf]
        %v2109 = vld [vmem:[%s707 + $0x34] sm:$0xf]
        %v2110 = vld [vmem:[%s707 + $0x38] sm:$0xf]
        %v2111 = vld [vmem:[%s707 + $0x3c] sm:$0xf]
        %v2112 = vld [vmem:[%s715] sm:$0x1]
        %v2114 = vlaneseq
        %v2115 = vshrl.u32 %v2114, 7
        %v2116 = vsub.s32 0, %v2115
        %v2117 = vrot.slane %v2112, %v2116
        %v2135 = vunpack.c.l.b16 %v2096
        %v2136 = vunpack.c.l.b16 %v2097
        %v2137 = vunpack.c.l.b16 %v2098
        %v2138 = vunpack.c.l.b16 %v2099
        %v2139 = vunpack.c.l.b16 %v2100
        %v2140 = vunpack.c.l.b16 %v2101
        %v2141 = vunpack.c.l.b16 %v2102
        %v2142 = vunpack.c.l.b16 %v2103
        %v2143 = vunpack.c.l.b16 %v2104
        %v2144 = vunpack.c.l.b16 %v2105
        %v2145 = vunpack.c.l.b16 %v2106
        %v2146 = vunpack.c.l.b16 %v2107
        %v2147 = vunpack.c.l.b16 %v2108
        %v2148 = vunpack.c.l.b16 %v2109
        %v2149 = vunpack.c.l.b16 %v2110
        %v2150 = vunpack.c.l.b16 %v2111
        %v2151 = vpack.c.b16 %v2136, %v2135
        %v2152 = vpack.c.b16 %v2138, %v2137
        %v2153 = vpack.c.b16 %v2140, %v2139
        %v2154 = vpack.c.b16 %v2142, %v2141
        %v2155 = vpack.c.b16 %v2144, %v2143
        %v2156 = vpack.c.b16 %v2146, %v2145
        %v2157 = vpack.c.b16 %v2148, %v2147
        %v2158 = vpack.c.b16 %v2150, %v2149
        %2167 = vmatprep.subr.bf16.mxu0 0
        %2168 = vmatpush1.bf16.msra.mxu0 %v2151
        %2169 = vmatprep.subr.bf16.mxu0 0
        %2170 = vmatpush1.bf16.msra.mxu0 %v2152
        %2171 = vmatprep.subr.bf16.mxu0 0
        %2172 = vmatpush1.bf16.msra.mxu0 %v2153
        %2173 = vmatprep.subr.bf16.mxu0 0
        %2174 = vmatpush1.bf16.msra.mxu0 %v2154
        %2175 = vmatprep.subr.bf16.mxu0 0
        %2176 = vmatpush1.bf16.msra.mxu0 %v2155
        %2177 = vmatprep.subr.bf16.mxu0 0
        %2178 = vmatpush1.bf16.msra.mxu0 %v2156
        %2179 = vmatprep.subr.bf16.mxu0 0
        %2180 = vmatpush1.bf16.msra.mxu0 %v2157
        %2181 = vmatprep.subr.bf16.mxu0 0
        %2182 = vmatpush1.bf16.msra.mxu0 %v2158
        %2183 = vmatprep.subr.bf16.mxu0 0
        %2184 = vmatpush1.bf16.msra.mxu0 0
        %2185 = vmatprep.subr.bf16.mxu0 0
        %2186 = vmatpush1.bf16.msra.mxu0 0
        %2187 = vmatprep.subr.bf16.mxu0 0
        %2188 = vmatpush1.bf16.msra.mxu0 0
        %2189 = vmatprep.subr.bf16.mxu0 0
        %2190 = vmatpush1.bf16.msra.mxu0 0
        %2191 = vmatprep.subr.bf16.mxu0 0
        %2192 = vmatpush1.bf16.msra.mxu0 0
        %2193 = vmatprep.subr.bf16.mxu0 0
        %2194 = vmatpush1.bf16.msra.mxu0 0
        %2195 = vmatprep.subr.bf16.mxu0 0
        %2196 = vmatpush1.bf16.msra.mxu0 0
        %2197 = vmatprep.subr.bf16.mxu0 0
        %2198 = vmatpush1.bf16.msra.mxu0 0
        %2199 = vmatprep.mubr.bf16.mxu0 0
        %2200 = vmatmul.mubr.bf16.gmra.mrb[0].mxu0 %v2095
        %v2201 = vpop.f32.mrb[0].mxu0
        %v2202 = vadd.f32 %v2117, %v2201
        %v2203 = vpop.f32.mrb[0].mxu0
        %v2204 = vpop.f32.mrb[0].mxu0
        %v2205 = vadd.f32 %v2117, %v2204
        %v2206 = vpop.f32.mrb[0].mxu0
        %2207 = vdwg.mxu0
        %v2208 = vadd.f32 %v880, %v2202
        %v2209 = vadd.f32 %v881, %v2205
        %v2210 = vld [vmem:[%s758] sm:$0x1]
        %v2211 = vld [vmem:[%s766] sm:$0x1]
        %2212 = vadd.xlane.f32.xlu0 %v2208
        %v2213 = vpop.xlane.xlu0 %2212
        %2214 = vadd.xlane.f32.xlu0 %v2209
        %v2215 = vpop.xlane.xlu0 %2214
        %v2216 = vrcp.pop 128.0
        %v2217 = vmul.f32 %v2213, %v2216
        %v2218 = vmul.f32 %v2215, %v2216
        %v2219 = vsub.f32 %v2208, %v2217
        %v2220 = vsub.f32 %v2209, %v2218
        %v2221 = vmul.f32 %v2219, %v2219
        %v2222 = vmul.f32 %v2220, %v2220
        %2223 = vadd.xlane.f32.xlu0 %v2221
        %v2224 = vpop.xlane.xlu0 %2223
        %2225 = vadd.xlane.f32.xlu0 %v2222
        %v2226 = vpop.xlane.xlu0 %2225
        %v2227 = vmul.f32 %v2224, %v2216
        %v2228 = vmul.f32 %v2226, %v2216
        %v2229 = vadd.f32 %v2227, 1e-05
        %v2230 = vadd.f32 %v2228, 1e-05
        %v2231 = vrsqrt.pop %v2229
        %v2232 = vrsqrt.pop %v2230
        %v2233 = vmul.f32 %v2219, %v2231
        %v2234 = vmul.f32 %v2220, %v2232
        %v2236 = vlaneseq
        %v2237 = vshrl.u32 %v2236, 7
        %v2238 = vsub.s32 0, %v2237
        %v2239 = vrot.slane %v2210, %v2238
        %v2241 = vmul.f32 %v2233, %v2239
        %v2242 = vmul.f32 %v2234, %v2239
        %v2244 = vlaneseq
        %v2245 = vshrl.u32 %v2244, 7
        %v2246 = vsub.s32 0, %v2245
        %v2247 = vrot.slane %v2211, %v2246
        %v2249 = vadd.f32 %v2241, %v2247
        %v2250 = vadd.f32 %v2242, %v2247
        %v2251 = vpack.c.bf16 %v2250, %v2249
        %v2252 = vld [vmem:[%s724] sm:$0xff]
        %v2253 = vld [vmem:[%s724 + $0x8] sm:$0xff]
        %v2254 = vld [vmem:[%s724 + $0x10] sm:$0xff]
        %v2255 = vld [vmem:[%s724 + $0x18] sm:$0xff]
        %v2256 = vld [vmem:[%s724 + $0x20] sm:$0xff]
        %v2257 = vld [vmem:[%s724 + $0x28] sm:$0xff]
        %v2258 = vld [vmem:[%s724 + $0x30] sm:$0xff]
        %v2259 = vld [vmem:[%s724 + $0x38] sm:$0xff]
        %v2260 = vld [vmem:[%s724 + $0x40] sm:$0xff]
        %v2261 = vld [vmem:[%s724 + $0x48] sm:$0xff]
        %v2262 = vld [vmem:[%s724 + $0x50] sm:$0xff]
        %v2263 = vld [vmem:[%s724 + $0x58] sm:$0xff]
        %v2264 = vld [vmem:[%s724 + $0x60] sm:$0xff]
        %v2265 = vld [vmem:[%s724 + $0x68] sm:$0xff]
        %v2266 = vld [vmem:[%s724 + $0x70] sm:$0xff]
        %v2267 = vld [vmem:[%s724 + $0x78] sm:$0xff]
        %v2268 = vld [vmem:[%s733] sm:$0x3]
        %v2270 = vlaneseq
        %v2271 = vshrl.u32 %v2270, 7
        %v2272 = vsub.s32 0, %v2271
        %v2273 = vrot.slane %v2268, %v2272
        %v2274 = vlaneseq
        %v2275 = vshrl.u32 %v2274, 7
        %v2276 = vsub.s32 1, %v2275
        %v2277 = vrot.slane %v2268, %v2276
        %v2296 = vunpack.c.l.b16 %v2252
        %v2297 = vunpack.c.h.b16 %v2252
        %v2298 = vunpack.c.l.b16 %v2253
        %v2299 = vunpack.c.h.b16 %v2253
        %v2300 = vunpack.c.l.b16 %v2254
        %v2301 = vunpack.c.h.b16 %v2254
        %v2302 = vunpack.c.l.b16 %v2255
        %v2303 = vunpack.c.h.b16 %v2255
        %v2304 = vunpack.c.l.b16 %v2256
        %v2305 = vunpack.c.h.b16 %v2256
        %v2306 = vunpack.c.l.b16 %v2257
        %v2307 = vunpack.c.h.b16 %v2257
        %v2308 = vunpack.c.l.b16 %v2258
        %v2309 = vunpack.c.h.b16 %v2258
        %v2310 = vunpack.c.l.b16 %v2259
        %v2311 = vunpack.c.h.b16 %v2259
        %v2312 = vunpack.c.l.b16 %v2260
        %v2313 = vunpack.c.h.b16 %v2260
        %v2314 = vunpack.c.l.b16 %v2261
        %v2315 = vunpack.c.h.b16 %v2261
        %v2316 = vunpack.c.l.b16 %v2262
        %v2317 = vunpack.c.h.b16 %v2262
        %v2318 = vunpack.c.l.b16 %v2263
        %v2319 = vunpack.c.h.b16 %v2263
        %v2320 = vunpack.c.l.b16 %v2264
        %v2321 = vunpack.c.h.b16 %v2264
        %v2322 = vunpack.c.l.b16 %v2265
        %v2323 = vunpack.c.h.b16 %v2265
        %v2324 = vunpack.c.l.b16 %v2266
        %v2325 = vunpack.c.h.b16 %v2266
        %v2326 = vunpack.c.l.b16 %v2267
        %v2327 = vunpack.c.h.b16 %v2267
        %v2328 = vpack.c.b16 %v2298, %v2296
        %v2329 = vpack.c.b16 %v2299, %v2297
        %v2330 = vpack.c.b16 %v2302, %v2300
        %v2331 = vpack.c.b16 %v2303, %v2301
        %v2332 = vpack.c.b16 %v2306, %v2304
        %v2333 = vpack.c.b16 %v2307, %v2305
        %v2334 = vpack.c.b16 %v2310, %v2308
        %v2335 = vpack.c.b16 %v2311, %v2309
        %v2336 = vpack.c.b16 %v2314, %v2312
        %v2337 = vpack.c.b16 %v2315, %v2313
        %v2338 = vpack.c.b16 %v2318, %v2316
        %v2339 = vpack.c.b16 %v2319, %v2317
        %v2340 = vpack.c.b16 %v2322, %v2320
        %v2341 = vpack.c.b16 %v2323, %v2321
        %v2342 = vpack.c.b16 %v2326, %v2324
        %v2343 = vpack.c.b16 %v2327, %v2325
        %2360 = vmatprep.subr.bf16.mxu0 %v2329
        %2361 = vmatpush1.bf16.msra.mxu0 %v2328
        %2362 = vmatprep.subr.bf16.mxu0 %v2331
        %2363 = vmatpush1.bf16.msra.mxu0 %v2330
        %2364 = vmatprep.subr.bf16.mxu0 %v2333
        %2365 = vmatpush1.bf16.msra.mxu0 %v2332
        %2366 = vmatprep.subr.bf16.mxu0 %v2335
        %2367 = vmatpush1.bf16.msra.mxu0 %v2334
        %2368 = vmatprep.subr.bf16.mxu0 %v2337
        %2369 = vmatpush1.bf16.msra.mxu0 %v2336
        %2370 = vmatprep.subr.bf16.mxu0 %v2339
        %2371 = vmatpush1.bf16.msra.mxu0 %v2338
        %2372 = vmatprep.subr.bf16.mxu0 %v2341
        %2373 = vmatpush1.bf16.msra.mxu0 %v2340
        %2374 = vmatprep.subr.bf16.mxu0 %v2343
        %2375 = vmatpush1.bf16.msra.mxu0 %v2342
        %2376 = vmatprep.subr.bf16.mxu0 0
        %2377 = vmatpush1.bf16.msra.mxu0 0
        %2378 = vmatprep.subr.bf16.mxu0 0
        %2379 = vmatpush1.bf16.msra.mxu0 0
        %2380 = vmatprep.subr.bf16.mxu0 0
        %2381 = vmatpush1.bf16.msra.mxu0 0
        %2382 = vmatprep.subr.bf16.mxu0 0
        %2383 = vmatpush1.bf16.msra.mxu0 0
        %2384 = vmatprep.subr.bf16.mxu0 0
        %2385 = vmatpush1.bf16.msra.mxu0 0
        %2386 = vmatprep.subr.bf16.mxu0 0
        %2387 = vmatpush1.bf16.msra.mxu0 0
        %2388 = vmatprep.subr.bf16.mxu0 0
        %2389 = vmatpush1.bf16.msra.mxu0 0
        %2390 = vmatprep.subr.bf16.mxu0 0
        %2391 = vmatpush1.bf16.msra.mxu0 0
        %2392 = vmatprep.mubr.bf16.mxu0 0
        %2393 = vmatmul.mubr.bf16.gmra.mrb[0].mxu0 %v2251
        %v2394 = vpop.f32.mrb[0].mxu0
        %v2395 = vadd.f32 %v2273, %v2394
        %v2396 = vpop.f32.mrb[0].mxu0
        %v2397 = vadd.f32 %v2277, %v2396
        %v2398 = vpop.f32.mrb[0].mxu0
        %v2399 = vadd.f32 %v2273, %v2398
        %v2400 = vpop.f32.mrb[0].mxu0
        %v2401 = vadd.f32 %v2277, %v2400
        %2402 = vdwg.mxu0
        %v2403 = vmax.f32 %v2395, 0.0
        %v2404 = vmax.f32 %v2397, 0.0
        %v2405 = vmax.f32 %v2399, 0.0
        %v2406 = vmax.f32 %v2401, 0.0
        %v2407 = vpack.c.bf16 %v2405, %v2403
        %v2408 = vpack.c.bf16 %v2406, %v2404
        %v2409 = vld [vmem:[%s742] sm:$0xf]
        %v2410 = vld [vmem:[%s742 + $0x4] sm:$0xf]
        %v2411 = vld [vmem:[%s742 + $0x8] sm:$0xf]
        %v2412 = vld [vmem:[%s742 + $0xc] sm:$0xf]
        %v2413 = vld [vmem:[%s742 + $0x10] sm:$0xf]
        %v2414 = vld [vmem:[%s742 + $0x14] sm:$0xf]
        %v2415 = vld [vmem:[%s742 + $0x18] sm:$0xf]
        %v2416 = vld [vmem:[%s742 + $0x1c] sm:$0xf]
        %v2417 = vld [vmem:[%s742 + $0x20] sm:$0xf]
        %v2418 = vld [vmem:[%s742 + $0x24] sm:$0xf]
        %v2419 = vld [vmem:[%s742 + $0x28] sm:$0xf]
        %v2420 = vld [vmem:[%s742 + $0x2c] sm:$0xf]
        %v2421 = vld [vmem:[%s742 + $0x30] sm:$0xf]
        %v2422 = vld [vmem:[%s742 + $0x34] sm:$0xf]
        %v2423 = vld [vmem:[%s742 + $0x38] sm:$0xf]
        %v2424 = vld [vmem:[%s742 + $0x3c] sm:$0xf]
        %v2425 = vld [vmem:[%s742 + $0x40] sm:$0xf]
        %v2426 = vld [vmem:[%s742 + $0x44] sm:$0xf]
        %v2427 = vld [vmem:[%s742 + $0x48] sm:$0xf]
        %v2428 = vld [vmem:[%s742 + $0x4c] sm:$0xf]
        %v2429 = vld [vmem:[%s742 + $0x50] sm:$0xf]
        %v2430 = vld [vmem:[%s742 + $0x54] sm:$0xf]
        %v2431 = vld [vmem:[%s742 + $0x58] sm:$0xf]
        %v2432 = vld [vmem:[%s742 + $0x5c] sm:$0xf]
        %v2433 = vld [vmem:[%s742 + $0x60] sm:$0xf]
        %v2434 = vld [vmem:[%s742 + $0x64] sm:$0xf]
        %v2435 = vld [vmem:[%s742 + $0x68] sm:$0xf]
        %v2436 = vld [vmem:[%s742 + $0x6c] sm:$0xf]
        %v2437 = vld [vmem:[%s742 + $0x70] sm:$0xf]
        %v2438 = vld [vmem:[%s742 + $0x74] sm:$0xf]
        %v2439 = vld [vmem:[%s742 + $0x78] sm:$0xf]
        %v2440 = vld [vmem:[%s742 + $0x7c] sm:$0xf]
        %v2441 = vld [vmem:[%s750] sm:$0x1]
        %v2443 = vlaneseq
        %v2444 = vshrl.u32 %v2443, 7
        %v2445 = vsub.s32 0, %v2444
        %v2446 = vrot.slane %v2441, %v2445
        %v2480 = vunpack.c.l.b16 %v2409
        %v2481 = vunpack.c.l.b16 %v2410
        %v2482 = vunpack.c.l.b16 %v2411
        %v2483 = vunpack.c.l.b16 %v2412
        %v2484 = vunpack.c.l.b16 %v2413
        %v2485 = vunpack.c.l.b16 %v2414
        %v2486 = vunpack.c.l.b16 %v2415
        %v2487 = vunpack.c.l.b16 %v2416
        %v2488 = vunpack.c.l.b16 %v2417
        %v2489 = vunpack.c.l.b16 %v2418
        %v2490 = vunpack.c.l.b16 %v2419
        %v2491 = vunpack.c.l.b16 %v2420
        %v2492 = vunpack.c.l.b16 %v2421
        %v2493 = vunpack.c.l.b16 %v2422
        %v2494 = vunpack.c.l.b16 %v2423
        %v2495 = vunpack.c.l.b16 %v2424
        %v2496 = vunpack.c.l.b16 %v2425
        %v2497 = vunpack.c.l.b16 %v2426
        %v2498 = vunpack.c.l.b16 %v2427
        %v2499 = vunpack.c.l.b16 %v2428
        %v2500 = vunpack.c.l.b16 %v2429
        %v2501 = vunpack.c.l.b16 %v2430
        %v2502 = vunpack.c.l.b16 %v2431
        %v2503 = vunpack.c.l.b16 %v2432
        %v2504 = vunpack.c.l.b16 %v2433
        %v2505 = vunpack.c.l.b16 %v2434
        %v2506 = vunpack.c.l.b16 %v2435
        %v2507 = vunpack.c.l.b16 %v2436
        %v2508 = vunpack.c.l.b16 %v2437
        %v2509 = vunpack.c.l.b16 %v2438
        %v2510 = vunpack.c.l.b16 %v2439
        %v2511 = vunpack.c.l.b16 %v2440
        %v2512 = vpack.c.b16 %v2481, %v2480
        %v2513 = vpack.c.b16 %v2483, %v2482
        %v2514 = vpack.c.b16 %v2485, %v2484
        %v2515 = vpack.c.b16 %v2487, %v2486
        %v2516 = vpack.c.b16 %v2489, %v2488
        %v2517 = vpack.c.b16 %v2491, %v2490
        %v2518 = vpack.c.b16 %v2493, %v2492
        %v2519 = vpack.c.b16 %v2495, %v2494
        %v2520 = vpack.c.b16 %v2497, %v2496
        %v2521 = vpack.c.b16 %v2499, %v2498
        %v2522 = vpack.c.b16 %v2501, %v2500
        %v2523 = vpack.c.b16 %v2503, %v2502
        %v2524 = vpack.c.b16 %v2505, %v2504
        %v2525 = vpack.c.b16 %v2507, %v2506
        %v2526 = vpack.c.b16 %v2509, %v2508
        %v2527 = vpack.c.b16 %v2511, %v2510
        %2544 = vmatprep.subr.bf16.mxu0 0
        %2545 = vmatpush1.bf16.msra.mxu0 %v2512
        %2546 = vmatprep.subr.bf16.mxu0 0
        %2547 = vmatpush1.bf16.msra.mxu0 %v2513
        %2548 = vmatprep.subr.bf16.mxu0 0
        %2549 = vmatpush1.bf16.msra.mxu0 %v2514
        %2550 = vmatprep.subr.bf16.mxu0 0
        %2551 = vmatpush1.bf16.msra.mxu0 %v2515
        %2552 = vmatprep.subr.bf16.mxu0 0
        %2553 = vmatpush1.bf16.msra.mxu0 %v2516
        %2554 = vmatprep.subr.bf16.mxu0 0
        %2555 = vmatpush1.bf16.msra.mxu0 %v2517
        %2556 = vmatprep.subr.bf16.mxu0 0
        %2557 = vmatpush1.bf16.msra.mxu0 %v2518
        %2558 = vmatprep.subr.bf16.mxu0 0
        %2559 = vmatpush1.bf16.msra.mxu0 %v2519
        %2560 = vmatprep.subr.bf16.mxu0 0
        %2561 = vmatpush1.bf16.msra.mxu0 %v2520
        %2562 = vmatprep.subr.bf16.mxu0 0
        %2563 = vmatpush1.bf16.msra.mxu0 %v2521
        %2564 = vmatprep.subr.bf16.mxu0 0
        %2565 = vmatpush1.bf16.msra.mxu0 %v2522
        %2566 = vmatprep.subr.bf16.mxu0 0
        %2567 = vmatpush1.bf16.msra.mxu0 %v2523
        %2568 = vmatprep.subr.bf16.mxu0 0
        %2569 = vmatpush1.bf16.msra.mxu0 %v2524
        %2570 = vmatprep.subr.bf16.mxu0 0
        %2571 = vmatpush1.bf16.msra.mxu0 %v2525
        %2572 = vmatprep.subr.bf16.mxu0 0
        %2573 = vmatpush1.bf16.msra.mxu0 %v2526
        %2574 = vmatprep.subr.bf16.mxu0 0
        %2575 = vmatpush1.bf16.msra.mxu0 %v2527
        %2576 = vmatprep.mubr.bf16.mxu0 %v2408
        %2577 = vmatmul.mubr.bf16.gmra.mrb[0].mxu0 %v2407
        %v2578 = vpop.f32.mrb[0].mxu0
        %v2579 = vadd.f32 %v2446, %v2578
        %v2580 = vpop.f32.mrb[0].mxu0
        %v2581 = vpop.f32.mrb[0].mxu0
        %v2582 = vadd.f32 %v2446, %v2581
        %v2583 = vpop.f32.mrb[0].mxu0
        %2584 = vdwg.mxu0
        %v2585 = vadd.f32 %v2249, %v2579
        %v2586 = vadd.f32 %v2250, %v2582
        %v2587 = vld [vmem:[%s774] sm:$0x1]
        %v2588 = vld [vmem:[%s782] sm:$0x1]
        %2589 = vadd.xlane.f32.xlu0 %v2585
        %v2590 = vpop.xlane.xlu0 %2589
        %2591 = vadd.xlane.f32.xlu0 %v2586
        %v2592 = vpop.xlane.xlu0 %2591
        %v2593 = vmul.f32 %v2590, %v2216
        %v2594 = vmul.f32 %v2592, %v2216
        %v2595 = vsub.f32 %v2585, %v2593
        %v2596 = vsub.f32 %v2586, %v2594
        %v2597 = vmul.f32 %v2595, %v2595
        %v2598 = vmul.f32 %v2596, %v2596
        %2599 = vadd.xlane.f32.xlu0 %v2597
        %v2600 = vpop.xlane.xlu0 %2599
        %2601 = vadd.xlane.f32.xlu0 %v2598
        %v2602 = vpop.xlane.xlu0 %2601
        %v2603 = vmul.f32 %v2600, %v2216
        %v2604 = vmul.f32 %v2602, %v2216
        %v2605 = vadd.f32 %v2603, 1e-05
        %v2606 = vadd.f32 %v2604, 1e-05
        %v2607 = vrsqrt.pop %v2605
        %v2608 = vrsqrt.pop %v2606
        %v2609 = vmul.f32 %v2595, %v2607
        %v2610 = vmul.f32 %v2596, %v2608
        %v2612 = vlaneseq
        %v2613 = vshrl.u32 %v2612, 7
        %v2614 = vsub.s32 0, %v2613
        %v2615 = vrot.slane %v2587, %v2614
        %v2617 = vmul.f32 %v2609, %v2615
        %v2618 = vmul.f32 %v2610, %v2615
        %v2620 = vlaneseq
        %v2621 = vshrl.u32 %v2620, 7
        %v2622 = vsub.s32 0, %v2621
        %v2623 = vrot.slane %v2588, %v2622
        %v2625 = vadd.f32 %v2617, %v2623
        %v2626 = vadd.f32 %v2618, %v2623
        %2627 = vst [vmem:[#allocation23] sm:$0xff] %v2625
        %2628 = vst [vmem:[#allocation23 + $0x8] sm:$0xff] %v2626
        // Predicated region
        $region129: #{transformer_forward.2} parent=71 // pred_check
          %p2629 = pneg %p412
        $region130: #{transformer_forward.2} parent=71 // pred_check_branch
          %2631 = sbr.rel (%p2629) target = $region132
        $region131: #{transformer_forward.2} parent=71 // pred_region
          %s2632 = smul.u32 2, %s48
          %s2634 = ssub.s32 256, 256
          %2635 = vsyncadd [#allocation4], %s2634
          %s2636 = smul.addr %s2632, 128
          %s2637 = scalar_lea.hbm %s13, %s2636
          %s2638 = sshll.u32 [#allocation23], 4
          %s2639 = int_to_ptr.vmem [resolvable:$true] %s2638
          %2644 = dma.vmem_to_hbm [thread:$0]  %s2639, 256, %s2637, [#allocation4], 128, 128, 8
        $region132: #{transformer_forward.2} parent=71 // pred_fallthru
          _
        // Predicated region
        $region133: #{transformer_forward.2} parent=71 // pred_check
          %p2645 = pneg %p412
        $region134: #{transformer_forward.2} parent=71 // pred_check_branch
          %2647 = sbr.rel (%p2645) target = $region136
        $region135: #{transformer_forward.2} parent=71 // pred_region
          %2648 = dma.done [#allocation4], 256
        $region136: #{transformer_forward.2} parent=71 // pred_fallthru
          _
      $region72: #{transformer_forward.2} parent=5 // pred_fallthru
        _
      %p2649 = scmp.le.s32.totalorder 2, %s39
      // Predicated region
      $region137: #{transformer_forward.2} parent=5 // pred_check
        %p2650 = pneg %p2649
      $region138: #{transformer_forward.2} parent=5 // pred_check_branch
        %2652 = sbr.rel (%p2650) target = $region140
      $region139: #{transformer_forward.2} parent=5 // pred_region
        %s2653 = ssub.s32 %s39, 2
      $region140: #{transformer_forward.2} parent=5 // pred_fallthru
        _
    $region6: #{transformer_forward.2} parent=1 // loop_footer
      %s43 = sadd.s32 1, %s39
    $region7: #{transformer_forward.2} parent=1 // loop_footer_branch
      %38 = sbr.rel target = $region3
    $region8: #{transformer_forward.2} parent=1 // loop_exit
      _
    %2654 = vsyncpa [#allocation3], 1
    %s2655 = scalar_lea.sflag [#allocation3], 1
    %2656 = vsyncpa %s2655, 1
    %2657 = vsyncpa [#allocation6], 1
    %s2658 = scalar_lea.sflag [#allocation6], 1
    %2659 = vsyncpa %s2658, 1
    %2660 = vsyncpa [#allocation9], 1
    %s2661 = scalar_lea.sflag [#allocation9], 1
    %2662 = vsyncpa %s2661, 1
    %2663 = vsyncpa [#allocation12], 1
    %s2664 = scalar_lea.sflag [#allocation12], 1
    %2665 = vsyncpa %s2664, 1
    %2666 = vsyncpa [#allocation15], 1
    %s2667 = scalar_lea.sflag [#allocation15], 1
    %2668 = vsyncpa %s2667, 1
    %2669 = vsyncpa [#allocation18], 1
    %s2670 = scalar_lea.sflag [#allocation18], 1
    %2671 = vsyncpa %s2670, 1
    %2672 = vsyncpa [#allocation21], 1
    %s2673 = scalar_lea.sflag [#allocation21], 1
    %2674 = vsyncpa %s2673, 1
    %2675 = vsyncpa [#allocation4], 1
    %s2676 = scalar_lea.sflag [#allocation4], 1
    %2677 = vsyncpa %s2676, 1

</llo_original>
